<compile_context>
chip_gen: v7x
topology: tpu7x:2x2x1
jax: 0.10.0
libtpu: 0.0.40
codegen_flags: <defaults>
</compile_context>

<pallas_src>
import functools

import jax
import jax.numpy as jnp
from jax import lax
from jax.experimental import pallas as pl
from jax.experimental.pallas import tpu as pltpu

EPS = 1e-5
_TARGET_M = 256          # MXU M-dim target per grid step (v6e/v7x tile height)


def _vmem_limit_bytes():
    """Per-generation VMEM budget: ~3/4 of physical VMEM capped at 100 MiB
    (=> ~96 MiB on v5e/v6e's 128 MiB, ~48 MiB on v7x's 64 MiB); 32 MiB fallback."""
    try:
        cap = pltpu.get_tpu_info().vmem_capacity_bytes
        if cap:
            return int(min(cap * 3 // 4, 100 * 1024 * 1024))
    except Exception:
        pass
    return 32 * 1024 * 1024


# ---------------------------------------------------------------------------
# Kernels (all activations are lane-dense (rows, W*C) slabs; rows = N*H)
# ---------------------------------------------------------------------------
def _conv_band_body(z, b_ref, y_ref, stats_ref, H):
    """3x3 'SAME' conv of a band of M = NB*H rows from NB stacked images.

    z: (M, W*Ci) f32 rows (image i occupies rows [i*H, (i+1)*H)).
    b_ref: (3*W*Ci, W*Co) banded weights with the vertical taps stacked along
    K, so the conv is ONE MXU matmul on the K-concatenated
    [row h-1 | row h | row h+1] operand (single f32 accumulator, one weight
    push).  Writes raw conv rows (M, W*Co) plus BN partial stats padded to a
    full 8-sublane tile (row0 = sum, row1 = sum of squares) -> unmasked store.
    """
    M, WCi = z.shape
    WCo = y_ref.shape[-1]
    # Vertical halo: rows h-1 / h+1 of the SAME image; rows that would cross
    # an image boundary (every H rows inside the band) contribute zero.
    hmod = lax.broadcasted_iota(jnp.int32, (M, WCi), 0) % H
    zrow = jnp.zeros((1, WCi), z.dtype)
    up = jnp.where(hmod == 0, 0.0, jnp.concatenate([zrow, z[:M - 1]], axis=0))
    dn = jnp.where(hmod == H - 1, 0.0, jnp.concatenate([z[1:], zrow], axis=0))
    z3 = jnp.concatenate([up, z, dn], axis=-1).astype(b_ref.dtype)   # (M, 3*WCi)
    y = jnp.dot(z3, b_ref[...], preferred_element_type=jnp.float32)  # (M, WCo) f32
    y_ref[...] = y
    # TODO(synk): E[x^2]-E[x]^2 in f32 can cancel for large-mean activations;
    # fine at demo scale, consider centered/split sums at production scale.
    s1 = jnp.sum(y, axis=0, keepdims=True)
    s2 = jnp.sum(y * y, axis=0, keepdims=True)
    ridx = lax.broadcasted_iota(jnp.int32, (8, WCo), 0)
    stats_ref[0] = jnp.where(ridx == 0, s1, jnp.where(ridx == 1, s2, 0.0))


def _make_conv_kernels(H):
    def conv_kernel(x_ref, b_ref, y_ref, stats_ref):
        # pass 1: conv1 + BN1 partial stats
        _conv_band_body(x_ref[...], b_ref, y_ref, stats_ref, H)

    def bn_relu_conv_kernel(x_ref, scale_ref, shift_ref, b_ref, y_ref, stats_ref):
        # pass 2: BN1-apply (scale/shift FMA) + ReLU + conv2 + BN2 partial stats
        z = jnp.maximum(x_ref[...] * scale_ref[...] + shift_ref[...], 0.0)
        _conv_band_body(z, b_ref, y_ref, stats_ref, H)

    return conv_kernel, bn_relu_conv_kernel


def bn_residual_relu_kernel(y_ref, x_ref, scale_ref, shift_ref, o_ref):
    # pass 3: BN2-apply + identity residual + ReLU (f32 VPU, lane-dense store)
    o_ref[...] = jnp.maximum(
        y_ref[...] * scale_ref[...] + shift_ref[...] + x_ref[...], 0.0
    ).astype(o_ref.dtype)


# ---------------------------------------------------------------------------
# Wrapper glue
# ---------------------------------------------------------------------------
def _convtranspose_to_conv(w_t):
    # ConvTranspose2d(k=3, s=1, p=1) weight (Cin, Cout, 3, 3) -> equivalent
    # 'SAME' conv weight in HWIO (3, 3, Cin, Cout): flip taps, swap in/out.
    return jnp.transpose(w_t[:, :, ::-1, ::-1], (2, 3, 0, 1))


def _banded_row_weights(w_hwio, W):
    """Fold the width axis + 'SAME' zero padding of a 3x3 conv into banded
    row-matmul weights with conv_out_row[h] = sum_kh in_row[h+kh-1] @ B[kh];
    the 3 vertical taps are stacked along K -> (3*W*Ci, W*Co) for one fused
    matmul (rows outside the image contribute zero via the in-kernel mask)."""
    kH, kW, Ci, Co = w_hwio.shape
    B = jnp.zeros((kH, W * Ci, W * Co), w_hwio.dtype)
    for w in range(W):
        for kw in range(kW):
            wp = w + kw - 1              # input column tapped by output col w
            if 0 <= wp < W:
                B = B.at[:, wp * Ci:(wp + 1) * Ci, w * Co:(w + 1) * Co].set(
                    w_hwio[:, kw])
    return B.reshape(kH * W * Ci, W * Co)


def precompute_banded_weights(wt, W, matmul_dtype=jnp.bfloat16):
    """Build the banded conv weight ONCE per model (not per forward call).
    bf16 by default: native MXU dtype on v5e/v6e/v7x and half the weight
    VMEM/DMA bytes; accumulation stays f32 in-kernel."""
    return _banded_row_weights(_convtranspose_to_conv(wt), W).astype(matmul_dtype)


def _bn_scale_shift(stats, gamma, beta, count, W, C):
    """Fold per-band [sum, sumsq] partials into per-channel scale/shift
    (training-mode BatchNorm2d, biased variance, eps=1e-5), tiled to the
    lane-dense (1, W*C) row layout (w-major, c-minor)."""
    s = jnp.sum(stats, axis=0)[:2]                   # (2, W*C)
    s = jnp.sum(s.reshape(2, W, C), axis=1)          # (2, C)
    mean = s[0] / count
    var = s[1] / count - mean * mean                 # f32
    scale = gamma.astype(jnp.float32) * lax.rsqrt(var + EPS)
    shift = beta.astype(jnp.float32) - mean * scale
    return (jnp.tile(scale, W).reshape(1, W * C),
            jnp.tile(shift, W).reshape(1, W * C))


def _conv_call(kernel_fn, n_bn_inputs, G, M, WCi, WCo, vmem_limit):
    in_specs = [pl.BlockSpec((M, WCi), lambda g: (g, 0))]
    in_specs += [pl.BlockSpec((1, WCi), lambda g: (0, 0))
                 for _ in range(n_bn_inputs)]
    # Weight index_map is grid-invariant -> fetched once and kept resident;
    # for very large banded weights it should also be width-banded (see TODO).
    in_specs += [pl.BlockSpec((3 * WCi, WCo), lambda g: (0, 0))]
    return pl.pallas_call(
        kernel_fn,
        out_shape=(jax.ShapeDtypeStruct((G * M, WCo), jnp.float32),
                   jax.ShapeDtypeStruct((G, 8, WCo), jnp.float32)),
        grid=(G,),
        in_specs=in_specs,
        out_specs=(pl.BlockSpec((M, WCo), lambda g: (g, 0)),
                   pl.BlockSpec((1, 8, WCo), lambda g: (g, 0, 0))),
        compiler_params=pltpu.CompilerParams(
            dimension_semantics=("parallel",),
            vmem_limit_bytes=vmem_limit),
    )


def choose_band_images(N, H, target_m=_TARGET_M):
    """Largest divisor NB of N with NB*H <= target_m rows per step, preferring
    a grid of >= 2 steps (megacore sharding + DMA/compute overlap)."""
    divs = sorted((d for d in range(1, N + 1)
                   if N % d == 0 and d * H <= target_m), reverse=True)
    if not divs:
        return 1
    for d in divs:
        if N // d >= 2:
            return d
    return divs[0]


def nchw_to_rows(x_nchw):
    """NCHW -> lane-dense (N*H, W*C) row slab (model-boundary conversion only)."""
    N, C, H, W = x_nchw.shape
    return jnp.transpose(x_nchw, (0, 2, 3, 1)).reshape(N * H, W * C).astype(jnp.float32)


def rows_to_nchw(rows, N, C, H, W):
    return jnp.transpose(rows.reshape(N, H, W, C), (0, 3, 1, 2))


def basic_block_forward_rows(x_rows, B1, B2, g1, b1, g2, b2, *, N, H, W, C, NB):
    """Residual decoder block on the lane-dense (N*H, W*C) row slab.

    Three passes (training-mode BatchNorm forces two batch-wide sync points):
      1) conv1 + BN1 partial stats
      2) BN1-apply + ReLU + conv2 + BN2 partial stats
      3) BN2-apply + identity residual + ReLU
    """
    WC = W * C
    M = NB * H
    G = N // NB
    assert N % NB == 0 and M % 8 == 0
    assert B1.shape == (3 * WC, WC) and B2.shape == (3 * WC, WC), \
        "residual block needs Cin == Cout"
    count = N * H * W
    vmem = _vmem_limit_bytes()
    conv_k, bn_conv_k = _make_conv_kernels(H)

    # pass 1: conv1 + BN1 stats
    y1, s1 = _conv_call(conv_k, 0, G, M, WC, WC, vmem)(x_rows, B1)
    sc1, sh1 = _bn_scale_shift(s1, g1, b1, count, W, C)

    # pass 2: BN1-apply + ReLU + conv2 + BN2 stats
    y2, s2 = _conv_call(bn_conv_k, 2, G, M, WC, WC, vmem)(y1, sc1, sh1, B2)
    sc2, sh2 = _bn_scale_shift(s2, g2, b2, count, W, C)

    # pass 3: BN2-apply + residual + ReLU
    out_rows = pl.pallas_call(
        bn_residual_relu_kernel,
        out_shape=jax.ShapeDtypeStruct((N * H, WC), x_rows.dtype),
        grid=(G,),
        in_specs=[pl.BlockSpec((M, WC), lambda g: (g, 0)),
                  pl.BlockSpec((M, WC), lambda g: (g, 0)),
                  pl.BlockSpec((1, WC), lambda g: (0, 0)),
                  pl.BlockSpec((1, WC), lambda g: (0, 0))],
        out_specs=pl.BlockSpec((M, WC), lambda g: (g, 0)),
        compiler_params=pltpu.CompilerParams(
            dimension_semantics=("parallel",),
            vmem_limit_bytes=vmem),
    )(y2, x_rows, sc2, sh2)
    return out_rows


# ---------------------------------------------------------------------------
# Pure-JAX reference (independent conv path) for validation
# ---------------------------------------------------------------------------
def ref_forward(x_nchw, wt1, wt2, g1, b1, g2, b2):
    x = jnp.transpose(x_nchw, (0, 2, 3, 1))

    def conv(a, w):
        return lax.conv_general_dilated(
            a, w, window_strides=(1, 1), padding="SAME",
            dimension_numbers=("NHWC", "HWIO", "NHWC"))

    def bn(a, g, b):
        m = jnp.mean(a, axis=(0, 1, 2), keepdims=True)
        v = jnp.mean((a - m) ** 2, axis=(0, 1, 2), keepdims=True)
        return ((a - m) / jnp.sqrt(v + EPS) * g.reshape(1, 1, 1, -1)
                + b.reshape(1, 1, 1, -1))

    out = jnp.maximum(bn(conv(x, _convtranspose_to_conv(wt1)), g1, b1), 0.0)
    out = bn(conv(out, _convtranspose_to_conv(wt2)), g2, b2)
    out = jnp.maximum(out + x, 0.0)
    return jnp.transpose(out, (0, 3, 1, 2))


if __name__ == "__main__":
    key = jax.random.PRNGKey(0)
    k_x, k_w1, k_w2, k_g1, k_b1, k_g2, k_b2 = jax.random.split(key, 7)

    # inplanes == planes == 8, stride == 1 (the repeated block of each layer);
    # W*C = 16*8 = 128 -> every activation row is exactly one full vreg width.
    N, C, H, W = 16, 8, 16, 16
    x = jax.random.normal(k_x, (N, C, H, W), jnp.float32)

    # ConvTranspose2d weights: (in_planes, out_planes, 3, 3), bias=False
    wt1 = 0.1 * jax.random.normal(k_w1, (C, C, 3, 3), jnp.float32)
    wt2 = 0.1 * jax.random.normal(k_w2, (C, C, 3, 3), jnp.float32)

    # BatchNorm affine params (slightly perturbed from the default 1 / 0)
    g1 = 1.0 + 0.1 * jax.random.normal(k_g1, (C,), jnp.float32)
    b1 = 0.1 * jax.random.normal(k_b1, (C,), jnp.float32)
    g2 = 1.0 + 0.1 * jax.random.normal(k_g2, (C,), jnp.float32)
    b2 = 0.1 * jax.random.normal(k_b2, (C,), jnp.float32)

    NB = choose_band_images(N, H)    # -> 8 images / step: M = 128 rows, grid = 2
    x_rows = nchw_to_rows(x)         # model-boundary layout conversion (once)
    ref = ref_forward(x, wt1, wt2, g1, b1, g2, b2)

    def run(matmul_dtype):
        B1 = precompute_banded_weights(wt1, W, matmul_dtype)   # once per model
        B2 = precompute_banded_weights(wt2, W, matmul_dtype)
        fwd = jax.jit(functools.partial(
            basic_block_forward_rows, N=N, H=H, W=W, C=C, NB=NB))
        out_rows = jax.block_until_ready(fwd(x_rows, B1, B2, g1, b1, g2, b2))
        return rows_to_nchw(out_rows, N, C, H, W)

    # f32 MXU operands: tight numerical check of the kernel math.
    out_f32 = run(jnp.float32)
    assert out_f32.shape == (N, C, H, W)
    err_f32 = float(jnp.max(jnp.abs(out_f32 - ref)))
    assert err_f32 < 2e-4, err_f32

    # bf16 MXU operands (default perf path on v5e/v6e/v7x, f32 accumulation):
    # relaxed tolerance since bf16-operand conv outputs feed the BN statistics.
    out_bf16 = run(jnp.bfloat16)
    max_err = float(jnp.max(jnp.abs(out_bf16 - ref)))
    mean_err = float(jnp.mean(jnp.abs(out_bf16 - ref)))
    assert max_err < 1e-1 and mean_err < 1e-2, (max_err, mean_err)

    print("KERNEL_OK")
</pallas_src>

<mosaic_0001>
module attributes {stable_mosaic.version = 11 : i64} {
  func.func @conv_kernel(%arg0: i32, %arg1: memref<128x128xf32, #tpu.memory_space<vmem>>, %arg2: memref<384x128xf32, #tpu.memory_space<vmem>>, %arg3: memref<128x128xf32, #tpu.memory_space<vmem>>, %arg4: memref<1x8x128xf32, #tpu.memory_space<vmem>>) attributes {dimension_semantics = [#tpu.dimension_semantics<parallel>], iteration_bounds = array<i64: 2>, scalar_prefetch = 0 : i64, scratch_operands = 0 : i64, tpu.core_type = #tpu.core_type<tc>, window_params = [{transform_indices = @transform_0, window_bounds = array<i64: 128, 128>}, {pipeline_mode = #tpu.pipeline_mode<synchronous>, transform_indices = @transform_1, window_bounds = array<i64: 384, 128>}, {transform_indices = @transform_2, window_bounds = array<i64: 128, 128>}, {transform_indices = @transform_3, window_bounds = array<i64: 1, 8, 128>}]} {
    %c0 = arith.constant 0 : index
    %c0_0 = arith.constant 0 : index
    %0 = vector.load %arg1[%c0, %c0_0] : memref<128x128xf32, #tpu.memory_space<vmem>>, vector<128x128xf32>
    %1 = tpu.iota {dimensions = array<i32: 0>} : vector<128x128xi32>
    %c16_i32 = arith.constant 16 : i32
    %c0_i32 = arith.constant 0 : i32
    %2 = arith.cmpi eq, %c16_i32, %c0_i32 : i32
    %c1_i32 = arith.constant 1 : i32
    %3 = arith.select %2, %c1_i32, %c16_i32 : i32
    %4 = vector.broadcast %3 : i32 to vector<128x128xi32>
    %5 = arith.remsi %1, %4 : vector<128x128xi32>
    %c0_i32_1 = arith.constant 0 : i32
    %6 = vector.broadcast %c0_i32_1 : i32 to vector<128x128xi32>
    %7 = arith.cmpi ne, %5, %6 : vector<128x128xi32>
    %c0_i32_2 = arith.constant 0 : i32
    %8 = vector.broadcast %c0_i32_2 : i32 to vector<128x128xi32>
    %9 = arith.cmpi slt, %5, %8 : vector<128x128xi32>
    %c0_i32_3 = arith.constant 0 : i32
    %10 = arith.cmpi slt, %3, %c0_i32_3 : i32
    %11 = vector.broadcast %10 : i1 to vector<128x128xi1>
    %12 = vector.broadcast %11 : vector<128x128xi1> to vector<128x128xi1>
    %13 = arith.xori %9, %12 : vector<128x128xi1>
    %14 = arith.andi %13, %7 : vector<128x128xi1>
    %15 = vector.broadcast %3 : i32 to vector<128x128xi32>
    %16 = arith.addi %5, %15 : vector<128x128xi32>
    %17 = arith.select %14, %16, %5 : vector<128x128xi1>, vector<128x128xi32>
    %cst = arith.constant 0.000000e+00 : f32
    %18 = vector.broadcast %cst : f32 to vector<1x128xf32>
    %c0_i32_4 = arith.constant 0 : i32
    %19 = vector.broadcast %c0_i32_4 : i32 to vector<128x128xi32>
    %20 = arith.cmpi eq, %17, %19 : vector<128x128xi32>
    %21 = vector.extract_strided_slice %0 {offsets = [0, 0], sizes = [127, 128], strides = [1, 1]} : vector<128x128xf32> to vector<127x128xf32>
    %22 = tpu.concatenate %18, %21 in 0 : vector<1x128xf32>, vector<127x128xf32> -> vector<128x128xf32>
    %cst_5 = arith.constant 0.000000e+00 : f32
    %23 = vector.broadcast %cst_5 : f32 to vector<128x128xf32>
    %24 = arith.select %20, %23, %22 : vector<128x128xi1>, vector<128x128xf32>
    %c15_i32 = arith.constant 15 : i32
    %25 = vector.broadcast %c15_i32 : i32 to vector<128x128xi32>
    %26 = arith.cmpi eq, %17, %25 : vector<128x128xi32>
    %27 = vector.extract_strided_slice %0 {offsets = [1, 0], sizes = [127, 128], strides = [1, 1]} : vector<128x128xf32> to vector<127x128xf32>
    %28 = tpu.concatenate %27, %18 in 0 : vector<127x128xf32>, vector<1x128xf32> -> vector<128x128xf32>
    %cst_6 = arith.constant 0.000000e+00 : f32
    %29 = vector.broadcast %cst_6 : f32 to vector<128x128xf32>
    %30 = arith.select %26, %29, %28 : vector<128x128xi1>, vector<128x128xf32>
    %31 = tpu.concatenate %24, %0, %30 in 1 : vector<128x128xf32>, vector<128x128xf32>, vector<128x128xf32> -> vector<128x384xf32>
    %c0_7 = arith.constant 0 : index
    %c0_8 = arith.constant 0 : index
    %32 = vector.load %arg2[%c0_7, %c0_8] : memref<384x128xf32, #tpu.memory_space<vmem>>, vector<384x128xf32>
    %cst_9 = arith.constant dense<0.000000e+00> : vector<128x128xf32>
    %33 = tpu.matmul %31, %32, %cst_9 {dimension_numbers = #tpu.dot_dimension_numbers<[1], [0], [0], [1], [0, 0, 1, 1], [], []>} : vector<128x384xf32>, vector<384x128xf32>, vector<128x128xf32> -> vector<128x128xf32>
    %c0_10 = arith.constant 0 : index
    %c0_11 = arith.constant 0 : index
    %34 = vector.load %arg3[%c0_10, %c0_11] : memref<128x128xf32, #tpu.memory_space<vmem>>, vector<128x128xf32>
    tpu.vector_store %arg3[%c0_10, %c0_11], %33 {strides = array<i32>} : memref<128x128xf32, #tpu.memory_space<vmem>>, vector<128x128xf32>,
    %cst_12 = arith.constant dense<0.000000e+00> : vector<128xf32>
    %35 = vector.multi_reduction <add>, %33, %cst_12 [0] : vector<128x128xf32> to vector<128xf32>
    %36 = vector.shape_cast %35 : vector<128xf32> to vector<1x128xf32>
    %37 = arith.mulf %33, %33 : vector<128x128xf32>
    %cst_13 = arith.constant dense<0.000000e+00> : vector<128xf32>
    %38 = vector.multi_reduction <add>, %37, %cst_13 [0] : vector<128x128xf32> to vector<128xf32>
    %39 = vector.shape_cast %38 : vector<128xf32> to vector<1x128xf32>
    %40 = tpu.iota {dimensions = array<i32: 0>} : vector<8x128xi32>
    %c0_i32_14 = arith.constant 0 : i32
    %41 = vector.broadcast %c0_i32_14 : i32 to vector<8x128xi32>
    %42 = arith.cmpi eq, %40, %41 : vector<8x128xi32>
    %c1_i32_15 = arith.constant 1 : i32
    %43 = vector.broadcast %c1_i32_15 : i32 to vector<8x128xi32>
    %44 = arith.cmpi eq, %40, %43 : vector<8x128xi32>
    %cst_16 = arith.constant 0.000000e+00 : f32
    %45 = vector.shape_cast %39 : vector<1x128xf32> to vector<1x128xf32>
    %46 = vector.broadcast %45 : vector<1x128xf32> to vector<8x128xf32>
    %47 = vector.broadcast %cst_16 : f32 to vector<8x128xf32>
    %48 = arith.select %44, %46, %47 : vector<8x128xi1>, vector<8x128xf32>
    %49 = vector.shape_cast %36 : vector<1x128xf32> to vector<1x128xf32>
    %50 = vector.broadcast %49 : vector<1x128xf32> to vector<8x128xf32>
    %51 = arith.select %42, %50, %48 : vector<8x128xi1>, vector<8x128xf32>
    %c0_17 = arith.constant 0 : index
    %c0_18 = arith.constant 0 : index
    %c0_19 = arith.constant 0 : index
    %52 = vector.load %arg4[%c0_17, %c0_18, %c0_19] : memref<1x8x128xf32, #tpu.memory_space<vmem>>, vector<1x8x128xf32>
    %53 = vector.shape_cast %52 : vector<1x8x128xf32> to vector<8x128xf32>
    %54 = vector.shape_cast %51 : vector<8x128xf32> to vector<1x8x128xf32>
    tpu.vector_store %arg4[%c0_17, %c0_18, %c0_19], %54 {strides = array<i32>} : memref<1x8x128xf32, #tpu.memory_space<vmem>>, vector<1x8x128xf32>,
    return
  }
  func.func @transform_0(%arg0: i32) -> (i32, i32) {
    %c0_i32 = arith.constant 0 : i32
    %c0_i32_0 = arith.constant 0 : i32
    return %arg0, %c0_i32 : i32, i32
  }
  func.func @transform_1(%arg0: i32) -> (i32, i32) {
    %c0_i32 = arith.constant 0 : i32
    %c0_i32_0 = arith.constant 0 : i32
    %c0_i32_1 = arith.constant 0 : i32
    return %c0_i32, %c0_i32_0 : i32, i32
  }
  func.func @transform_2(%arg0: i32) -> (i32, i32) {
    %c0_i32 = arith.constant 0 : i32
    %c0_i32_0 = arith.constant 0 : i32
    return %arg0, %c0_i32 : i32, i32
  }
  func.func @transform_3(%arg0: i32) -> (i32, i32, i32) {
    %c0_i32 = arith.constant 0 : i32
    %c0_i32_0 = arith.constant 0 : i32
    %c0_i32_1 = arith.constant 0 : i32
    return %arg0, %c0_i32, %c0_i32_0 : i32, i32, i32
  }
}

module attributes {stable_mosaic.version = 11 : i64} {
  func.func @bn_relu_conv_kernel(%arg0: i32, %arg1: memref<128x128xf32, #tpu.memory_space<vmem>>, %arg2: memref<1x128xf32, #tpu.memory_space<vmem>>, %arg3: memref<1x128xf32, #tpu.memory_space<vmem>>, %arg4: memref<384x128xf32, #tpu.memory_space<vmem>>, %arg5: memref<128x128xf32, #tpu.memory_space<vmem>>, %arg6: memref<1x8x128xf32, #tpu.memory_space<vmem>>) attributes {dimension_semantics = [#tpu.dimension_semantics<parallel>], iteration_bounds = array<i64: 2>, scalar_prefetch = 0 : i64, scratch_operands = 0 : i64, tpu.core_type = #tpu.core_type<tc>, window_params = [{transform_indices = @transform_0, window_bounds = array<i64: 128, 128>}, {pipeline_mode = #tpu.pipeline_mode<synchronous>, transform_indices = @transform_1, window_bounds = array<i64: 1, 128>}, {pipeline_mode = #tpu.pipeline_mode<synchronous>, transform_indices = @transform_2, window_bounds = array<i64: 1, 128>}, {pipeline_mode = #tpu.pipeline_mode<synchronous>, transform_indices = @transform_3, window_bounds = array<i64: 384, 128>}, {transform_indices = @transform_4, window_bounds = array<i64: 128, 128>}, {transform_indices = @transform_5, window_bounds = array<i64: 1, 8, 128>}]} {
    %c0 = arith.constant 0 : index
    %c0_0 = arith.constant 0 : index
    %0 = vector.load %arg1[%c0, %c0_0] : memref<128x128xf32, #tpu.memory_space<vmem>>, vector<128x128xf32>
    %c0_1 = arith.constant 0 : index
    %c0_2 = arith.constant 0 : index
    %1 = vector.load %arg2[%c0_1, %c0_2] : memref<1x128xf32, #tpu.memory_space<vmem>>, vector<1x128xf32>
    %2 = vector.broadcast %1 : vector<1x128xf32> to vector<128x128xf32>
    %3 = arith.mulf %0, %2 : vector<128x128xf32>
    %c0_3 = arith.constant 0 : index
    %c0_4 = arith.constant 0 : index
    %4 = vector.load %arg3[%c0_3, %c0_4] : memref<1x128xf32, #tpu.memory_space<vmem>>, vector<1x128xf32>
    %5 = vector.broadcast %4 : vector<1x128xf32> to vector<128x128xf32>
    %6 = arith.addf %3, %5 : vector<128x128xf32>
    %cst = arith.constant 0.000000e+00 : f32
    %7 = vector.broadcast %cst : f32 to vector<128x128xf32>
    %8 = arith.maximumf %6, %7 : vector<128x128xf32>
    %9 = tpu.iota {dimensions = array<i32: 0>} : vector<128x128xi32>
    %c16_i32 = arith.constant 16 : i32
    %c0_i32 = arith.constant 0 : i32
    %10 = arith.cmpi eq, %c16_i32, %c0_i32 : i32
    %c1_i32 = arith.constant 1 : i32
    %11 = arith.select %10, %c1_i32, %c16_i32 : i32
    %12 = vector.broadcast %11 : i32 to vector<128x128xi32>
    %13 = arith.remsi %9, %12 : vector<128x128xi32>
    %c0_i32_5 = arith.constant 0 : i32
    %14 = vector.broadcast %c0_i32_5 : i32 to vector<128x128xi32>
    %15 = arith.cmpi ne, %13, %14 : vector<128x128xi32>
    %c0_i32_6 = arith.constant 0 : i32
    %16 = vector.broadcast %c0_i32_6 : i32 to vector<128x128xi32>
    %17 = arith.cmpi slt, %13, %16 : vector<128x128xi32>
    %c0_i32_7 = arith.constant 0 : i32
    %18 = arith.cmpi slt, %11, %c0_i32_7 : i32
    %19 = vector.broadcast %18 : i1 to vector<128x128xi1>
    %20 = vector.broadcast %19 : vector<128x128xi1> to vector<128x128xi1>
    %21 = arith.xori %17, %20 : vector<128x128xi1>
    %22 = arith.andi %21, %15 : vector<128x128xi1>
    %23 = vector.broadcast %11 : i32 to vector<128x128xi32>
    %24 = arith.addi %13, %23 : vector<128x128xi32>
    %25 = arith.select %22, %24, %13 : vector<128x128xi1>, vector<128x128xi32>
    %cst_8 = arith.constant 0.000000e+00 : f32
    %26 = vector.broadcast %cst_8 : f32 to vector<1x128xf32>
    %c0_i32_9 = arith.constant 0 : i32
    %27 = vector.broadcast %c0_i32_9 : i32 to vector<128x128xi32>
    %28 = arith.cmpi eq, %25, %27 : vector<128x128xi32>
    %29 = vector.extract_strided_slice %8 {offsets = [0, 0], sizes = [127, 128], strides = [1, 1]} : vector<128x128xf32> to vector<127x128xf32>
    %30 = tpu.concatenate %26, %29 in 0 : vector<1x128xf32>, vector<127x128xf32> -> vector<128x128xf32>
    %cst_10 = arith.constant 0.000000e+00 : f32
    %31 = vector.broadcast %cst_10 : f32 to vector<128x128xf32>
    %32 = arith.select %28, %31, %30 : vector<128x128xi1>, vector<128x128xf32>
    %c15_i32 = arith.constant 15 : i32
    %33 = vector.broadcast %c15_i32 : i32 to vector<128x128xi32>
    %34 = arith.cmpi eq, %25, %33 : vector<128x128xi32>
    %35 = vector.extract_strided_slice %8 {offsets = [1, 0], sizes = [127, 128], strides = [1, 1]} : vector<128x128xf32> to vector<127x128xf32>
    %36 = tpu.concatenate %35, %26 in 0 : vector<127x128xf32>, vector<1x128xf32> -> vector<128x128xf32>
    %cst_11 = arith.constant 0.000000e+00 : f32
    %37 = vector.broadcast %cst_11 : f32 to vector<128x128xf32>
    %38 = arith.select %34, %37, %36 : vector<128x128xi1>, vector<128x128xf32>
    %39 = tpu.concatenate %32, %8, %38 in 1 : vector<128x128xf32>, vector<128x128xf32>, vector<128x128xf32> -> vector<128x384xf32>
    %c0_12 = arith.constant 0 : index
    %c0_13 = arith.constant 0 : index
    %40 = vector.load %arg4[%c0_12, %c0_13] : memref<384x128xf32, #tpu.memory_space<vmem>>, vector<384x128xf32>
    %cst_14 = arith.constant dense<0.000000e+00> : vector<128x128xf32>
    %41 = tpu.matmul %39, %40, %cst_14 {dimension_numbers = #tpu.dot_dimension_numbers<[1], [0], [0], [1], [0, 0, 1, 1], [], []>} : vector<128x384xf32>, vector<384x128xf32>, vector<128x128xf32> -> vector<128x128xf32>
    %c0_15 = arith.constant 0 : index
    %c0_16 = arith.constant 0 : index
    %42 = vector.load %arg5[%c0_15, %c0_16] : memref<128x128xf32, #tpu.memory_space<vmem>>, vector<128x128xf32>
    tpu.vector_store %arg5[%c0_15, %c0_16], %41 {strides = array<i32>} : memref<128x128xf32, #tpu.memory_space<vmem>>, vector<128x128xf32>,
    %cst_17 = arith.constant dense<0.000000e+00> : vector<128xf32>
    %43 = vector.multi_reduction <add>, %41, %cst_17 [0] : vector<128x128xf32> to vector<128xf32>
    %44 = vector.shape_cast %43 : vector<128xf32> to vector<1x128xf32>
    %45 = arith.mulf %41, %41 : vector<128x128xf32>
    %cst_18 = arith.constant dense<0.000000e+00> : vector<128xf32>
    %46 = vector.multi_reduction <add>, %45, %cst_18 [0] : vector<128x128xf32> to vector<128xf32>
    %47 = vector.shape_cast %46 : vector<128xf32> to vector<1x128xf32>
    %48 = tpu.iota {dimensions = array<i32: 0>} : vector<8x128xi32>
    %c0_i32_19 = arith.constant 0 : i32
    %49 = vector.broadcast %c0_i32_19 : i32 to vector<8x128xi32>
    %50 = arith.cmpi eq, %48, %49 : vector<8x128xi32>
    %c1_i32_20 = arith.constant 1 : i32
    %51 = vector.broadcast %c1_i32_20 : i32 to vector<8x128xi32>
    %52 = arith.cmpi eq, %48, %51 : vector<8x128xi32>
    %cst_21 = arith.constant 0.000000e+00 : f32
    %53 = vector.shape_cast %47 : vector<1x128xf32> to vector<1x128xf32>
    %54 = vector.broadcast %53 : vector<1x128xf32> to vector<8x128xf32>
    %55 = vector.broadcast %cst_21 : f32 to vector<8x128xf32>
    %56 = arith.select %52, %54, %55 : vector<8x128xi1>, vector<8x128xf32>
    %57 = vector.shape_cast %44 : vector<1x128xf32> to vector<1x128xf32>
    %58 = vector.broadcast %57 : vector<1x128xf32> to vector<8x128xf32>
    %59 = arith.select %50, %58, %56 : vector<8x128xi1>, vector<8x128xf32>
    %c0_22 = arith.constant 0 : index
    %c0_23 = arith.constant 0 : index
    %c0_24 = arith.constant 0 : index
    %60 = vector.load %arg6[%c0_22, %c0_23, %c0_24] : memref<1x8x128xf32, #tpu.memory_space<vmem>>, vector<1x8x128xf32>
    %61 = vector.shape_cast %60 : vector<1x8x128xf32> to vector<8x128xf32>
    %62 = vector.shape_cast %59 : vector<8x128xf32> to vector<1x8x128xf32>
    tpu.vector_store %arg6[%c0_22, %c0_23, %c0_24], %62 {strides = array<i32>} : memref<1x8x128xf32, #tpu.memory_space<vmem>>, vector<1x8x128xf32>,
    return
  }
  func.func @transform_0(%arg0: i32) -> (i32, i32) {
    %c0_i32 = arith.constant 0 : i32
    %c0_i32_0 = arith.constant 0 : i32
    return %arg0, %c0_i32 : i32, i32
  }
  func.func @transform_1(%arg0: i32) -> (i32, i32) {
    %c0_i32 = arith.constant 0 : i32
    %c0_i32_0 = arith.constant 0 : i32
    %c0_i32_1 = arith.constant 0 : i32
    return %c0_i32, %c0_i32_0 : i32, i32
  }
  func.func @transform_2(%arg0: i32) -> (i32, i32) {
    %c0_i32 = arith.constant 0 : i32
    %c0_i32_0 = arith.constant 0 : i32
    %c0_i32_1 = arith.constant 0 : i32
    return %c0_i32, %c0_i32_0 : i32, i32
  }
  func.func @transform_3(%arg0: i32) -> (i32, i32) {
    %c0_i32 = arith.constant 0 : i32
    %c0_i32_0 = arith.constant 0 : i32
    %c0_i32_1 = arith.constant 0 : i32
    return %c0_i32, %c0_i32_0 : i32, i32
  }
  func.func @transform_4(%arg0: i32) -> (i32, i32) {
    %c0_i32 = arith.constant 0 : i32
    %c0_i32_0 = arith.constant 0 : i32
    return %arg0, %c0_i32 : i32, i32
  }
  func.func @transform_5(%arg0: i32) -> (i32, i32, i32) {
    %c0_i32 = arith.constant 0 : i32
    %c0_i32_0 = arith.constant 0 : i32
    %c0_i32_1 = arith.constant 0 : i32
    return %arg0, %c0_i32, %c0_i32_0 : i32, i32, i32
  }
}

module attributes {stable_mosaic.version = 11 : i64} {
  func.func @bn_residual_relu_kernel(%arg0: i32, %arg1: memref<128x128xf32, #tpu.memory_space<vmem>>, %arg2: memref<128x128xf32, #tpu.memory_space<vmem>>, %arg3: memref<1x128xf32, #tpu.memory_space<vmem>>, %arg4: memref<1x128xf32, #tpu.memory_space<vmem>>, %arg5: memref<128x128xf32, #tpu.memory_space<vmem>>) attributes {dimension_semantics = [#tpu.dimension_semantics<parallel>], iteration_bounds = array<i64: 2>, scalar_prefetch = 0 : i64, scratch_operands = 0 : i64, tpu.core_type = #tpu.core_type<tc>, window_params = [{transform_indices = @transform_0, window_bounds = array<i64: 128, 128>}, {transform_indices = @transform_1, window_bounds = array<i64: 128, 128>}, {pipeline_mode = #tpu.pipeline_mode<synchronous>, transform_indices = @transform_2, window_bounds = array<i64: 1, 128>}, {pipeline_mode = #tpu.pipeline_mode<synchronous>, transform_indices = @transform_3, window_bounds = array<i64: 1, 128>}, {transform_indices = @transform_4, window_bounds = array<i64: 128, 128>}]} {
    %c0 = arith.constant 0 : index
    %c0_0 = arith.constant 0 : index
    %0 = vector.load %arg1[%c0, %c0_0] : memref<128x128xf32, #tpu.memory_space<vmem>>, vector<128x128xf32>
    %c0_1 = arith.constant 0 : index
    %c0_2 = arith.constant 0 : index
    %1 = vector.load %arg3[%c0_1, %c0_2] : memref<1x128xf32, #tpu.memory_space<vmem>>, vector<1x128xf32>
    %2 = vector.broadcast %1 : vector<1x128xf32> to vector<128x128xf32>
    %3 = arith.mulf %0, %2 : vector<128x128xf32>
    %c0_3 = arith.constant 0 : index
    %c0_4 = arith.constant 0 : index
    %4 = vector.load %arg4[%c0_3, %c0_4] : memref<1x128xf32, #tpu.memory_space<vmem>>, vector<1x128xf32>
    %5 = vector.broadcast %4 : vector<1x128xf32> to vector<128x128xf32>
    %6 = arith.addf %3, %5 : vector<128x128xf32>
    %c0_5 = arith.constant 0 : index
    %c0_6 = arith.constant 0 : index
    %7 = vector.load %arg2[%c0_5, %c0_6] : memref<128x128xf32, #tpu.memory_space<vmem>>, vector<128x128xf32>
    %8 = arith.addf %6, %7 : vector<128x128xf32>
    %cst = arith.constant 0.000000e+00 : f32
    %9 = vector.broadcast %cst : f32 to vector<128x128xf32>
    %10 = arith.maximumf %8, %9 : vector<128x128xf32>
    %c0_7 = arith.constant 0 : index
    %c0_8 = arith.constant 0 : index
    %11 = vector.load %arg5[%c0_7, %c0_8] : memref<128x128xf32, #tpu.memory_space<vmem>>, vector<128x128xf32>
    tpu.vector_store %arg5[%c0_7, %c0_8], %10 {strides = array<i32>} : memref<128x128xf32, #tpu.memory_space<vmem>>, vector<128x128xf32>,
    return
  }
  func.func @transform_0(%arg0: i32) -> (i32, i32) {
    %c0_i32 = arith.constant 0 : i32
    %c0_i32_0 = arith.constant 0 : i32
    return %arg0, %c0_i32 : i32, i32
  }
  func.func @transform_1(%arg0: i32) -> (i32, i32) {
    %c0_i32 = arith.constant 0 : i32
    %c0_i32_0 = arith.constant 0 : i32
    return %arg0, %c0_i32 : i32, i32
  }
  func.func @transform_2(%arg0: i32) -> (i32, i32) {
    %c0_i32 = arith.constant 0 : i32
    %c0_i32_0 = arith.constant 0 : i32
    %c0_i32_1 = arith.constant 0 : i32
    return %c0_i32, %c0_i32_0 : i32, i32
  }
  func.func @transform_3(%arg0: i32) -> (i32, i32) {
    %c0_i32 = arith.constant 0 : i32
    %c0_i32_0 = arith.constant 0 : i32
    %c0_i32_1 = arith.constant 0 : i32
    return %c0_i32, %c0_i32_0 : i32, i32
  }
  func.func @transform_4(%arg0: i32) -> (i32, i32) {
    %c0_i32 = arith.constant 0 : i32
    %c0_i32_0 = arith.constant 0 : i32
    return %arg0, %c0_i32 : i32, i32
  }
}

</mosaic_0001>

<llo_original>
// kernel: tile.28
$region0: #{tile.28}
  #allocation0 [shape = 's32[1]{0}', space=sflag, size = 0x4, scoped, tag = 'scoped memory for tile.28']
  %s0 = inlined_call_operand.vmem [shape: f32[8], index: 0, kind: input, shape index: {}]
  %s1 = inlined_call_operand.vmem [shape: f32[16,8], index: 1, kind: output, shape index: {}]
  // Predicated region
  $region2: #{tile.28} parent=0 // pred_check
    _
  $region3: #{tile.28} parent=0 // pred_check_branch
    %3 = sbr.rel (0) target = $region5
  $region4: #{tile.28} parent=0 // pred_region
    _
  $region5: #{tile.28} parent=0 // pred_fallthru
    _
  %v4 = vld [vmem:[%s0] ss:$0 sm:$0xff]
  %5 = vst [vmem:[%s1] sm:$0xff] %v4
  %s6 = scalar_lea.vmem %s1, 8
  %7 = vst [vmem:[%s6] sm:$0xff] %v4

// kernel: tile.29
$region0: #{tile.29}
  %s0 = inlined_call_operand.vmem [shape: f32[16,8], index: 0, kind: input, shape index: {}]
  %s1 = inlined_call_operand.vmem [shape: f32[1,128], index: 1, kind: output, shape index: {}]
  $region1: #{tile.29} parent=0
    #allocation0 [shape = 'u8[4096]{0}', space=vmem, size = 0x1000, scoped, tag = 'scoped mem for output reshape']
    %v2 = vld [vmem:[%s0] sm:$0x1]
    %vm3 = vcmask 64512
    %4 = vst.msk [vmem:[#allocation0] sm:$0x1] %vm3, %v2
    %s5 = scalar_lea.vmem %s0, 15
    %v6 = vld [vmem:[%s5] sm:$0x1]
    %7 = vrot.lane.b32.xlu0 %v6, 120
    %v8 = vpop.permute.xlu0 %7
    %vm9 = vcmask 1048512
    %10 = vst.msk [vmem:[#allocation0] sm:$0x1] %vm9, %v8
    %s11 = scalar_lea.vmem %s0, 14
    %v12 = vld [vmem:[%s11] sm:$0x1]
    %13 = vrot.lane.b32.xlu0 %v12, 112
    %v14 = vpop.permute.xlu0 %13
    %vm15 = vcmask 982912
    %16 = vst.msk [vmem:[#allocation0] sm:$0x1] %vm15, %v14
    %s17 = scalar_lea.vmem %s0, 13
    %v18 = vld [vmem:[%s17] sm:$0x1]
    %19 = vrot.lane.b32.xlu0 %v18, 104
    %v20 = vpop.permute.xlu0 %19
    %vm21 = vcmask 917312
    %22 = vst.msk [vmem:[#allocation0] sm:$0x1] %vm21, %v20
    %s23 = scalar_lea.vmem %s0, 12
    %v24 = vld [vmem:[%s23] sm:$0x1]
    %25 = vrot.lane.b32.xlu0 %v24, 96
    %v26 = vpop.permute.xlu0 %25
    %vm27 = vcmask 851712
    %28 = vst.msk [vmem:[#allocation0] sm:$0x1] %vm27, %v26
    %s29 = scalar_lea.vmem %s0, 11
    %v30 = vld [vmem:[%s29] sm:$0x1]
    %31 = vrot.lane.b32.xlu0 %v30, 88
    %v32 = vpop.permute.xlu0 %31
    %vm33 = vcmask 786112
    %34 = vst.msk [vmem:[#allocation0] sm:$0x1] %vm33, %v32
    %s35 = scalar_lea.vmem %s0, 10
    %v36 = vld [vmem:[%s35] sm:$0x1]
    %37 = vrot.lane.b32.xlu0 %v36, 80
    %v38 = vpop.permute.xlu0 %37
    %vm39 = vcmask 720512
    %40 = vst.msk [vmem:[#allocation0] sm:$0x1] %vm39, %v38
    %s41 = scalar_lea.vmem %s0, 9
    %v42 = vld [vmem:[%s41] sm:$0x1]
    %43 = vrot.lane.b32.xlu0 %v42, 72
    %v44 = vpop.permute.xlu0 %43
    %vm45 = vcmask 654912
    %46 = vst.msk [vmem:[#allocation0] sm:$0x1] %vm45, %v44
    %s47 = scalar_lea.vmem %s0, 8
    %v48 = vld [vmem:[%s47] sm:$0x1]
    %49 = vrot.lane.b32.xlu0 %v48, 64
    %v50 = vpop.permute.xlu0 %49
    %vm51 = vcmask 589312
    %52 = vst.msk [vmem:[#allocation0] sm:$0x1] %vm51, %v50
    %s53 = scalar_lea.vmem %s0, 7
    %v54 = vld [vmem:[%s53] sm:$0x1]
    %55 = vrot.lane.b32.xlu0 %v54, 56
    %v56 = vpop.permute.xlu0 %55
    %vm57 = vcmask 523712
    %58 = vst.msk [vmem:[#allocation0] sm:$0x1] %vm57, %v56
    %s59 = scalar_lea.vmem %s0, 6
    %v60 = vld [vmem:[%s59] sm:$0x1]
    %61 = vrot.lane.b32.xlu0 %v60, 48
    %v62 = vpop.permute.xlu0 %61
    %vm63 = vcmask 458112
    %64 = vst.msk [vmem:[#allocation0] sm:$0x1] %vm63, %v62
    %s65 = scalar_lea.vmem %s0, 5
    %v66 = vld [vmem:[%s65] sm:$0x1]
    %67 = vrot.lane.b32.xlu0 %v66, 40
    %v68 = vpop.permute.xlu0 %67
    %vm69 = vcmask 392512
    %70 = vst.msk [vmem:[#allocation0] sm:$0x1] %vm69, %v68
    %s71 = scalar_lea.vmem %s0, 4
    %v72 = vld [vmem:[%s71] sm:$0x1]
    %73 = vrot.lane.b32.xlu0 %v72, 32
    %v74 = vpop.permute.xlu0 %73
    %vm75 = vcmask 326912
    %76 = vst.msk [vmem:[#allocation0] sm:$0x1] %vm75, %v74
    %s77 = scalar_lea.vmem %s0, 3
    %v78 = vld [vmem:[%s77] sm:$0x1]
    %79 = vrot.lane.b32.xlu0 %v78, 24
    %v80 = vpop.permute.xlu0 %79
    %vm81 = vcmask 261312
    %82 = vst.msk [vmem:[#allocation0] sm:$0x1] %vm81, %v80
    %s83 = scalar_lea.vmem %s0, 2
    %v84 = vld [vmem:[%s83] sm:$0x1]
    %85 = vrot.lane.b32.xlu0 %v84, 16
    %v86 = vpop.permute.xlu0 %85
    %vm87 = vcmask 195712
    %88 = vst.msk [vmem:[#allocation0] sm:$0x1] %vm87, %v86
    %s89 = scalar_lea.vmem %s0, 1
    %v90 = vld [vmem:[%s89] sm:$0x1]
    %91 = vrot.lane.b32.xlu0 %v90, 8
    %v92 = vpop.permute.xlu0 %91
    %vm93 = vcmask 130112
    %94 = vst.msk [vmem:[#allocation0] sm:$0x1] %vm93, %v92
    %s96 = sshllo.u32 0, 1
    %v98 = vld [vmem:[#allocation0] sm:%s96]
    %s99 = sshllo.u32 0, 1
    %100 = vst [vmem:[%s1] sm:%s99] %v98

// kernel: basic_block_forward_rows.5
$region0: #{basic_block_forward_rows.5}
  #allocation0 [shape = 'u32[]', space=smem, size = 0x4, offset = 0x4, fixed_abs, tag = 'smem constant byte address 0x4 - core index']
  #allocation1 [shape = 'u32[144,128]{1,0:T(1,128)}', space=vmem, size = 0x12000, scoped, tag = 'internal scratch']
  %s0 = inlined_call_operand.vmem [shape: f32[256,128], index: 0, kind: input, shape index: {}]
  %s1 = inlined_call_operand.vmem [shape: f32[256,128], index: 1, kind: input, shape index: {}]
  %s2 = inlined_call_operand.vmem [shape: f32[1,128], index: 2, kind: input, shape index: {}]
  %s3 = inlined_call_operand.vmem [shape: f32[1,128], index: 3, kind: input, shape index: {}]
  %s4 = inlined_call_operand.hbm [shape: f32[256,128], index: 4, kind: output, shape index: {}]
  %s5 = sld [smem:[#allocation0]]
  $region49: #{basic_block_forward_rows.5} parent=0
    _
  %s7 = ssub.s32 1, %s5
  %s8 = scalar_select 0, %s7, %s5
  $region1: #{basic_block_forward_rows.5} parent=0
    #allocation2 [shape = 'u8[131072]{0}', space=vmem, size = 0x20000, scoped, tag = 'output window, operand 0']
    #allocation3 [shape = 's32[2]{0}', space=sflag, size = 0x8, scoped, tag = 'scoped memory for basic_block_forward_rows.5']
    %9 = vsyncpa [#allocation3], 0
    %s10 = scalar_lea.sflag [#allocation3], 1
    %11 = vsyncpa %s10, 0
    loop: start=0, step=1, limit=4
    $region2: #{basic_block_forward_rows.5} parent=1 // loop_pre_header
      _
    $region3: #{basic_block_forward_rows.5} parent=1 // loop_header
      %s13 = sphi 0, %s17
      %p14 = scmp.ge.s32.totalorder %s13, 4
      %s23 = sphi 0, %s25
      %s26 = sphi 0, %s23
      %s27 = sphi 0, %s26
      %s43 = sphi 0, %s27
      %s49 = sphi 0, %s51
      %s52 = sphi 0, %s49
      %s53 = sphi 0, %s52
      %s69 = sphi 0, %s53
      %s73 = sphi 0, %s73
      %s75 = sphi 0, %s73
      %s76 = sphi 0, %s75
      %s90 = sphi 0, %s76
      %s94 = sphi 0, %s94
      %s96 = sphi 0, %s94
      %s97 = sphi 0, %s96
      %s111 = sphi 0, %s97
      %s117 = sphi 0, %s119
      %s120 = sphi 0, %s117
      %s121 = sphi 0, %s120
      %s137 = sphi 0, %s121
    $region4: #{basic_block_forward_rows.5} parent=1 // loop_header_branch
      %16 = sbr.rel (%p14) target = $region8
    $region5: #{basic_block_forward_rows.5} parent=1 // loop_body
      %s18 = ssub.s32 %s13, 1
      %s19 = ssub.s32 %s13, 2
      %s20 = sadd.s32 %s13, 1
      %s21 = ssub.s32 %s13, %s20
      %p22 = scmp.eq.s32.totalorder %s21, 0
      %s24 = sadd.s32 %s23, 1
      %s25 = scalar_select %p22, %s23, %s24
      %p28 = pneg %p22
      %p29 = scmp.eq.s32.totalorder %s13, 1
      %p30 = por %p28, %p29
      %p31 = scmp.ne.s32.totalorder %s23, %s26
      %p32 = scmp.eq.s32.totalorder %s13, 0
      %p33 = por %p31, %p32
      %p34 = scmp.ne.s32.totalorder %s23, %s26
      %p35 = scmp.eq.s32.totalorder %s18, 1
      %p36 = por %p34, %p35
      %p37 = scmp.ne.s32.totalorder %s26, %s27
      %p38 = scmp.eq.s32.totalorder %s18, 0
      %p39 = por %p37, %p38
      %p40 = scmp.ne.s32.totalorder %s26, %s27
      %p41 = scmp.eq.s32.totalorder %s19, 1
      %p42 = por %p40, %p41
      %p44 = scmp.ne.s32.totalorder %s27, %s43
      %p45 = scmp.eq.s32.totalorder %s19, 0
      %p46 = por %p44, %p45
      %s47 = ssub.s32 %s13, %s20
      %p48 = scmp.eq.s32.totalorder %s47, 0
      %s50 = sadd.s32 %s49, 1
      %s51 = scalar_select %p48, %s49, %s50
      %p54 = pneg %p48
      %p55 = scmp.eq.s32.totalorder %s13, 1
      %p56 = por %p54, %p55
      %p57 = scmp.ne.s32.totalorder %s49, %s52
      %p58 = scmp.eq.s32.totalorder %s13, 0
      %p59 = por %p57, %p58
      %p60 = scmp.ne.s32.totalorder %s49, %s52
      %p61 = scmp.eq.s32.totalorder %s18, 1
      %p62 = por %p60, %p61
      %p63 = scmp.ne.s32.totalorder %s52, %s53
      %p64 = scmp.eq.s32.totalorder %s18, 0
      %p65 = por %p63, %p64
      %p66 = scmp.ne.s32.totalorder %s52, %s53
      %p67 = scmp.eq.s32.totalorder %s19, 1
      %p68 = por %p66, %p67
      %p70 = scmp.ne.s32.totalorder %s53, %s69
      %p71 = scmp.eq.s32.totalorder %s19, 0
      %p72 = por %p70, %p71
      %s74 = sadd.s32 %s73, 1
      %p77 = scmp.eq.s32.totalorder %s13, 1
      %p78 = scmp.ne.s32.totalorder %s73, %s75
      %p79 = scmp.eq.s32.totalorder %s13, 0
      %p80 = por %p78, %p79
      %p81 = scmp.ne.s32.totalorder %s73, %s75
      %p82 = scmp.eq.s32.totalorder %s18, 1
      %p83 = por %p81, %p82
      %p84 = scmp.ne.s32.totalorder %s75, %s76
      %p85 = scmp.eq.s32.totalorder %s18, 0
      %p86 = por %p84, %p85
      %p87 = scmp.ne.s32.totalorder %s75, %s76
      %p88 = scmp.eq.s32.totalorder %s19, 1
      %p89 = por %p87, %p88
      %p91 = scmp.ne.s32.totalorder %s76, %s90
      %p92 = scmp.eq.s32.totalorder %s19, 0
      %p93 = por %p91, %p92
      %s95 = sadd.s32 %s94, 1
      %p98 = scmp.eq.s32.totalorder %s13, 1
      %p99 = scmp.ne.s32.totalorder %s94, %s96
      %p100 = scmp.eq.s32.totalorder %s13, 0
      %p101 = por %p99, %p100
      %p102 = scmp.ne.s32.totalorder %s94, %s96
      %p103 = scmp.eq.s32.totalorder %s18, 1
      %p104 = por %p102, %p103
      %p105 = scmp.ne.s32.totalorder %s96, %s97
      %p106 = scmp.eq.s32.totalorder %s18, 0
      %p107 = por %p105, %p106
      %p108 = scmp.ne.s32.totalorder %s96, %s97
      %p109 = scmp.eq.s32.totalorder %s19, 1
      %p110 = por %p108, %p109
      %p112 = scmp.ne.s32.totalorder %s97, %s111
      %p113 = scmp.eq.s32.totalorder %s19, 0
      %p114 = por %p112, %p113
      %s115 = ssub.s32 %s13, %s20
      %p116 = scmp.eq.s32.totalorder %s115, 0
      %s118 = sadd.s32 %s117, 1
      %s119 = scalar_select %p116, %s117, %s118
      %p122 = pneg %p116
      %p123 = scmp.eq.s32.totalorder %s13, 1
      %p124 = por %p122, %p123
      %p125 = scmp.ne.s32.totalorder %s117, %s120
      %p126 = scmp.eq.s32.totalorder %s13, 0
      %p127 = por %p125, %p126
      %p128 = scmp.ne.s32.totalorder %s117, %s120
      %p129 = scmp.eq.s32.totalorder %s18, 1
      %p130 = por %p128, %p129
      %p131 = scmp.ne.s32.totalorder %s120, %s121
      %p132 = scmp.eq.s32.totalorder %s18, 0
      %p133 = por %p131, %p132
      %p134 = scmp.ne.s32.totalorder %s120, %s121
      %p135 = scmp.eq.s32.totalorder %s19, 1
      %p136 = por %p134, %p135
      %p138 = scmp.ne.s32.totalorder %s121, %s137
      %p139 = scmp.eq.s32.totalorder %s19, 0
      %p140 = por %p138, %p139
      %p141 = scmp.le.s32.totalorder 1, %s13
      %p142 = scmp.lt.s32.totalorder %s13, 3
      %p143 = pnand %p141, %p142
      %p144 = pneg %p143
      // Predicated region
      $region9: #{basic_block_forward_rows.5} parent=5 // pred_check
        _
      $region10: #{basic_block_forward_rows.5} parent=5 // pred_check_branch
        %146 = sbr.rel (%p143) target = $region12
      $region11: #{basic_block_forward_rows.5} parent=5 // pred_region
        %s147 = ssub.s32 %s13, 1
        // Predicated region
        $region13: #{basic_block_forward_rows.5} parent=11 // pred_check
          %p148 = pneg %p86
        $region14: #{basic_block_forward_rows.5} parent=11 // pred_check_branch
          %150 = sbr.rel (%p148) target = $region16
        $region15: #{basic_block_forward_rows.5} parent=11 // pred_region
          _
        $region16: #{basic_block_forward_rows.5} parent=11 // pred_fallthru
          _
        // Predicated region
        $region17: #{basic_block_forward_rows.5} parent=11 // pred_check
          %p151 = pneg %p107
        $region18: #{basic_block_forward_rows.5} parent=11 // pred_check_branch
          %153 = sbr.rel (%p151) target = $region20
        $region19: #{basic_block_forward_rows.5} parent=11 // pred_region
          _
        $region20: #{basic_block_forward_rows.5} parent=11 // pred_fallthru
          _
      $region12: #{basic_block_forward_rows.5} parent=5 // pred_fallthru
        _
      %p154 = scmp.lt.s32.totalorder %s13, 2
      // Predicated region
      $region21: #{basic_block_forward_rows.5} parent=5 // pred_check
        %p155 = pneg %p154
      $region22: #{basic_block_forward_rows.5} parent=5 // pred_check_branch
        %157 = sbr.rel (%p155) target = $region24
      $region23: #{basic_block_forward_rows.5} parent=5 // pred_region
        // Predicated region
        $region25: #{basic_block_forward_rows.5} parent=23 // pred_check
          %p158 = pneg %p33
        $region26: #{basic_block_forward_rows.5} parent=23 // pred_check_branch
          %160 = sbr.rel (%p158) target = $region28
        $region27: #{basic_block_forward_rows.5} parent=23 // pred_region
          %s161 = smul.u32 16, %s13
          %p162 = scmp.lt.s32.totalorder %s161, 31
          %s163 = scalar_select %p162, %s161, 31
          %s164 = smul.addr %s163, 8
          %s165 = scalar_lea.vmem %s0, %s164
          %s166 = smul.u32 16, %s13
        $region28: #{basic_block_forward_rows.5} parent=23 // pred_fallthru
          _
        // Predicated region
        $region29: #{basic_block_forward_rows.5} parent=23 // pred_check
          %p167 = pneg %p59
        $region30: #{basic_block_forward_rows.5} parent=23 // pred_check_branch
          %169 = sbr.rel (%p167) target = $region32
        $region31: #{basic_block_forward_rows.5} parent=23 // pred_region
          %s170 = smul.u32 16, %s13
          %p171 = scmp.lt.s32.totalorder %s170, 31
          %s172 = scalar_select %p171, %s170, 31
          %s173 = smul.addr %s172, 8
          %s174 = scalar_lea.vmem %s1, %s173
          %s175 = smul.u32 16, %s13
        $region32: #{basic_block_forward_rows.5} parent=23 // pred_fallthru
          _
      $region24: #{basic_block_forward_rows.5} parent=5 // pred_fallthru
        _
      %p176 = scmp.le.s32.totalorder 1, %s13
      %p177 = scmp.lt.s32.totalorder %s13, 3
      %p178 = pnand %p176, %p177
      %p179 = pneg %p178
      // Predicated region
      $region33: #{basic_block_forward_rows.5} parent=5 // pred_check
        _
      $region34: #{basic_block_forward_rows.5} parent=5 // pred_check_branch
        %181 = sbr.rel (%p178) target = $region36
      $region35: #{basic_block_forward_rows.5} parent=5 // pred_region
        %s182 = ssub.s32 %s13, 1
        %s183 = smul.u32 16, %s18
        %p184 = scmp.lt.s32.totalorder %s183, 31
        %s185 = scalar_select %p184, %s183, 31
        %s186 = smul.addr %s185, 8
        %s187 = scalar_lea.vmem %s0, %s186
        %p188 = pneg %p39
        %p189 = pneg %p36
        %s190 = smul.u32 16, %s18
        %p191 = scmp.lt.s32.totalorder %s190, 31
        %s192 = scalar_select %p191, %s190, 31
        %s193 = smul.addr %s192, 8
        %s194 = scalar_lea.vmem %s1, %s193
        %p195 = pneg %p65
        %p196 = pneg %p62
        %p197 = pneg %p86
        %p198 = pneg %p83
        %p199 = pneg %p107
        %p200 = pneg %p104
        %p201 = pneg %p133
        %p202 = pneg %p130
        %s203 = sand.u32 %s120, 1
        %s204 = scalar_lea.sflag [#allocation3], %s203
        %s205 = sand.u32 %s120, 1
        %s206 = smul.addr %s205, 128
        %s207 = scalar_lea.vmem [#allocation2], %s206
        %s208 = smul.u32 16, %s18
        %p209 = scmp.lt.s32.totalorder %s208, 31
        %s210 = scalar_select %p209, %s208, 31
        %s211 = smul.addr %s210, 8
        %s212 = scalar_lea.vmem %s0, %s211
        %s213 = smul.u32 16, %s18
        %s214 = smul.u32 16, %s18
        %p215 = scmp.lt.s32.totalorder %s214, 31
        %s216 = scalar_select %p215, %s214, 31
        %s217 = smul.addr %s216, 8
        %s218 = scalar_lea.vmem %s1, %s217
        %s219 = smul.u32 16, %s18
        %s220 = smul.u32 16, %s18
        %v221 = vld [vmem:[%s212] sm:$0xff]
        %v222 = vld [vmem:[%s212 + $0x8] sm:$0xff]
        %v223 = vld [vmem:[%s212 + $0x10] sm:$0xff]
        %v224 = vld [vmem:[%s212 + $0x18] sm:$0xff]
        %v225 = vld [vmem:[%s212 + $0x20] sm:$0xff]
        %v226 = vld [vmem:[%s212 + $0x28] sm:$0xff]
        %v227 = vld [vmem:[%s212 + $0x30] sm:$0xff]
        %v228 = vld [vmem:[%s212 + $0x38] sm:$0xff]
        %v229 = vld [vmem:[%s212 + $0x40] sm:$0xff]
        %v230 = vld [vmem:[%s212 + $0x48] sm:$0xff]
        %v231 = vld [vmem:[%s212 + $0x50] sm:$0xff]
        %v232 = vld [vmem:[%s212 + $0x58] sm:$0xff]
        %v233 = vld [vmem:[%s212 + $0x60] sm:$0xff]
        %v234 = vld [vmem:[%s212 + $0x68] sm:$0xff]
        %v235 = vld [vmem:[%s212 + $0x70] sm:$0xff]
        %v236 = vld [vmem:[%s212 + $0x78] sm:$0xff]
        %v237 = vld [vmem:[%s2] sm:$0x1]
        %v239 = vlaneseq
        %v240 = vshrl.u32 %v239, 7
        %v241 = vsub.s32 0, %v240
        %v242 = vrot.slane %v237, %v241
        %v244 = vmul.f32 %v221, %v242
        %v245 = vmul.f32 %v222, %v242
        %v246 = vmul.f32 %v223, %v242
        %v247 = vmul.f32 %v224, %v242
        %v248 = vmul.f32 %v225, %v242
        %v249 = vmul.f32 %v226, %v242
        %v250 = vmul.f32 %v227, %v242
        %v251 = vmul.f32 %v228, %v242
        %v252 = vmul.f32 %v229, %v242
        %v253 = vmul.f32 %v230, %v242
        %v254 = vmul.f32 %v231, %v242
        %v255 = vmul.f32 %v232, %v242
        %v256 = vmul.f32 %v233, %v242
        %v257 = vmul.f32 %v234, %v242
        %v258 = vmul.f32 %v235, %v242
        %v259 = vmul.f32 %v236, %v242
        %v260 = vld [vmem:[%s3] sm:$0x1]
        %v262 = vlaneseq
        %v263 = vshrl.u32 %v262, 7
        %v264 = vsub.s32 0, %v263
        %v265 = vrot.slane %v260, %v264
        %v267 = vadd.f32 %v244, %v265
        %v268 = vadd.f32 %v245, %v265
        %v269 = vadd.f32 %v246, %v265
        %v270 = vadd.f32 %v247, %v265
        %v271 = vadd.f32 %v248, %v265
        %v272 = vadd.f32 %v249, %v265
        %v273 = vadd.f32 %v250, %v265
        %v274 = vadd.f32 %v251, %v265
        %v275 = vadd.f32 %v252, %v265
        %v276 = vadd.f32 %v253, %v265
        %v277 = vadd.f32 %v254, %v265
        %v278 = vadd.f32 %v255, %v265
        %v279 = vadd.f32 %v256, %v265
        %v280 = vadd.f32 %v257, %v265
        %v281 = vadd.f32 %v258, %v265
        %v282 = vadd.f32 %v259, %v265
        %v283 = vld [vmem:[%s218] sm:$0xff]
        %v284 = vld [vmem:[%s218 + $0x8] sm:$0xff]
        %v285 = vld [vmem:[%s218 + $0x10] sm:$0xff]
        %v286 = vld [vmem:[%s218 + $0x18] sm:$0xff]
        %v287 = vld [vmem:[%s218 + $0x20] sm:$0xff]
        %v288 = vld [vmem:[%s218 + $0x28] sm:$0xff]
        %v289 = vld [vmem:[%s218 + $0x30] sm:$0xff]
        %v290 = vld [vmem:[%s218 + $0x38] sm:$0xff]
        %v291 = vld [vmem:[%s218 + $0x40] sm:$0xff]
        %v292 = vld [vmem:[%s218 + $0x48] sm:$0xff]
        %v293 = vld [vmem:[%s218 + $0x50] sm:$0xff]
        %v294 = vld [vmem:[%s218 + $0x58] sm:$0xff]
        %v295 = vld [vmem:[%s218 + $0x60] sm:$0xff]
        %v296 = vld [vmem:[%s218 + $0x68] sm:$0xff]
        %v297 = vld [vmem:[%s218 + $0x70] sm:$0xff]
        %v298 = vld [vmem:[%s218 + $0x78] sm:$0xff]
        %v299 = vadd.f32 %v267, %v283
        %v300 = vadd.f32 %v268, %v284
        %v301 = vadd.f32 %v269, %v285
        %v302 = vadd.f32 %v270, %v286
        %v303 = vadd.f32 %v271, %v287
        %v304 = vadd.f32 %v272, %v288
        %v305 = vadd.f32 %v273, %v289
        %v306 = vadd.f32 %v274, %v290
        %v307 = vadd.f32 %v275, %v291
        %v308 = vadd.f32 %v276, %v292
        %v309 = vadd.f32 %v277, %v293
        %v310 = vadd.f32 %v278, %v294
        %v311 = vadd.f32 %v279, %v295
        %v312 = vadd.f32 %v280, %v296
        %v313 = vadd.f32 %v281, %v297
        %v314 = vadd.f32 %v282, %v298
        %v315 = vmax.f32 %v299, 0.0
        %v316 = vmax.f32 %v300, 0.0
        %v317 = vmax.f32 %v301, 0.0
        %v318 = vmax.f32 %v302, 0.0
        %v319 = vmax.f32 %v303, 0.0
        %v320 = vmax.f32 %v304, 0.0
        %v321 = vmax.f32 %v305, 0.0
        %v322 = vmax.f32 %v306, 0.0
        %v323 = vmax.f32 %v307, 0.0
        %v324 = vmax.f32 %v308, 0.0
        %v325 = vmax.f32 %v309, 0.0
        %v326 = vmax.f32 %v310, 0.0
        %v327 = vmax.f32 %v311, 0.0
        %v328 = vmax.f32 %v312, 0.0
        %v329 = vmax.f32 %v313, 0.0
        %v330 = vmax.f32 %v314, 0.0
        %331 = vst [vmem:[%s207] sm:$0xff] %v315
        %332 = vst [vmem:[%s207 + $0x8] sm:$0xff] %v316
        %333 = vst [vmem:[%s207 + $0x10] sm:$0xff] %v317
        %334 = vst [vmem:[%s207 + $0x18] sm:$0xff] %v318
        %335 = vst [vmem:[%s207 + $0x20] sm:$0xff] %v319
        %336 = vst [vmem:[%s207 + $0x28] sm:$0xff] %v320
        %337 = vst [vmem:[%s207 + $0x30] sm:$0xff] %v321
        %338 = vst [vmem:[%s207 + $0x38] sm:$0xff] %v322
        %339 = vst [vmem:[%s207 + $0x40] sm:$0xff] %v323
        %340 = vst [vmem:[%s207 + $0x48] sm:$0xff] %v324
        %341 = vst [vmem:[%s207 + $0x50] sm:$0xff] %v325
        %342 = vst [vmem:[%s207 + $0x58] sm:$0xff] %v326
        %343 = vst [vmem:[%s207 + $0x60] sm:$0xff] %v327
        %344 = vst [vmem:[%s207 + $0x68] sm:$0xff] %v328
        %345 = vst [vmem:[%s207 + $0x70] sm:$0xff] %v329
        %346 = vst [vmem:[%s207 + $0x78] sm:$0xff] %v330
        %s347 = sand.u32 %s120, 1
        %s348 = scalar_lea.sflag [#allocation3], %s347
        %s349 = sand.u32 %s120, 1
        %s350 = smul.addr %s349, 128
        %s351 = scalar_lea.vmem [#allocation2], %s350
        // Predicated region
        $region37: #{basic_block_forward_rows.5} parent=35 // pred_check
          %p352 = pneg %p130
        $region38: #{basic_block_forward_rows.5} parent=35 // pred_check_branch
          %354 = sbr.rel (%p352) target = $region40
        $region39: #{basic_block_forward_rows.5} parent=35 // pred_region
          %s355 = smul.u32 16, %s18
          %s357 = ssub.s32 2048, 2048
          %358 = vsyncadd %s348, %s357
          %s359 = smul.addr %s355, 128
          %s360 = scalar_lea.hbm %s4, %s359
          %s361 = sshll.u32 %s351, 4
          %s362 = int_to_ptr.vmem [resolvable:$true] %s361
          %367 = dma.vmem_to_hbm [thread:$0]  %s362, 2048, %s360, %s348, 128, 128, 8
        $region40: #{basic_block_forward_rows.5} parent=35 // pred_fallthru
          _
      $region36: #{basic_block_forward_rows.5} parent=5 // pred_fallthru
        _
      %p368 = scmp.le.s32.totalorder 2, %s13
      // Predicated region
      $region41: #{basic_block_forward_rows.5} parent=5 // pred_check
        %p369 = pneg %p368
      $region42: #{basic_block_forward_rows.5} parent=5 // pred_check_branch
        %371 = sbr.rel (%p369) target = $region44
      $region43: #{basic_block_forward_rows.5} parent=5 // pred_region
        %s372 = ssub.s32 %s13, 2
        // Predicated region
        $region45: #{basic_block_forward_rows.5} parent=43 // pred_check
          %p373 = pneg %p136
        $region46: #{basic_block_forward_rows.5} parent=43 // pred_check_branch
          %375 = sbr.rel (%p373) target = $region48
        $region47: #{basic_block_forward_rows.5} parent=43 // pred_region
          %s376 = sand.u32 %s121, 1
          %s377 = scalar_lea.sflag [#allocation3], %s376
          %s378 = sand.u32 %s121, 1
          %s379 = smul.addr %s378, 128
          %s380 = scalar_lea.vmem [#allocation2], %s379
          %381 = dma.done %s377, 2048
        $region48: #{basic_block_forward_rows.5} parent=43 // pred_fallthru
          _
      $region44: #{basic_block_forward_rows.5} parent=5 // pred_fallthru
        _
    $region6: #{basic_block_forward_rows.5} parent=1 // loop_footer
      %s17 = sadd.s32 1, %s13
    $region7: #{basic_block_forward_rows.5} parent=1 // loop_footer_branch
      %12 = sbr.rel target = $region3
    $region8: #{basic_block_forward_rows.5} parent=1 // loop_exit
      _
    %382 = vsyncpa [#allocation3], 1
    %s383 = scalar_lea.sflag [#allocation3], 1
    %384 = vsyncpa %s383, 1

// kernel: basic_block_forward_rows.3
$region0: #{basic_block_forward_rows.3}
  #allocation0 [shape = 'u32[]', space=smem, size = 0x4, offset = 0x4, fixed_abs, tag = 'smem constant byte address 0x4 - core index']
  #allocation1 [shape = 'u32[144,128]{1,0:T(1,128)}', space=vmem, size = 0x12000, scoped, tag = 'internal scratch']
  %s0 = inlined_call_operand.hbm [shape: f32[256,128], index: 0, kind: input, shape index: {}]
  %s1 = inlined_call_operand.hbm [shape: f32[384,128], index: 1, kind: input, shape index: {}]
  %s2 = inlined_call_operand.vmem [shape: f32[256,128], index: 2, kind: output, shape index: {0}]
  %s3 = inlined_call_operand.vmem [shape: f32[2,8,128], index: 3, kind: output, shape index: {1}]
  %4 = xla_tuple %s2, %s3
  %s5 = sld [smem:[#allocation0]]
  $region57: #{basic_block_forward_rows.3} parent=0
    _
  %s7 = ssub.s32 1, %s5
  %s8 = scalar_select 0, %s7, %s5
  $region1: #{basic_block_forward_rows.3} parent=0
    #allocation2 [shape = 'u8[131072]{0}', space=vmem, size = 0x20000, scoped, tag = 'input window, operand 0']
    #allocation3 [shape = 's32[2]{0}', space=sflag, size = 0x8, scoped, tag = 'scoped memory for basic_block_forward_rows.3']
    #allocation4 [shape = 'u8[196608]{0}', space=vmem, size = 0x30000, scoped, tag = 'input window, operand 1, single buffered']
    #allocation5 [shape = 's32[1]{0}', space=sflag, size = 0x4, scoped, tag = 'scoped memory for basic_block_forward_rows.3']
    %9 = vsyncpa [#allocation3], 0
    %s10 = scalar_lea.sflag [#allocation3], 1
    %11 = vsyncpa %s10, 0
    %12 = vsyncpa [#allocation5], 0
    loop: start=0, step=1, limit=4
    $region2: #{basic_block_forward_rows.3} parent=1 // loop_pre_header
      _
    $region3: #{basic_block_forward_rows.3} parent=1 // loop_header
      %s14 = sphi 0, %s18
      %p15 = scmp.ge.s32.totalorder %s14, 4
      %s24 = sphi 0, %s26
      %s27 = sphi 0, %s24
      %s28 = sphi 0, %s27
      %s44 = sphi 0, %s28
      %s48 = sphi 0, %s48
      %s50 = sphi 0, %s48
      %s51 = sphi 0, %s50
      %s65 = sphi 0, %s51
      %s71 = sphi 0, %s73
      %s74 = sphi 0, %s71
      %s75 = sphi 0, %s74
      %s91 = sphi 0, %s75
      %s97 = sphi 0, %s99
      %s100 = sphi 0, %s97
      %s101 = sphi 0, %s100
      %s117 = sphi 0, %s101
    $region4: #{basic_block_forward_rows.3} parent=1 // loop_header_branch
      %17 = sbr.rel (%p15) target = $region8
    $region5: #{basic_block_forward_rows.3} parent=1 // loop_body
      %s19 = ssub.s32 %s14, 1
      %s20 = ssub.s32 %s14, 2
      %s21 = sadd.s32 %s14, 1
      %s22 = ssub.s32 %s14, %s21
      %p23 = scmp.eq.s32.totalorder %s22, 0
      %s25 = sadd.s32 %s24, 1
      %s26 = scalar_select %p23, %s24, %s25
      %p29 = pneg %p23
      %p30 = scmp.eq.s32.totalorder %s14, 1
      %p31 = por %p29, %p30
      %p32 = scmp.ne.s32.totalorder %s24, %s27
      %p33 = scmp.eq.s32.totalorder %s14, 0
      %p34 = por %p32, %p33
      %p35 = scmp.ne.s32.totalorder %s24, %s27
      %p36 = scmp.eq.s32.totalorder %s19, 1
      %p37 = por %p35, %p36
      %p38 = scmp.ne.s32.totalorder %s27, %s28
      %p39 = scmp.eq.s32.totalorder %s19, 0
      %p40 = por %p38, %p39
      %p41 = scmp.ne.s32.totalorder %s27, %s28
      %p42 = scmp.eq.s32.totalorder %s20, 1
      %p43 = por %p41, %p42
      %p45 = scmp.ne.s32.totalorder %s28, %s44
      %p46 = scmp.eq.s32.totalorder %s20, 0
      %p47 = por %p45, %p46
      %s49 = sadd.s32 %s48, 1
      %p52 = scmp.eq.s32.totalorder %s14, 1
      %p53 = scmp.ne.s32.totalorder %s48, %s50
      %p54 = scmp.eq.s32.totalorder %s14, 0
      %p55 = por %p53, %p54
      %p56 = scmp.ne.s32.totalorder %s48, %s50
      %p57 = scmp.eq.s32.totalorder %s19, 1
      %p58 = por %p56, %p57
      %p59 = scmp.ne.s32.totalorder %s50, %s51
      %p60 = scmp.eq.s32.totalorder %s19, 0
      %p61 = por %p59, %p60
      %p62 = scmp.ne.s32.totalorder %s50, %s51
      %p63 = scmp.eq.s32.totalorder %s20, 1
      %p64 = por %p62, %p63
      %p66 = scmp.ne.s32.totalorder %s51, %s65
      %p67 = scmp.eq.s32.totalorder %s20, 0
      %p68 = por %p66, %p67
      %s69 = ssub.s32 %s14, %s21
      %p70 = scmp.eq.s32.totalorder %s69, 0
      %s72 = sadd.s32 %s71, 1
      %s73 = scalar_select %p70, %s71, %s72
      %p76 = pneg %p70
      %p77 = scmp.eq.s32.totalorder %s14, 1
      %p78 = por %p76, %p77
      %p79 = scmp.ne.s32.totalorder %s71, %s74
      %p80 = scmp.eq.s32.totalorder %s14, 0
      %p81 = por %p79, %p80
      %p82 = scmp.ne.s32.totalorder %s71, %s74
      %p83 = scmp.eq.s32.totalorder %s19, 1
      %p84 = por %p82, %p83
      %p85 = scmp.ne.s32.totalorder %s74, %s75
      %p86 = scmp.eq.s32.totalorder %s19, 0
      %p87 = por %p85, %p86
      %p88 = scmp.ne.s32.totalorder %s74, %s75
      %p89 = scmp.eq.s32.totalorder %s20, 1
      %p90 = por %p88, %p89
      %p92 = scmp.ne.s32.totalorder %s75, %s91
      %p93 = scmp.eq.s32.totalorder %s20, 0
      %p94 = por %p92, %p93
      %s95 = ssub.s32 %s14, %s21
      %p96 = scmp.eq.s32.totalorder %s95, 0
      %s98 = sadd.s32 %s97, 1
      %s99 = scalar_select %p96, %s97, %s98
      %p102 = pneg %p96
      %p103 = scmp.eq.s32.totalorder %s14, 1
      %p104 = por %p102, %p103
      %p105 = scmp.ne.s32.totalorder %s97, %s100
      %p106 = scmp.eq.s32.totalorder %s14, 0
      %p107 = por %p105, %p106
      %p108 = scmp.ne.s32.totalorder %s97, %s100
      %p109 = scmp.eq.s32.totalorder %s19, 1
      %p110 = por %p108, %p109
      %p111 = scmp.ne.s32.totalorder %s100, %s101
      %p112 = scmp.eq.s32.totalorder %s19, 0
      %p113 = por %p111, %p112
      %p114 = scmp.ne.s32.totalorder %s100, %s101
      %p115 = scmp.eq.s32.totalorder %s20, 1
      %p116 = por %p114, %p115
      %p118 = scmp.ne.s32.totalorder %s101, %s117
      %p119 = scmp.eq.s32.totalorder %s20, 0
      %p120 = por %p118, %p119
      %p121 = scmp.le.s32.totalorder 1, %s14
      %p122 = scmp.lt.s32.totalorder %s14, 3
      %p123 = pnand %p121, %p122
      %p124 = pneg %p123
      // Predicated region
      $region9: #{basic_block_forward_rows.3} parent=5 // pred_check
        _
      $region10: #{basic_block_forward_rows.3} parent=5 // pred_check_branch
        %126 = sbr.rel (%p123) target = $region12
      $region11: #{basic_block_forward_rows.3} parent=5 // pred_region
        %s127 = ssub.s32 %s14, 1
        // Predicated region
        $region13: #{basic_block_forward_rows.3} parent=11 // pred_check
          %p128 = pneg %p61
        $region14: #{basic_block_forward_rows.3} parent=11 // pred_check_branch
          %130 = sbr.rel (%p128) target = $region16
        $region15: #{basic_block_forward_rows.3} parent=11 // pred_region
          %s132 = ssub.s32 6144, 6144
          %133 = vsyncadd [#allocation5], %s132
          %s134 = sshll.u32 [#allocation4], 4
          %s135 = int_to_ptr.vmem [resolvable:$true] %s134
          %140 = dma.hbm_to_vmem [thread:$0]  %s1, 6144, %s135, [#allocation5], 128, 128, 8
        $region16: #{basic_block_forward_rows.3} parent=11 // pred_fallthru
          _
      $region12: #{basic_block_forward_rows.3} parent=5 // pred_fallthru
        _
      %p141 = scmp.lt.s32.totalorder %s14, 2
      // Predicated region
      $region17: #{basic_block_forward_rows.3} parent=5 // pred_check
        %p142 = pneg %p141
      $region18: #{basic_block_forward_rows.3} parent=5 // pred_check_branch
        %144 = sbr.rel (%p142) target = $region20
      $region19: #{basic_block_forward_rows.3} parent=5 // pred_region
        // Predicated region
        $region21: #{basic_block_forward_rows.3} parent=19 // pred_check
          %p145 = pneg %p34
        $region22: #{basic_block_forward_rows.3} parent=19 // pred_check_branch
          %147 = sbr.rel (%p145) target = $region24
        $region23: #{basic_block_forward_rows.3} parent=19 // pred_region
          %s148 = sand.u32 %s24, 1
          %s149 = scalar_lea.sflag [#allocation3], %s148
          %s150 = sand.u32 %s24, 1
          %s151 = smul.addr %s150, 128
          %s152 = scalar_lea.vmem [#allocation2], %s151
          %s153 = smul.u32 16, %s14
          %s155 = ssub.s32 2048, 2048
          %156 = vsyncadd %s149, %s155
          %s157 = smul.addr %s153, 128
          %s158 = scalar_lea.hbm %s0, %s157
          %s159 = sshll.u32 %s152, 4
          %s160 = int_to_ptr.vmem [resolvable:$true] %s159
          %165 = dma.hbm_to_vmem [thread:$0]  %s158, 2048, %s160, %s149, 128, 128, 8
        $region24: #{basic_block_forward_rows.3} parent=19 // pred_fallthru
          _
      $region20: #{basic_block_forward_rows.3} parent=5 // pred_fallthru
        _
      %p166 = scmp.le.s32.totalorder 1, %s14
      %p167 = scmp.lt.s32.totalorder %s14, 3
      %p168 = pnand %p166, %p167
      %p169 = pneg %p168
      // Predicated region
      $region25: #{basic_block_forward_rows.3} parent=5 // pred_check
        _
      $region26: #{basic_block_forward_rows.3} parent=5 // pred_check_branch
        %171 = sbr.rel (%p168) target = $region28
      $region27: #{basic_block_forward_rows.3} parent=5 // pred_region
        %s172 = ssub.s32 %s14, 1
        %s173 = sand.u32 %s27, 1
        %s174 = scalar_lea.sflag [#allocation3], %s173
        %s175 = sand.u32 %s27, 1
        %s176 = smul.addr %s175, 128
        %s177 = scalar_lea.vmem [#allocation2], %s176
        // Predicated region
        $region29: #{basic_block_forward_rows.3} parent=27 // pred_check
          %p178 = pneg %p40
        $region30: #{basic_block_forward_rows.3} parent=27 // pred_check_branch
          %180 = sbr.rel (%p178) target = $region32
        $region31: #{basic_block_forward_rows.3} parent=27 // pred_region
          %181 = dma.done %s174, 2048
        $region32: #{basic_block_forward_rows.3} parent=27 // pred_fallthru
          _
        // Predicated region
        $region33: #{basic_block_forward_rows.3} parent=27 // pred_check
          %p182 = pneg %p61
        $region34: #{basic_block_forward_rows.3} parent=27 // pred_check_branch
          %184 = sbr.rel (%p182) target = $region36
        $region35: #{basic_block_forward_rows.3} parent=27 // pred_region
          %185 = dma.done [#allocation5], 6144
        $region36: #{basic_block_forward_rows.3} parent=27 // pred_fallthru
          _
        %s186 = sand.u32 %s27, 1
        %s187 = scalar_lea.sflag [#allocation3], %s186
        %s188 = sand.u32 %s27, 1
        %s189 = smul.addr %s188, 128
        %s190 = scalar_lea.vmem [#allocation2], %s189
        %p191 = pneg %p40
        %p192 = pneg %p37
        %p193 = pneg %p61
        %p194 = pneg %p58
        %p195 = pneg %p87
        %p196 = pneg %p84
        %s197 = smul.u32 16, %s19
        %p198 = scmp.lt.s32.totalorder %s197, 31
        %s199 = scalar_select %p198, %s197, 31
        %s200 = smul.addr %s199, 8
        %s201 = scalar_lea.vmem %s2, %s200
        %p202 = pneg %p113
        %p203 = pneg %p110
        %p204 = scmp.lt.s32.totalorder %s19, 1
        %s205 = scalar_select %p204, %s19, 1
        %s206 = smul.addr %s205, 8
        %s207 = scalar_lea.vmem %s3, %s206
        %s208 = smul.u32 16, %s19
        %s209 = smul.u32 16, %s19
        %p210 = scmp.lt.s32.totalorder %s209, 31
        %s211 = scalar_select %p210, %s209, 31
        %s212 = smul.addr %s211, 8
        %s213 = scalar_lea.vmem %s2, %s212
        %s214 = smul.u32 16, %s19
        %p215 = scmp.lt.s32.totalorder %s19, 1
        %s216 = scalar_select %p215, %s19, 1
        %s217 = smul.addr %s216, 8
        %s218 = scalar_lea.vmem %s3, %s217
        %v219 = vld [vmem:[%s177] sm:$0xff]
        %v220 = vld [vmem:[%s177 + $0x8] sm:$0xff]
        %v221 = vld [vmem:[%s177 + $0x10] sm:$0xff]
        %v222 = vld [vmem:[%s177 + $0x18] sm:$0xff]
        %v223 = vld [vmem:[%s177 + $0x20] sm:$0xff]
        %v224 = vld [vmem:[%s177 + $0x28] sm:$0xff]
        %v225 = vld [vmem:[%s177 + $0x30] sm:$0xff]
        %v226 = vld [vmem:[%s177 + $0x38] sm:$0xff]
        %v227 = vld [vmem:[%s177 + $0x40] sm:$0xff]
        %v228 = vld [vmem:[%s177 + $0x48] sm:$0xff]
        %v229 = vld [vmem:[%s177 + $0x50] sm:$0xff]
        %v230 = vld [vmem:[%s177 + $0x58] sm:$0xff]
        %v231 = vld [vmem:[%s177 + $0x60] sm:$0xff]
        %v232 = vld [vmem:[%s177 + $0x68] sm:$0xff]
        %v233 = vld [vmem:[%s177 + $0x70] sm:$0xff]
        %v234 = vld [vmem:[%s177 + $0x78] sm:$0xff]
        %v235 = vlaneseq
        %v236 = vshrl.u32 %v235, 7
        %v237 = vadd.s32 %v236, 8
        %v238 = vadd.s32 %v236, 16
        %v239 = vadd.s32 %v236, 24
        %v240 = vadd.s32 %v236, 32
        %v241 = vadd.s32 %v236, 40
        %v242 = vadd.s32 %v236, 48
        %v243 = vadd.s32 %v236, 56
        %v244 = vadd.s32 %v236, 64
        %v245 = vadd.s32 %v236, 72
        %v246 = vadd.s32 %v236, 80
        %v247 = vadd.s32 %v236, 88
        %v248 = vadd.s32 %v236, 96
        %v249 = vadd.s32 %v236, 104
        %v250 = vadd.s32 %v236, 112
        %v251 = vadd.s32 %v236, 120
        %vm252 = vcmp.lt.s32.totalorder %v236, 0
        %v253 = vsub.s32 0, %v236
        %v254 = vsel %vm252, %v253, %v236
        %v255 = vshrl.u32 %v254, 4
        %v256 = vand.u32 %v254, 15
        %v257 = vsub.s32 0, %v256
        %v258 = vsel %vm252, %v257, %v256
        %vm259 = vcmp.lt.s32.totalorder %v237, 0
        %v260 = vsub.s32 0, %v237
        %v261 = vsel %vm259, %v260, %v237
        %v262 = vshrl.u32 %v261, 4
        %v263 = vand.u32 %v261, 15
        %v264 = vsub.s32 0, %v263
        %v265 = vsel %vm259, %v264, %v263
        %vm266 = vcmp.lt.s32.totalorder %v238, 0
        %v267 = vsub.s32 0, %v238
        %v268 = vsel %vm266, %v267, %v238
        %v269 = vshrl.u32 %v268, 4
        %v270 = vand.u32 %v268, 15
        %v271 = vsub.s32 0, %v270
        %v272 = vsel %vm266, %v271, %v270
        %vm273 = vcmp.lt.s32.totalorder %v239, 0
        %v274 = vsub.s32 0, %v239
        %v275 = vsel %vm273, %v274, %v239
        %v276 = vshrl.u32 %v275, 4
        %v277 = vand.u32 %v275, 15
        %v278 = vsub.s32 0, %v277
        %v279 = vsel %vm273, %v278, %v277
        %vm280 = vcmp.lt.s32.totalorder %v240, 0
        %v281 = vsub.s32 0, %v240
        %v282 = vsel %vm280, %v281, %v240
        %v283 = vshrl.u32 %v282, 4
        %v284 = vand.u32 %v282, 15
        %v285 = vsub.s32 0, %v284
        %v286 = vsel %vm280, %v285, %v284
        %vm287 = vcmp.lt.s32.totalorder %v241, 0
        %v288 = vsub.s32 0, %v241
        %v289 = vsel %vm287, %v288, %v241
        %v290 = vshrl.u32 %v289, 4
        %v291 = vand.u32 %v289, 15
        %v292 = vsub.s32 0, %v291
        %v293 = vsel %vm287, %v292, %v291
        %vm294 = vcmp.lt.s32.totalorder %v242, 0
        %v295 = vsub.s32 0, %v242
        %v296 = vsel %vm294, %v295, %v242
        %v297 = vshrl.u32 %v296, 4
        %v298 = vand.u32 %v296, 15
        %v299 = vsub.s32 0, %v298
        %v300 = vsel %vm294, %v299, %v298
        %vm301 = vcmp.lt.s32.totalorder %v243, 0
        %v302 = vsub.s32 0, %v243
        %v303 = vsel %vm301, %v302, %v243
        %v304 = vshrl.u32 %v303, 4
        %v305 = vand.u32 %v303, 15
        %v306 = vsub.s32 0, %v305
        %v307 = vsel %vm301, %v306, %v305
        %vm308 = vcmp.lt.s32.totalorder %v244, 0
        %v309 = vsub.s32 0, %v244
        %v310 = vsel %vm308, %v309, %v244
        %v311 = vshrl.u32 %v310, 4
        %v312 = vand.u32 %v310, 15
        %v313 = vsub.s32 0, %v312
        %v314 = vsel %vm308, %v313, %v312
        %vm315 = vcmp.lt.s32.totalorder %v245, 0
        %v316 = vsub.s32 0, %v245
        %v317 = vsel %vm315, %v316, %v245
        %v318 = vshrl.u32 %v317, 4
        %v319 = vand.u32 %v317, 15
        %v320 = vsub.s32 0, %v319
        %v321 = vsel %vm315, %v320, %v319
        %vm322 = vcmp.lt.s32.totalorder %v246, 0
        %v323 = vsub.s32 0, %v246
        %v324 = vsel %vm322, %v323, %v246
        %v325 = vshrl.u32 %v324, 4
        %v326 = vand.u32 %v324, 15
        %v327 = vsub.s32 0, %v326
        %v328 = vsel %vm322, %v327, %v326
        %vm329 = vcmp.lt.s32.totalorder %v247, 0
        %v330 = vsub.s32 0, %v247
        %v331 = vsel %vm329, %v330, %v247
        %v332 = vshrl.u32 %v331, 4
        %v333 = vand.u32 %v331, 15
        %v334 = vsub.s32 0, %v333
        %v335 = vsel %vm329, %v334, %v333
        %vm336 = vcmp.lt.s32.totalorder %v248, 0
        %v337 = vsub.s32 0, %v248
        %v338 = vsel %vm336, %v337, %v248
        %v339 = vshrl.u32 %v338, 4
        %v340 = vand.u32 %v338, 15
        %v341 = vsub.s32 0, %v340
        %v342 = vsel %vm336, %v341, %v340
        %vm343 = vcmp.lt.s32.totalorder %v249, 0
        %v344 = vsub.s32 0, %v249
        %v345 = vsel %vm343, %v344, %v249
        %v346 = vshrl.u32 %v345, 4
        %v347 = vand.u32 %v345, 15
        %v348 = vsub.s32 0, %v347
        %v349 = vsel %vm343, %v348, %v347
        %vm350 = vcmp.lt.s32.totalorder %v250, 0
        %v351 = vsub.s32 0, %v250
        %v352 = vsel %vm350, %v351, %v250
        %v353 = vshrl.u32 %v352, 4
        %v354 = vand.u32 %v352, 15
        %v355 = vsub.s32 0, %v354
        %v356 = vsel %vm350, %v355, %v354
        %vm357 = vcmp.lt.s32.totalorder %v251, 0
        %v358 = vsub.s32 0, %v251
        %v359 = vsel %vm357, %v358, %v251
        %v360 = vshrl.u32 %v359, 4
        %v361 = vand.u32 %v359, 15
        %v362 = vsub.s32 0, %v361
        %v363 = vsel %vm357, %v362, %v361
        %vm364 = vcmp.ne.s32.totalorder %v258, 0
        %vm365 = vcmp.ne.s32.totalorder %v265, 0
        %vm366 = vcmp.ne.s32.totalorder %v272, 0
        %vm367 = vcmp.ne.s32.totalorder %v279, 0
        %vm368 = vcmp.ne.s32.totalorder %v286, 0
        %vm369 = vcmp.ne.s32.totalorder %v293, 0
        %vm370 = vcmp.ne.s32.totalorder %v300, 0
        %vm371 = vcmp.ne.s32.totalorder %v307, 0
        %vm372 = vcmp.ne.s32.totalorder %v314, 0
        %vm373 = vcmp.ne.s32.totalorder %v321, 0
        %vm374 = vcmp.ne.s32.totalorder %v328, 0
        %vm375 = vcmp.ne.s32.totalorder %v335, 0
        %vm376 = vcmp.ne.s32.totalorder %v342, 0
        %vm377 = vcmp.ne.s32.totalorder %v349, 0
        %vm378 = vcmp.ne.s32.totalorder %v356, 0
        %vm379 = vcmp.ne.s32.totalorder %v363, 0
        %vm380 = vcmp.lt.s32.totalorder %v258, 0
        %vm381 = vcmp.lt.s32.totalorder %v265, 0
        %vm382 = vcmp.lt.s32.totalorder %v272, 0
        %vm383 = vcmp.lt.s32.totalorder %v279, 0
        %vm384 = vcmp.lt.s32.totalorder %v286, 0
        %vm385 = vcmp.lt.s32.totalorder %v293, 0
        %vm386 = vcmp.lt.s32.totalorder %v300, 0
        %vm387 = vcmp.lt.s32.totalorder %v307, 0
        %vm388 = vcmp.lt.s32.totalorder %v314, 0
        %vm389 = vcmp.lt.s32.totalorder %v321, 0
        %vm390 = vcmp.lt.s32.totalorder %v328, 0
        %vm391 = vcmp.lt.s32.totalorder %v335, 0
        %vm392 = vcmp.lt.s32.totalorder %v342, 0
        %vm393 = vcmp.lt.s32.totalorder %v349, 0
        %vm394 = vcmp.lt.s32.totalorder %v356, 0
        %vm395 = vcmp.lt.s32.totalorder %v363, 0
        %vm396 = vmand %vm380, %vm364
        %vm397 = vmand %vm381, %vm365
        %vm398 = vmand %vm382, %vm366
        %vm399 = vmand %vm383, %vm367
        %vm400 = vmand %vm384, %vm368
        %vm401 = vmand %vm385, %vm369
        %vm402 = vmand %vm386, %vm370
        %vm403 = vmand %vm387, %vm371
        %vm404 = vmand %vm388, %vm372
        %vm405 = vmand %vm389, %vm373
        %vm406 = vmand %vm390, %vm374
        %vm407 = vmand %vm391, %vm375
        %vm408 = vmand %vm392, %vm376
        %vm409 = vmand %vm393, %vm377
        %vm410 = vmand %vm394, %vm378
        %vm411 = vmand %vm395, %vm379
        %v412 = vadd.s32 %v258, 16
        %v413 = vadd.s32 %v265, 16
        %v414 = vadd.s32 %v272, 16
        %v415 = vadd.s32 %v279, 16
        %v416 = vadd.s32 %v286, 16
        %v417 = vadd.s32 %v293, 16
        %v418 = vadd.s32 %v300, 16
        %v419 = vadd.s32 %v307, 16
        %v420 = vadd.s32 %v314, 16
        %v421 = vadd.s32 %v321, 16
        %v422 = vadd.s32 %v328, 16
        %v423 = vadd.s32 %v335, 16
        %v424 = vadd.s32 %v342, 16
        %v425 = vadd.s32 %v349, 16
        %v426 = vadd.s32 %v356, 16
        %v427 = vadd.s32 %v363, 16
        %v428 = vsel %vm396, %v412, %v258
        %v429 = vsel %vm397, %v413, %v265
        %v430 = vsel %vm398, %v414, %v272
        %v431 = vsel %vm399, %v415, %v279
        %v432 = vsel %vm400, %v416, %v286
        %v433 = vsel %vm401, %v417, %v293
        %v434 = vsel %vm402, %v418, %v300
        %v435 = vsel %vm403, %v419, %v307
        %v436 = vsel %vm404, %v420, %v314
        %v437 = vsel %vm405, %v421, %v321
        %v438 = vsel %vm406, %v422, %v328
        %v439 = vsel %vm407, %v423, %v335
        %v440 = vsel %vm408, %v424, %v342
        %v441 = vsel %vm409, %v425, %v349
        %v442 = vsel %vm410, %v426, %v356
        %v443 = vsel %vm411, %v427, %v363
        %vm444 = vcmp.eq.s32.totalorder %v428, 0
        %vm445 = vcmp.eq.s32.totalorder %v429, 0
        %vm446 = vcmp.eq.s32.totalorder %v430, 0
        %vm447 = vcmp.eq.s32.totalorder %v431, 0
        %vm448 = vcmp.eq.s32.totalorder %v432, 0
        %vm449 = vcmp.eq.s32.totalorder %v433, 0
        %vm450 = vcmp.eq.s32.totalorder %v434, 0
        %vm451 = vcmp.eq.s32.totalorder %v435, 0
        %vm452 = vcmp.eq.s32.totalorder %v436, 0
        %vm453 = vcmp.eq.s32.totalorder %v437, 0
        %vm454 = vcmp.eq.s32.totalorder %v438, 0
        %vm455 = vcmp.eq.s32.totalorder %v439, 0
        %vm456 = vcmp.eq.s32.totalorder %v440, 0
        %vm457 = vcmp.eq.s32.totalorder %v441, 0
        %vm458 = vcmp.eq.s32.totalorder %v442, 0
        %vm459 = vcmp.eq.s32.totalorder %v443, 0
        %vm476 = vcmask 1040384
        %v477 = vrot.slane %v219, 7
        %v478 = vrot.slane %v220, 7
        %v479 = vsel %vm476, %v477, %v478
        %v480 = vrot.slane %v221, 7
        %v481 = vsel %vm476, %v478, %v480
        %v482 = vrot.slane %v222, 7
        %v483 = vsel %vm476, %v480, %v482
        %v484 = vrot.slane %v223, 7
        %v485 = vsel %vm476, %v482, %v484
        %v486 = vrot.slane %v224, 7
        %v487 = vsel %vm476, %v484, %v486
        %v488 = vrot.slane %v225, 7
        %v489 = vsel %vm476, %v486, %v488
        %v490 = vrot.slane %v226, 7
        %v491 = vsel %vm476, %v488, %v490
        %v492 = vrot.slane %v227, 7
        %v493 = vsel %vm476, %v490, %v492
        %v494 = vrot.slane %v228, 7
        %v495 = vsel %vm476, %v492, %v494
        %v496 = vrot.slane %v229, 7
        %v497 = vsel %vm476, %v494, %v496
        %v498 = vrot.slane %v230, 7
        %v499 = vsel %vm476, %v496, %v498
        %v500 = vrot.slane %v231, 7
        %v501 = vsel %vm476, %v498, %v500
        %v502 = vrot.slane %v232, 7
        %v503 = vsel %vm476, %v500, %v502
        %v504 = vrot.slane %v233, 7
        %v505 = vsel %vm476, %v502, %v504
        %v506 = vrot.slane %v234, 7
        %v507 = vsel %vm476, %v504, %v506
        %v524 = vsel %vm476, 0.0, %v477
        %v525 = vsel %vm444, 0.0, %v524
        %v526 = vsel %vm445, 0.0, %v479
        %v527 = vsel %vm446, 0.0, %v481
        %v528 = vsel %vm447, 0.0, %v483
        %v529 = vsel %vm448, 0.0, %v485
        %v530 = vsel %vm449, 0.0, %v487
        %v531 = vsel %vm450, 0.0, %v489
        %v532 = vsel %vm451, 0.0, %v491
        %v533 = vsel %vm452, 0.0, %v493
        %v534 = vsel %vm453, 0.0, %v495
        %v535 = vsel %vm454, 0.0, %v497
        %v536 = vsel %vm455, 0.0, %v499
        %v537 = vsel %vm456, 0.0, %v501
        %v538 = vsel %vm457, 0.0, %v503
        %v539 = vsel %vm458, 0.0, %v505
        %v540 = vsel %vm459, 0.0, %v507
        %vm541 = vcmp.eq.s32.totalorder %v428, 15
        %vm542 = vcmp.eq.s32.totalorder %v429, 15
        %vm543 = vcmp.eq.s32.totalorder %v430, 15
        %vm544 = vcmp.eq.s32.totalorder %v431, 15
        %vm545 = vcmp.eq.s32.totalorder %v432, 15
        %vm546 = vcmp.eq.s32.totalorder %v433, 15
        %vm547 = vcmp.eq.s32.totalorder %v434, 15
        %vm548 = vcmp.eq.s32.totalorder %v435, 15
        %vm549 = vcmp.eq.s32.totalorder %v436, 15
        %vm550 = vcmp.eq.s32.totalorder %v437, 15
        %vm551 = vcmp.eq.s32.totalorder %v438, 15
        %vm552 = vcmp.eq.s32.totalorder %v439, 15
        %vm553 = vcmp.eq.s32.totalorder %v440, 15
        %vm554 = vcmp.eq.s32.totalorder %v441, 15
        %vm555 = vcmp.eq.s32.totalorder %v442, 15
        %vm556 = vcmp.eq.s32.totalorder %v443, 15
        %vm557 = vcmask 1046528
        %v558 = vrot.slane %v219, 1
        %v559 = vrot.slane %v220, 1
        %v560 = vsel %vm557, %v558, %v559
        %v561 = vrot.slane %v221, 1
        %v562 = vsel %vm557, %v559, %v561
        %v563 = vrot.slane %v222, 1
        %v564 = vsel %vm557, %v561, %v563
        %v565 = vrot.slane %v223, 1
        %v566 = vsel %vm557, %v563, %v565
        %v567 = vrot.slane %v224, 1
        %v568 = vsel %vm557, %v565, %v567
        %v569 = vrot.slane %v225, 1
        %v570 = vsel %vm557, %v567, %v569
        %v571 = vrot.slane %v226, 1
        %v572 = vsel %vm557, %v569, %v571
        %v573 = vrot.slane %v227, 1
        %v574 = vsel %vm557, %v571, %v573
        %v575 = vrot.slane %v228, 1
        %v576 = vsel %vm557, %v573, %v575
        %v577 = vrot.slane %v229, 1
        %v578 = vsel %vm557, %v575, %v577
        %v579 = vrot.slane %v230, 1
        %v580 = vsel %vm557, %v577, %v579
        %v581 = vrot.slane %v231, 1
        %v582 = vsel %vm557, %v579, %v581
        %v583 = vrot.slane %v232, 1
        %v584 = vsel %vm557, %v581, %v583
        %v585 = vrot.slane %v233, 1
        %v586 = vsel %vm557, %v583, %v585
        %v587 = vrot.slane %v234, 1
        %v588 = vsel %vm557, %v585, %v587
        %v605 = vsel %vm557, %v587, 0.0
        %v606 = vsel %vm541, 0.0, %v560
        %v607 = vsel %vm542, 0.0, %v562
        %v608 = vsel %vm543, 0.0, %v564
        %v609 = vsel %vm544, 0.0, %v566
        %v610 = vsel %vm545, 0.0, %v568
        %v611 = vsel %vm546, 0.0, %v570
        %v612 = vsel %vm547, 0.0, %v572
        %v613 = vsel %vm548, 0.0, %v574
        %v614 = vsel %vm549, 0.0, %v576
        %v615 = vsel %vm550, 0.0, %v578
        %v616 = vsel %vm551, 0.0, %v580
        %v617 = vsel %vm552, 0.0, %v582
        %v618 = vsel %vm553, 0.0, %v584
        %v619 = vsel %vm554, 0.0, %v586
        %v620 = vsel %vm555, 0.0, %v588
        %v621 = vsel %vm556, 0.0, %v605
        %v622 = vld [vmem:[#allocation4] sm:$0xff]
        %v623 = vld [vmem:[#allocation4 + $0x8] sm:$0xff]
        %v624 = vld [vmem:[#allocation4 + $0x10] sm:$0xff]
        %v625 = vld [vmem:[#allocation4 + $0x18] sm:$0xff]
        %v626 = vld [vmem:[#allocation4 + $0x20] sm:$0xff]
        %v627 = vld [vmem:[#allocation4 + $0x28] sm:$0xff]
        %v628 = vld [vmem:[#allocation4 + $0x30] sm:$0xff]
        %v629 = vld [vmem:[#allocation4 + $0x38] sm:$0xff]
        %v630 = vld [vmem:[#allocation4 + $0x40] sm:$0xff]
        %v631 = vld [vmem:[#allocation4 + $0x48] sm:$0xff]
        %v632 = vld [vmem:[#allocation4 + $0x50] sm:$0xff]
        %v633 = vld [vmem:[#allocation4 + $0x58] sm:$0xff]
        %v634 = vld [vmem:[#allocation4 + $0x60] sm:$0xff]
        %v635 = vld [vmem:[#allocation4 + $0x68] sm:$0xff]
        %v636 = vld [vmem:[#allocation4 + $0x70] sm:$0xff]
        %v637 = vld [vmem:[#allocation4 + $0x78] sm:$0xff]
        %v638 = vld [vmem:[#allocation4 + $0x80] sm:$0xff]
        %v639 = vld [vmem:[#allocation4 + $0x88] sm:$0xff]
        %v640 = vld [vmem:[#allocation4 + $0x90] sm:$0xff]
        %v641 = vld [vmem:[#allocation4 + $0x98] sm:$0xff]
        %v642 = vld [vmem:[#allocation4 + $0xa0] sm:$0xff]
        %v643 = vld [vmem:[#allocation4 + $0xa8] sm:$0xff]
        %v644 = vld [vmem:[#allocation4 + $0xb0] sm:$0xff]
        %v645 = vld [vmem:[#allocation4 + $0xb8] sm:$0xff]
        %v646 = vld [vmem:[#allocation4 + $0xc0] sm:$0xff]
        %v647 = vld [vmem:[#allocation4 + $0xc8] sm:$0xff]
        %v648 = vld [vmem:[#allocation4 + $0xd0] sm:$0xff]
        %v649 = vld [vmem:[#allocation4 + $0xd8] sm:$0xff]
        %v650 = vld [vmem:[#allocation4 + $0xe0] sm:$0xff]
        %v651 = vld [vmem:[#allocation4 + $0xe8] sm:$0xff]
        %v652 = vld [vmem:[#allocation4 + $0xf0] sm:$0xff]
        %v653 = vld [vmem:[#allocation4 + $0xf8] sm:$0xff]
        %v654 = vld [vmem:[#allocation4 + $0x100] sm:$0xff]
        %v655 = vld [vmem:[#allocation4 + $0x108] sm:$0xff]
        %v656 = vld [vmem:[#allocation4 + $0x110] sm:$0xff]
        %v657 = vld [vmem:[#allocation4 + $0x118] sm:$0xff]
        %v658 = vld [vmem:[#allocation4 + $0x120] sm:$0xff]
        %v659 = vld [vmem:[#allocation4 + $0x128] sm:$0xff]
        %v660 = vld [vmem:[#allocation4 + $0x130] sm:$0xff]
        %v661 = vld [vmem:[#allocation4 + $0x138] sm:$0xff]
        %v662 = vld [vmem:[#allocation4 + $0x140] sm:$0xff]
        %v663 = vld [vmem:[#allocation4 + $0x148] sm:$0xff]
        %v664 = vld [vmem:[#allocation4 + $0x150] sm:$0xff]
        %v665 = vld [vmem:[#allocation4 + $0x158] sm:$0xff]
        %v666 = vld [vmem:[#allocation4 + $0x160] sm:$0xff]
        %v667 = vld [vmem:[#allocation4 + $0x168] sm:$0xff]
        %v668 = vld [vmem:[#allocation4 + $0x170] sm:$0xff]
        %v669 = vld [vmem:[#allocation4 + $0x178] sm:$0xff]
        %670 = vmatprep.subr.mxu0 0.0
        %671 = vmatpush1.msra.mxu0 %v622
        %672 = vmatprep.subr.mxu0 0.0
        %673 = vmatpush1.msra.mxu0 %v623
        %674 = vmatprep.subr.mxu0 0.0
        %675 = vmatpush1.msra.mxu0 %v624
        %676 = vmatprep.subr.mxu0 0.0
        %677 = vmatpush1.msra.mxu0 %v625
        %678 = vmatprep.subr.mxu0 0.0
        %679 = vmatpush1.msra.mxu0 %v626
        %680 = vmatprep.subr.mxu0 0.0
        %681 = vmatpush1.msra.mxu0 %v627
        %682 = vmatprep.subr.mxu0 0.0
        %683 = vmatpush1.msra.mxu0 %v628
        %684 = vmatprep.subr.mxu0 0.0
        %685 = vmatpush1.msra.mxu0 %v629
        %686 = vmatprep.subr.mxu0 0.0
        %687 = vmatpush1.msra.mxu0 %v630
        %688 = vmatprep.subr.mxu0 0.0
        %689 = vmatpush1.msra.mxu0 %v631
        %690 = vmatprep.subr.mxu0 0.0
        %691 = vmatpush1.msra.mxu0 %v632
        %692 = vmatprep.subr.mxu0 0.0
        %693 = vmatpush1.msra.mxu0 %v633
        %694 = vmatprep.subr.mxu0 0.0
        %695 = vmatpush1.msra.mxu0 %v634
        %696 = vmatprep.subr.mxu0 0.0
        %697 = vmatpush1.msra.mxu0 %v635
        %698 = vmatprep.subr.mxu0 0.0
        %699 = vmatpush1.msra.mxu0 %v636
        %700 = vmatprep.subr.mxu0 0.0
        %701 = vmatpush1.msra.mxu0 %v637
        %702 = vmatprep.subr.mxu0 0.0
        %703 = vmatpush1.msra.mxu0 %v638
        %704 = vmatprep.subr.mxu0 0.0
        %705 = vmatpush1.msra.mxu0 %v639
        %706 = vmatprep.subr.mxu0 0.0
        %707 = vmatpush1.msra.mxu0 %v640
        %708 = vmatprep.subr.mxu0 0.0
        %709 = vmatpush1.msra.mxu0 %v641
        %710 = vmatprep.subr.mxu0 0.0
        %711 = vmatpush1.msra.mxu0 %v642
        %712 = vmatprep.subr.mxu0 0.0
        %713 = vmatpush1.msra.mxu0 %v643
        %714 = vmatprep.subr.mxu0 0.0
        %715 = vmatpush1.msra.mxu0 %v644
        %716 = vmatprep.subr.mxu0 0.0
        %717 = vmatpush1.msra.mxu0 %v645
        %718 = vmatprep.subr.mxu0 0.0
        %719 = vmatpush1.msra.mxu0 %v646
        %720 = vmatprep.subr.mxu0 0.0
        %721 = vmatpush1.msra.mxu0 %v647
        %722 = vmatprep.subr.mxu0 0.0
        %723 = vmatpush1.msra.mxu0 %v648
        %724 = vmatprep.subr.mxu0 0.0
        %725 = vmatpush1.msra.mxu0 %v649
        %726 = vmatprep.subr.mxu0 0.0
        %727 = vmatpush1.msra.mxu0 %v650
        %728 = vmatprep.subr.mxu0 0.0
        %729 = vmatpush1.msra.mxu0 %v651
        %730 = vmatprep.subr.mxu0 0.0
        %731 = vmatpush1.msra.mxu0 %v652
        %732 = vmatprep.subr.mxu0 0.0
        %733 = vmatpush1.msra.mxu0 %v653
        %734 = vmatprep.mubr.f32.mxu0 %v219
        %735 = vmatmul.mubr.f32.gmra.mrb[0].mxu0 %v525
        %v736 = vpop.f32.mrb[0].mxu0
        %v737 = vadd.f32 0.0, %v736
        %v738 = vpop.f32.mrb[0].mxu0
        %739 = vmatprep.mubr.f32.mxu0 %v220
        %740 = vmatmul.mubr.f32.gmra.mrb[0].mxu0 %v526
        %v741 = vpop.f32.mrb[0].mxu0
        %v742 = vadd.f32 0.0, %v741
        %v743 = vpop.f32.mrb[0].mxu0
        %744 = vmatprep.mubr.f32.mxu0 %v221
        %745 = vmatmul.mubr.f32.gmra.mrb[0].mxu0 %v527
        %v746 = vpop.f32.mrb[0].mxu0
        %v747 = vadd.f32 0.0, %v746
        %v748 = vpop.f32.mrb[0].mxu0
        %749 = vmatprep.mubr.f32.mxu0 %v222
        %750 = vmatmul.mubr.f32.gmra.mrb[0].mxu0 %v528
        %v751 = vpop.f32.mrb[0].mxu0
        %v752 = vadd.f32 0.0, %v751
        %v753 = vpop.f32.mrb[0].mxu0
        %754 = vmatprep.mubr.f32.mxu0 %v223
        %755 = vmatmul.mubr.f32.gmra.mrb[0].mxu0 %v529
        %v756 = vpop.f32.mrb[0].mxu0
        %v757 = vadd.f32 0.0, %v756
        %v758 = vpop.f32.mrb[0].mxu0
        %759 = vmatprep.mubr.f32.mxu0 %v224
        %760 = vmatmul.mubr.f32.gmra.mrb[0].mxu0 %v530
        %v761 = vpop.f32.mrb[0].mxu0
        %v762 = vadd.f32 0.0, %v761
        %v763 = vpop.f32.mrb[0].mxu0
        %764 = vmatprep.mubr.f32.mxu0 %v225
        %765 = vmatmul.mubr.f32.gmra.mrb[0].mxu0 %v531
        %v766 = vpop.f32.mrb[0].mxu0
        %v767 = vadd.f32 0.0, %v766
        %v768 = vpop.f32.mrb[0].mxu0
        %769 = vmatprep.mubr.f32.mxu0 %v226
        %770 = vmatmul.mubr.f32.gmra.mrb[0].mxu0 %v532
        %v771 = vpop.f32.mrb[0].mxu0
        %v772 = vadd.f32 0.0, %v771
        %v773 = vpop.f32.mrb[0].mxu0
        %774 = vmatprep.mubr.f32.mxu0 %v227
        %775 = vmatmul.mubr.f32.gmra.mrb[0].mxu0 %v533
        %v776 = vpop.f32.mrb[0].mxu0
        %v777 = vadd.f32 0.0, %v776
        %v778 = vpop.f32.mrb[0].mxu0
        %779 = vmatprep.mubr.f32.mxu0 %v228
        %780 = vmatmul.mubr.f32.gmra.mrb[0].mxu0 %v534
        %v781 = vpop.f32.mrb[0].mxu0
        %v782 = vadd.f32 0.0, %v781
        %v783 = vpop.f32.mrb[0].mxu0
        %784 = vmatprep.mubr.f32.mxu0 %v229
        %785 = vmatmul.mubr.f32.gmra.mrb[0].mxu0 %v535
        %v786 = vpop.f32.mrb[0].mxu0
        %v787 = vadd.f32 0.0, %v786
        %v788 = vpop.f32.mrb[0].mxu0
        %789 = vmatprep.mubr.f32.mxu0 %v230
        %790 = vmatmul.mubr.f32.gmra.mrb[0].mxu0 %v536
        %v791 = vpop.f32.mrb[0].mxu0
        %v792 = vadd.f32 0.0, %v791
        %v793 = vpop.f32.mrb[0].mxu0
        %794 = vmatprep.mubr.f32.mxu0 %v231
        %795 = vmatmul.mubr.f32.gmra.mrb[0].mxu0 %v537
        %v796 = vpop.f32.mrb[0].mxu0
        %v797 = vadd.f32 0.0, %v796
        %v798 = vpop.f32.mrb[0].mxu0
        %799 = vmatprep.mubr.f32.mxu0 %v232
        %800 = vmatmul.mubr.f32.gmra.mrb[0].mxu0 %v538
        %v801 = vpop.f32.mrb[0].mxu0
        %v802 = vadd.f32 0.0, %v801
        %v803 = vpop.f32.mrb[0].mxu0
        %804 = vmatprep.mubr.f32.mxu0 %v233
        %805 = vmatmul.mubr.f32.gmra.mrb[0].mxu0 %v539
        %v806 = vpop.f32.mrb[0].mxu0
        %v807 = vadd.f32 0.0, %v806
        %v808 = vpop.f32.mrb[0].mxu0
        %809 = vmatprep.mubr.f32.mxu0 %v234
        %810 = vmatmul.mubr.f32.gmra.mrb[0].mxu0 %v540
        %v811 = vpop.f32.mrb[0].mxu0
        %v812 = vadd.f32 0.0, %v811
        %v813 = vpop.f32.mrb[0].mxu0
        %814 = vdwg.mxu0
        %815 = vmatprep.subr.mxu0 0.0
        %816 = vmatpush1.msra.mxu0 %v654
        %817 = vmatprep.subr.mxu0 0.0
        %818 = vmatpush1.msra.mxu0 %v655
        %819 = vmatprep.subr.mxu0 0.0
        %820 = vmatpush1.msra.mxu0 %v656
        %821 = vmatprep.subr.mxu0 0.0
        %822 = vmatpush1.msra.mxu0 %v657
        %823 = vmatprep.subr.mxu0 0.0
        %824 = vmatpush1.msra.mxu0 %v658
        %825 = vmatprep.subr.mxu0 0.0
        %826 = vmatpush1.msra.mxu0 %v659
        %827 = vmatprep.subr.mxu0 0.0
        %828 = vmatpush1.msra.mxu0 %v660
        %829 = vmatprep.subr.mxu0 0.0
        %830 = vmatpush1.msra.mxu0 %v661
        %831 = vmatprep.subr.mxu0 0.0
        %832 = vmatpush1.msra.mxu0 %v662
        %833 = vmatprep.subr.mxu0 0.0
        %834 = vmatpush1.msra.mxu0 %v663
        %835 = vmatprep.subr.mxu0 0.0
        %836 = vmatpush1.msra.mxu0 %v664
        %837 = vmatprep.subr.mxu0 0.0
        %838 = vmatpush1.msra.mxu0 %v665
        %839 = vmatprep.subr.mxu0 0.0
        %840 = vmatpush1.msra.mxu0 %v666
        %841 = vmatprep.subr.mxu0 0.0
        %842 = vmatpush1.msra.mxu0 %v667
        %843 = vmatprep.subr.mxu0 0.0
        %844 = vmatpush1.msra.mxu0 %v668
        %845 = vmatprep.subr.mxu0 0.0
        %846 = vmatpush1.msra.mxu0 %v669
        %847 = vmatprep.subr.mxu0 0.0
        %848 = vmatpush1.msra.mxu0 0.0
        %849 = vmatprep.subr.mxu0 0.0
        %850 = vmatpush1.msra.mxu0 0.0
        %851 = vmatprep.subr.mxu0 0.0
        %852 = vmatpush1.msra.mxu0 0.0
        %853 = vmatprep.subr.mxu0 0.0
        %854 = vmatpush1.msra.mxu0 0.0
        %855 = vmatprep.subr.mxu0 0.0
        %856 = vmatpush1.msra.mxu0 0.0
        %857 = vmatprep.subr.mxu0 0.0
        %858 = vmatpush1.msra.mxu0 0.0
        %859 = vmatprep.subr.mxu0 0.0
        %860 = vmatpush1.msra.mxu0 0.0
        %861 = vmatprep.subr.mxu0 0.0
        %862 = vmatpush1.msra.mxu0 0.0
        %863 = vmatprep.subr.mxu0 0.0
        %864 = vmatpush1.msra.mxu0 0.0
        %865 = vmatprep.subr.mxu0 0.0
        %866 = vmatpush1.msra.mxu0 0.0
        %867 = vmatprep.subr.mxu0 0.0
        %868 = vmatpush1.msra.mxu0 0.0
        %869 = vmatprep.subr.mxu0 0.0
        %870 = vmatpush1.msra.mxu0 0.0
        %871 = vmatprep.subr.mxu0 0.0
        %872 = vmatpush1.msra.mxu0 0.0
        %873 = vmatprep.subr.mxu0 0.0
        %874 = vmatpush1.msra.mxu0 0.0
        %875 = vmatprep.subr.mxu0 0.0
        %876 = vmatpush1.msra.mxu0 0.0
        %877 = vmatprep.subr.mxu0 0.0
        %878 = vmatpush1.msra.mxu0 0.0
        %879 = vmatprep.mubr.f32.mxu0 0.0
        %880 = vmatmul.mubr.f32.gmra.mrb[0].mxu0 %v606
        %v881 = vpop.f32.mrb[0].mxu0
        %v882 = vadd.f32 %v737, %v881
        %v883 = vpop.f32.mrb[0].mxu0
        %884 = vmatprep.mubr.f32.mxu0 0.0
        %885 = vmatmul.mubr.f32.gmra.mrb[0].mxu0 %v607
        %v886 = vpop.f32.mrb[0].mxu0
        %v887 = vadd.f32 %v742, %v886
        %v888 = vpop.f32.mrb[0].mxu0
        %889 = vmatprep.mubr.f32.mxu0 0.0
        %890 = vmatmul.mubr.f32.gmra.mrb[0].mxu0 %v608
        %v891 = vpop.f32.mrb[0].mxu0
        %v892 = vadd.f32 %v747, %v891
        %v893 = vpop.f32.mrb[0].mxu0
        %894 = vmatprep.mubr.f32.mxu0 0.0
        %895 = vmatmul.mubr.f32.gmra.mrb[0].mxu0 %v609
        %v896 = vpop.f32.mrb[0].mxu0
        %v897 = vadd.f32 %v752, %v896
        %v898 = vpop.f32.mrb[0].mxu0
        %899 = vmatprep.mubr.f32.mxu0 0.0
        %900 = vmatmul.mubr.f32.gmra.mrb[0].mxu0 %v610
        %v901 = vpop.f32.mrb[0].mxu0
        %v902 = vadd.f32 %v757, %v901
        %v903 = vpop.f32.mrb[0].mxu0
        %904 = vmatprep.mubr.f32.mxu0 0.0
        %905 = vmatmul.mubr.f32.gmra.mrb[0].mxu0 %v611
        %v906 = vpop.f32.mrb[0].mxu0
        %v907 = vadd.f32 %v762, %v906
        %v908 = vpop.f32.mrb[0].mxu0
        %909 = vmatprep.mubr.f32.mxu0 0.0
        %910 = vmatmul.mubr.f32.gmra.mrb[0].mxu0 %v612
        %v911 = vpop.f32.mrb[0].mxu0
        %v912 = vadd.f32 %v767, %v911
        %v913 = vpop.f32.mrb[0].mxu0
        %914 = vmatprep.mubr.f32.mxu0 0.0
        %915 = vmatmul.mubr.f32.gmra.mrb[0].mxu0 %v613
        %v916 = vpop.f32.mrb[0].mxu0
        %v917 = vadd.f32 %v772, %v916
        %v918 = vpop.f32.mrb[0].mxu0
        %919 = vmatprep.mubr.f32.mxu0 0.0
        %920 = vmatmul.mubr.f32.gmra.mrb[0].mxu0 %v614
        %v921 = vpop.f32.mrb[0].mxu0
        %v922 = vadd.f32 %v777, %v921
        %v923 = vpop.f32.mrb[0].mxu0
        %924 = vmatprep.mubr.f32.mxu0 0.0
        %925 = vmatmul.mubr.f32.gmra.mrb[0].mxu0 %v615
        %v926 = vpop.f32.mrb[0].mxu0
        %v927 = vadd.f32 %v782, %v926
        %v928 = vpop.f32.mrb[0].mxu0
        %929 = vmatprep.mubr.f32.mxu0 0.0
        %930 = vmatmul.mubr.f32.gmra.mrb[0].mxu0 %v616
        %v931 = vpop.f32.mrb[0].mxu0
        %v932 = vadd.f32 %v787, %v931
        %v933 = vpop.f32.mrb[0].mxu0
        %934 = vmatprep.mubr.f32.mxu0 0.0
        %935 = vmatmul.mubr.f32.gmra.mrb[0].mxu0 %v617
        %v936 = vpop.f32.mrb[0].mxu0
        %v937 = vadd.f32 %v792, %v936
        %v938 = vpop.f32.mrb[0].mxu0
        %939 = vmatprep.mubr.f32.mxu0 0.0
        %940 = vmatmul.mubr.f32.gmra.mrb[0].mxu0 %v618
        %v941 = vpop.f32.mrb[0].mxu0
        %v942 = vadd.f32 %v797, %v941
        %v943 = vpop.f32.mrb[0].mxu0
        %944 = vmatprep.mubr.f32.mxu0 0.0
        %945 = vmatmul.mubr.f32.gmra.mrb[0].mxu0 %v619
        %v946 = vpop.f32.mrb[0].mxu0
        %v947 = vadd.f32 %v802, %v946
        %v948 = vpop.f32.mrb[0].mxu0
        %949 = vmatprep.mubr.f32.mxu0 0.0
        %950 = vmatmul.mubr.f32.gmra.mrb[0].mxu0 %v620
        %v951 = vpop.f32.mrb[0].mxu0
        %v952 = vadd.f32 %v807, %v951
        %v953 = vpop.f32.mrb[0].mxu0
        %954 = vmatprep.mubr.f32.mxu0 0.0
        %955 = vmatmul.mubr.f32.gmra.mrb[0].mxu0 %v621
        %v956 = vpop.f32.mrb[0].mxu0
        %v957 = vadd.f32 %v812, %v956
        %v958 = vpop.f32.mrb[0].mxu0
        %959 = vdwg.mxu0
        %960 = vst [vmem:[%s213] sm:$0xff] %v882
        %961 = vst [vmem:[%s213 + $0x8] sm:$0xff] %v887
        %962 = vst [vmem:[%s213 + $0x10] sm:$0xff] %v892
        %963 = vst [vmem:[%s213 + $0x18] sm:$0xff] %v897
        %964 = vst [vmem:[%s213 + $0x20] sm:$0xff] %v902
        %965 = vst [vmem:[%s213 + $0x28] sm:$0xff] %v907
        %966 = vst [vmem:[%s213 + $0x30] sm:$0xff] %v912
        %967 = vst [vmem:[%s213 + $0x38] sm:$0xff] %v917
        %968 = vst [vmem:[%s213 + $0x40] sm:$0xff] %v922
        %969 = vst [vmem:[%s213 + $0x48] sm:$0xff] %v927
        %970 = vst [vmem:[%s213 + $0x50] sm:$0xff] %v932
        %971 = vst [vmem:[%s213 + $0x58] sm:$0xff] %v937
        %972 = vst [vmem:[%s213 + $0x60] sm:$0xff] %v942
        %973 = vst [vmem:[%s213 + $0x68] sm:$0xff] %v947
        %974 = vst [vmem:[%s213 + $0x70] sm:$0xff] %v952
        %975 = vst [vmem:[%s213 + $0x78] sm:$0xff] %v957
        %v976 = vadd.f32 %v882, %v887
        %v977 = vadd.f32 %v976, %v892
        %v978 = vadd.f32 %v977, %v897
        %v979 = vadd.f32 %v978, %v902
        %v980 = vadd.f32 %v979, %v907
        %v981 = vadd.f32 %v980, %v912
        %v982 = vadd.f32 %v981, %v917
        %v983 = vadd.f32 %v982, %v922
        %v984 = vadd.f32 %v983, %v927
        %v985 = vadd.f32 %v984, %v932
        %v986 = vadd.f32 %v985, %v937
        %v987 = vadd.f32 %v986, %v942
        %v988 = vadd.f32 %v987, %v947
        %v989 = vadd.f32 %v988, %v952
        %v990 = vadd.f32 %v989, %v957
        %v991 = vrot.slane %v990, 4
        %v992 = vadd.f32 %v990, %v991
        %v993 = vrot.slane %v992, 2
        %v994 = vadd.f32 %v992, %v993
        %v995 = vrot.slane %v994, 1
        %v996 = vadd.f32 %v994, %v995
        %v997 = vmul.f32 %v882, %v882
        %v998 = vmul.f32 %v887, %v887
        %v999 = vmul.f32 %v892, %v892
        %v1000 = vmul.f32 %v897, %v897
        %v1001 = vmul.f32 %v902, %v902
        %v1002 = vmul.f32 %v907, %v907
        %v1003 = vmul.f32 %v912, %v912
        %v1004 = vmul.f32 %v917, %v917
        %v1005 = vmul.f32 %v922, %v922
        %v1006 = vmul.f32 %v927, %v927
        %v1007 = vmul.f32 %v932, %v932
        %v1008 = vmul.f32 %v937, %v937
        %v1009 = vmul.f32 %v942, %v942
        %v1010 = vmul.f32 %v947, %v947
        %v1011 = vmul.f32 %v952, %v952
        %v1012 = vmul.f32 %v957, %v957
        %v1013 = vadd.f32 %v997, %v998
        %v1014 = vadd.f32 %v1013, %v999
        %v1015 = vadd.f32 %v1014, %v1000
        %v1016 = vadd.f32 %v1015, %v1001
        %v1017 = vadd.f32 %v1016, %v1002
        %v1018 = vadd.f32 %v1017, %v1003
        %v1019 = vadd.f32 %v1018, %v1004
        %v1020 = vadd.f32 %v1019, %v1005
        %v1021 = vadd.f32 %v1020, %v1006
        %v1022 = vadd.f32 %v1021, %v1007
        %v1023 = vadd.f32 %v1022, %v1008
        %v1024 = vadd.f32 %v1023, %v1009
        %v1025 = vadd.f32 %v1024, %v1010
        %v1026 = vadd.f32 %v1025, %v1011
        %v1027 = vadd.f32 %v1026, %v1012
        %v1028 = vrot.slane %v1027, 4
        %v1029 = vadd.f32 %v1027, %v1028
        %v1030 = vrot.slane %v1029, 2
        %v1031 = vadd.f32 %v1029, %v1030
        %v1032 = vrot.slane %v1031, 1
        %v1033 = vadd.f32 %v1031, %v1032
        %vm1034 = vcmp.eq.s32.totalorder %v236, 0
        %vm1035 = vcmp.eq.s32.totalorder %v236, 1
        %v1036 = vsel %vm1035, %v1033, 0.0
        %v1037 = vsel %vm1034, %v996, %v1036
        %1038 = vst [vmem:[%s218] sm:$0xff] %v1037
        %s1039 = smul.u32 16, %s19
        %p1040 = scmp.lt.s32.totalorder %s1039, 31
        %s1041 = scalar_select %p1040, %s1039, 31
        %s1042 = smul.addr %s1041, 8
        %s1043 = scalar_lea.vmem %s2, %s1042
        %p1044 = scmp.lt.s32.totalorder %s19, 1
        %s1045 = scalar_select %p1044, %s19, 1
        %s1046 = smul.addr %s1045, 8
        %s1047 = scalar_lea.vmem %s3, %s1046
        // Predicated region
        $region37: #{basic_block_forward_rows.3} parent=27 // pred_check
          %p1048 = pneg %p84
        $region38: #{basic_block_forward_rows.3} parent=27 // pred_check_branch
          %1050 = sbr.rel (%p1048) target = $region40
        $region39: #{basic_block_forward_rows.3} parent=27 // pred_region
          %s1051 = smul.u32 16, %s19
        $region40: #{basic_block_forward_rows.3} parent=27 // pred_fallthru
          _
        // Predicated region
        $region41: #{basic_block_forward_rows.3} parent=27 // pred_check
          %p1052 = pneg %p110
        $region42: #{basic_block_forward_rows.3} parent=27 // pred_check_branch
          %1054 = sbr.rel (%p1052) target = $region44
        $region43: #{basic_block_forward_rows.3} parent=27 // pred_region
          _
        $region44: #{basic_block_forward_rows.3} parent=27 // pred_fallthru
          _
      $region28: #{basic_block_forward_rows.3} parent=5 // pred_fallthru
        _
      %p1055 = scmp.le.s32.totalorder 2, %s14
      // Predicated region
      $region45: #{basic_block_forward_rows.3} parent=5 // pred_check
        %p1056 = pneg %p1055
      $region46: #{basic_block_forward_rows.3} parent=5 // pred_check_branch
        %1058 = sbr.rel (%p1056) target = $region48
      $region47: #{basic_block_forward_rows.3} parent=5 // pred_region
        %s1059 = ssub.s32 %s14, 2
        // Predicated region
        $region49: #{basic_block_forward_rows.3} parent=47 // pred_check
          %p1060 = pneg %p90
        $region50: #{basic_block_forward_rows.3} parent=47 // pred_check_branch
          %1062 = sbr.rel (%p1060) target = $region52
        $region51: #{basic_block_forward_rows.3} parent=47 // pred_region
          %s1063 = smul.u32 16, %s20
          %p1064 = scmp.lt.s32.totalorder %s1063, 31
          %s1065 = scalar_select %p1064, %s1063, 31
          %s1066 = smul.addr %s1065, 8
          %s1067 = scalar_lea.vmem %s2, %s1066
        $region52: #{basic_block_forward_rows.3} parent=47 // pred_fallthru
          _
        // Predicated region
        $region53: #{basic_block_forward_rows.3} parent=47 // pred_check
          %p1068 = pneg %p116
        $region54: #{basic_block_forward_rows.3} parent=47 // pred_check_branch
          %1070 = sbr.rel (%p1068) target = $region56
        $region55: #{basic_block_forward_rows.3} parent=47 // pred_region
          %p1071 = scmp.lt.s32.totalorder %s20, 1
          %s1072 = scalar_select %p1071, %s20, 1
          %s1073 = smul.addr %s1072, 8
          %s1074 = scalar_lea.vmem %s3, %s1073
        $region56: #{basic_block_forward_rows.3} parent=47 // pred_fallthru
          _
      $region48: #{basic_block_forward_rows.3} parent=5 // pred_fallthru
        _
    $region6: #{basic_block_forward_rows.3} parent=1 // loop_footer
      %s18 = sadd.s32 1, %s14
    $region7: #{basic_block_forward_rows.3} parent=1 // loop_footer_branch
      %13 = sbr.rel target = $region3
    $region8: #{basic_block_forward_rows.3} parent=1 // loop_exit
      _
    %1075 = vsyncpa [#allocation3], 1
    %s1076 = scalar_lea.sflag [#allocation3], 1
    %1077 = vsyncpa %s1076, 1
    %1078 = vsyncpa [#allocation5], 1

// kernel: basic_block_forward_rows.4
$region0: #{basic_block_forward_rows.4}
  #allocation0 [shape = 'u32[]', space=smem, size = 0x4, offset = 0x4, fixed_abs, tag = 'smem constant byte address 0x4 - core index']
  #allocation1 [shape = 'u32[144,128]{1,0:T(1,128)}', space=vmem, size = 0x12000, scoped, tag = 'internal scratch']
  %s0 = inlined_call_operand.vmem [shape: f32[256,128], index: 0, kind: input, shape index: {}]
  %s1 = inlined_call_operand.vmem [shape: f32[1,128], index: 1, kind: input, shape index: {}]
  %s2 = inlined_call_operand.vmem [shape: f32[1,128], index: 2, kind: input, shape index: {}]
  %s3 = inlined_call_operand.vmem [shape: f32[384,128], index: 3, kind: input, shape index: {}]
  %s4 = inlined_call_operand.vmem [shape: f32[256,128], index: 4, kind: output, shape index: {0}]
  %s5 = inlined_call_operand.vmem [shape: f32[2,8,128], index: 5, kind: output, shape index: {1}]
  %6 = xla_tuple %s4, %s5
  %s7 = sld [smem:[#allocation0]]
  $region57: #{basic_block_forward_rows.4} parent=0
    _
  %s9 = ssub.s32 1, %s7
  %s10 = scalar_select 0, %s9, %s7
  loop: start=0, step=1, limit=4
  $region2: #{basic_block_forward_rows.4} parent=0 // loop_pre_header
    _
  $region3: #{basic_block_forward_rows.4} parent=0 // loop_header
    %s12 = sphi 0, %s16
    %p13 = scmp.ge.s32.totalorder %s12, 4
    %s22 = sphi 0, %s24
    %s25 = sphi 0, %s22
    %s26 = sphi 0, %s25
    %s42 = sphi 0, %s26
    %s46 = sphi 0, %s46
    %s48 = sphi 0, %s46
    %s49 = sphi 0, %s48
    %s63 = sphi 0, %s49
    %s67 = sphi 0, %s67
    %s69 = sphi 0, %s67
    %s70 = sphi 0, %s69
    %s84 = sphi 0, %s70
    %s88 = sphi 0, %s88
    %s90 = sphi 0, %s88
    %s91 = sphi 0, %s90
    %s105 = sphi 0, %s91
    %s111 = sphi 0, %s113
    %s114 = sphi 0, %s111
    %s115 = sphi 0, %s114
    %s131 = sphi 0, %s115
    %s137 = sphi 0, %s139
    %s140 = sphi 0, %s137
    %s141 = sphi 0, %s140
    %s157 = sphi 0, %s141
  $region4: #{basic_block_forward_rows.4} parent=0 // loop_header_branch
    %15 = sbr.rel (%p13) target = $region8
  $region5: #{basic_block_forward_rows.4} parent=0 // loop_body
    %s17 = ssub.s32 %s12, 1
    %s18 = ssub.s32 %s12, 2
    %s19 = sadd.s32 %s12, 1
    %s20 = ssub.s32 %s12, %s19
    %p21 = scmp.eq.s32.totalorder %s20, 0
    %s23 = sadd.s32 %s22, 1
    %s24 = scalar_select %p21, %s22, %s23
    %p27 = pneg %p21
    %p28 = scmp.eq.s32.totalorder %s12, 1
    %p29 = por %p27, %p28
    %p30 = scmp.ne.s32.totalorder %s22, %s25
    %p31 = scmp.eq.s32.totalorder %s12, 0
    %p32 = por %p30, %p31
    %p33 = scmp.ne.s32.totalorder %s22, %s25
    %p34 = scmp.eq.s32.totalorder %s17, 1
    %p35 = por %p33, %p34
    %p36 = scmp.ne.s32.totalorder %s25, %s26
    %p37 = scmp.eq.s32.totalorder %s17, 0
    %p38 = por %p36, %p37
    %p39 = scmp.ne.s32.totalorder %s25, %s26
    %p40 = scmp.eq.s32.totalorder %s18, 1
    %p41 = por %p39, %p40
    %p43 = scmp.ne.s32.totalorder %s26, %s42
    %p44 = scmp.eq.s32.totalorder %s18, 0
    %p45 = por %p43, %p44
    %s47 = sadd.s32 %s46, 1
    %p50 = scmp.eq.s32.totalorder %s12, 1
    %p51 = scmp.ne.s32.totalorder %s46, %s48
    %p52 = scmp.eq.s32.totalorder %s12, 0
    %p53 = por %p51, %p52
    %p54 = scmp.ne.s32.totalorder %s46, %s48
    %p55 = scmp.eq.s32.totalorder %s17, 1
    %p56 = por %p54, %p55
    %p57 = scmp.ne.s32.totalorder %s48, %s49
    %p58 = scmp.eq.s32.totalorder %s17, 0
    %p59 = por %p57, %p58
    %p60 = scmp.ne.s32.totalorder %s48, %s49
    %p61 = scmp.eq.s32.totalorder %s18, 1
    %p62 = por %p60, %p61
    %p64 = scmp.ne.s32.totalorder %s49, %s63
    %p65 = scmp.eq.s32.totalorder %s18, 0
    %p66 = por %p64, %p65
    %s68 = sadd.s32 %s67, 1
    %p71 = scmp.eq.s32.totalorder %s12, 1
    %p72 = scmp.ne.s32.totalorder %s67, %s69
    %p73 = scmp.eq.s32.totalorder %s12, 0
    %p74 = por %p72, %p73
    %p75 = scmp.ne.s32.totalorder %s67, %s69
    %p76 = scmp.eq.s32.totalorder %s17, 1
    %p77 = por %p75, %p76
    %p78 = scmp.ne.s32.totalorder %s69, %s70
    %p79 = scmp.eq.s32.totalorder %s17, 0
    %p80 = por %p78, %p79
    %p81 = scmp.ne.s32.totalorder %s69, %s70
    %p82 = scmp.eq.s32.totalorder %s18, 1
    %p83 = por %p81, %p82
    %p85 = scmp.ne.s32.totalorder %s70, %s84
    %p86 = scmp.eq.s32.totalorder %s18, 0
    %p87 = por %p85, %p86
    %s89 = sadd.s32 %s88, 1
    %p92 = scmp.eq.s32.totalorder %s12, 1
    %p93 = scmp.ne.s32.totalorder %s88, %s90
    %p94 = scmp.eq.s32.totalorder %s12, 0
    %p95 = por %p93, %p94
    %p96 = scmp.ne.s32.totalorder %s88, %s90
    %p97 = scmp.eq.s32.totalorder %s17, 1
    %p98 = por %p96, %p97
    %p99 = scmp.ne.s32.totalorder %s90, %s91
    %p100 = scmp.eq.s32.totalorder %s17, 0
    %p101 = por %p99, %p100
    %p102 = scmp.ne.s32.totalorder %s90, %s91
    %p103 = scmp.eq.s32.totalorder %s18, 1
    %p104 = por %p102, %p103
    %p106 = scmp.ne.s32.totalorder %s91, %s105
    %p107 = scmp.eq.s32.totalorder %s18, 0
    %p108 = por %p106, %p107
    %s109 = ssub.s32 %s12, %s19
    %p110 = scmp.eq.s32.totalorder %s109, 0
    %s112 = sadd.s32 %s111, 1
    %s113 = scalar_select %p110, %s111, %s112
    %p116 = pneg %p110
    %p117 = scmp.eq.s32.totalorder %s12, 1
    %p118 = por %p116, %p117
    %p119 = scmp.ne.s32.totalorder %s111, %s114
    %p120 = scmp.eq.s32.totalorder %s12, 0
    %p121 = por %p119, %p120
    %p122 = scmp.ne.s32.totalorder %s111, %s114
    %p123 = scmp.eq.s32.totalorder %s17, 1
    %p124 = por %p122, %p123
    %p125 = scmp.ne.s32.totalorder %s114, %s115
    %p126 = scmp.eq.s32.totalorder %s17, 0
    %p127 = por %p125, %p126
    %p128 = scmp.ne.s32.totalorder %s114, %s115
    %p129 = scmp.eq.s32.totalorder %s18, 1
    %p130 = por %p128, %p129
    %p132 = scmp.ne.s32.totalorder %s115, %s131
    %p133 = scmp.eq.s32.totalorder %s18, 0
    %p134 = por %p132, %p133
    %s135 = ssub.s32 %s12, %s19
    %p136 = scmp.eq.s32.totalorder %s135, 0
    %s138 = sadd.s32 %s137, 1
    %s139 = scalar_select %p136, %s137, %s138
    %p142 = pneg %p136
    %p143 = scmp.eq.s32.totalorder %s12, 1
    %p144 = por %p142, %p143
    %p145 = scmp.ne.s32.totalorder %s137, %s140
    %p146 = scmp.eq.s32.totalorder %s12, 0
    %p147 = por %p145, %p146
    %p148 = scmp.ne.s32.totalorder %s137, %s140
    %p149 = scmp.eq.s32.totalorder %s17, 1
    %p150 = por %p148, %p149
    %p151 = scmp.ne.s32.totalorder %s140, %s141
    %p152 = scmp.eq.s32.totalorder %s17, 0
    %p153 = por %p151, %p152
    %p154 = scmp.ne.s32.totalorder %s140, %s141
    %p155 = scmp.eq.s32.totalorder %s18, 1
    %p156 = por %p154, %p155
    %p158 = scmp.ne.s32.totalorder %s141, %s157
    %p159 = scmp.eq.s32.totalorder %s18, 0
    %p160 = por %p158, %p159
    %p161 = scmp.le.s32.totalorder 1, %s12
    %p162 = scmp.lt.s32.totalorder %s12, 3
    %p163 = pnand %p161, %p162
    %p164 = pneg %p163
    // Predicated region
    $region9: #{basic_block_forward_rows.4} parent=5 // pred_check
      _
    $region10: #{basic_block_forward_rows.4} parent=5 // pred_check_branch
      %166 = sbr.rel (%p163) target = $region12
    $region11: #{basic_block_forward_rows.4} parent=5 // pred_region
      %s167 = ssub.s32 %s12, 1
      // Predicated region
      $region13: #{basic_block_forward_rows.4} parent=11 // pred_check
        %p168 = pneg %p59
      $region14: #{basic_block_forward_rows.4} parent=11 // pred_check_branch
        %170 = sbr.rel (%p168) target = $region16
      $region15: #{basic_block_forward_rows.4} parent=11 // pred_region
        _
      $region16: #{basic_block_forward_rows.4} parent=11 // pred_fallthru
        _
      // Predicated region
      $region17: #{basic_block_forward_rows.4} parent=11 // pred_check
        %p171 = pneg %p80
      $region18: #{basic_block_forward_rows.4} parent=11 // pred_check_branch
        %173 = sbr.rel (%p171) target = $region20
      $region19: #{basic_block_forward_rows.4} parent=11 // pred_region
        _
      $region20: #{basic_block_forward_rows.4} parent=11 // pred_fallthru
        _
      // Predicated region
      $region21: #{basic_block_forward_rows.4} parent=11 // pred_check
        %p174 = pneg %p101
      $region22: #{basic_block_forward_rows.4} parent=11 // pred_check_branch
        %176 = sbr.rel (%p174) target = $region24
      $region23: #{basic_block_forward_rows.4} parent=11 // pred_region
        _
      $region24: #{basic_block_forward_rows.4} parent=11 // pred_fallthru
        _
    $region12: #{basic_block_forward_rows.4} parent=5 // pred_fallthru
      _
    %p177 = scmp.lt.s32.totalorder %s12, 2
    // Predicated region
    $region25: #{basic_block_forward_rows.4} parent=5 // pred_check
      %p178 = pneg %p177
    $region26: #{basic_block_forward_rows.4} parent=5 // pred_check_branch
      %180 = sbr.rel (%p178) target = $region28
    $region27: #{basic_block_forward_rows.4} parent=5 // pred_region
      // Predicated region
      $region29: #{basic_block_forward_rows.4} parent=27 // pred_check
        %p181 = pneg %p32
      $region30: #{basic_block_forward_rows.4} parent=27 // pred_check_branch
        %183 = sbr.rel (%p181) target = $region32
      $region31: #{basic_block_forward_rows.4} parent=27 // pred_region
        %s184 = smul.u32 16, %s12
        %p185 = scmp.lt.s32.totalorder %s184, 31
        %s186 = scalar_select %p185, %s184, 31
        %s187 = smul.addr %s186, 8
        %s188 = scalar_lea.vmem %s0, %s187
        %s189 = smul.u32 16, %s12
      $region32: #{basic_block_forward_rows.4} parent=27 // pred_fallthru
        _
    $region28: #{basic_block_forward_rows.4} parent=5 // pred_fallthru
      _
    %p190 = scmp.le.s32.totalorder 1, %s12
    %p191 = scmp.lt.s32.totalorder %s12, 3
    %p192 = pnand %p190, %p191
    %p193 = pneg %p192
    // Predicated region
    $region33: #{basic_block_forward_rows.4} parent=5 // pred_check
      _
    $region34: #{basic_block_forward_rows.4} parent=5 // pred_check_branch
      %195 = sbr.rel (%p192) target = $region36
    $region35: #{basic_block_forward_rows.4} parent=5 // pred_region
      %s196 = ssub.s32 %s12, 1
      %s197 = smul.u32 16, %s17
      %p198 = scmp.lt.s32.totalorder %s197, 31
      %s199 = scalar_select %p198, %s197, 31
      %s200 = smul.addr %s199, 8
      %s201 = scalar_lea.vmem %s0, %s200
      %p202 = pneg %p38
      %p203 = pneg %p35
      %p204 = pneg %p59
      %p205 = pneg %p56
      %p206 = pneg %p80
      %p207 = pneg %p77
      %p208 = pneg %p101
      %p209 = pneg %p98
      %p210 = pneg %p127
      %p211 = pneg %p124
      %s212 = smul.u32 16, %s17
      %p213 = scmp.lt.s32.totalorder %s212, 31
      %s214 = scalar_select %p213, %s212, 31
      %s215 = smul.addr %s214, 8
      %s216 = scalar_lea.vmem %s4, %s215
      %p217 = pneg %p153
      %p218 = pneg %p150
      %p219 = scmp.lt.s32.totalorder %s17, 1
      %s220 = scalar_select %p219, %s17, 1
      %s221 = smul.addr %s220, 8
      %s222 = scalar_lea.vmem %s5, %s221
      %s223 = smul.u32 16, %s17
      %p224 = scmp.lt.s32.totalorder %s223, 31
      %s225 = scalar_select %p224, %s223, 31
      %s226 = smul.addr %s225, 8
      %s227 = scalar_lea.vmem %s0, %s226
      %s228 = smul.u32 16, %s17
      %s229 = smul.u32 16, %s17
      %p230 = scmp.lt.s32.totalorder %s229, 31
      %s231 = scalar_select %p230, %s229, 31
      %s232 = smul.addr %s231, 8
      %s233 = scalar_lea.vmem %s4, %s232
      %s234 = smul.u32 16, %s17
      %p235 = scmp.lt.s32.totalorder %s17, 1
      %s236 = scalar_select %p235, %s17, 1
      %s237 = smul.addr %s236, 8
      %s238 = scalar_lea.vmem %s5, %s237
      %v239 = vld [vmem:[%s227] sm:$0xff]
      %v240 = vld [vmem:[%s227 + $0x8] sm:$0xff]
      %v241 = vld [vmem:[%s227 + $0x10] sm:$0xff]
      %v242 = vld [vmem:[%s227 + $0x18] sm:$0xff]
      %v243 = vld [vmem:[%s227 + $0x20] sm:$0xff]
      %v244 = vld [vmem:[%s227 + $0x28] sm:$0xff]
      %v245 = vld [vmem:[%s227 + $0x30] sm:$0xff]
      %v246 = vld [vmem:[%s227 + $0x38] sm:$0xff]
      %v247 = vld [vmem:[%s227 + $0x40] sm:$0xff]
      %v248 = vld [vmem:[%s227 + $0x48] sm:$0xff]
      %v249 = vld [vmem:[%s227 + $0x50] sm:$0xff]
      %v250 = vld [vmem:[%s227 + $0x58] sm:$0xff]
      %v251 = vld [vmem:[%s227 + $0x60] sm:$0xff]
      %v252 = vld [vmem:[%s227 + $0x68] sm:$0xff]
      %v253 = vld [vmem:[%s227 + $0x70] sm:$0xff]
      %v254 = vld [vmem:[%s227 + $0x78] sm:$0xff]
      %v255 = vld [vmem:[%s1] sm:$0x1]
      %v257 = vlaneseq
      %v258 = vshrl.u32 %v257, 7
      %v259 = vsub.s32 0, %v258
      %v260 = vrot.slane %v255, %v259
      %v262 = vmul.f32 %v239, %v260
      %v263 = vmul.f32 %v240, %v260
      %v264 = vmul.f32 %v241, %v260
      %v265 = vmul.f32 %v242, %v260
      %v266 = vmul.f32 %v243, %v260
      %v267 = vmul.f32 %v244, %v260
      %v268 = vmul.f32 %v245, %v260
      %v269 = vmul.f32 %v246, %v260
      %v270 = vmul.f32 %v247, %v260
      %v271 = vmul.f32 %v248, %v260
      %v272 = vmul.f32 %v249, %v260
      %v273 = vmul.f32 %v250, %v260
      %v274 = vmul.f32 %v251, %v260
      %v275 = vmul.f32 %v252, %v260
      %v276 = vmul.f32 %v253, %v260
      %v277 = vmul.f32 %v254, %v260
      %v278 = vld [vmem:[%s2] sm:$0x1]
      %v280 = vlaneseq
      %v281 = vshrl.u32 %v280, 7
      %v282 = vsub.s32 0, %v281
      %v283 = vrot.slane %v278, %v282
      %v285 = vadd.f32 %v262, %v283
      %v286 = vadd.f32 %v263, %v283
      %v287 = vadd.f32 %v264, %v283
      %v288 = vadd.f32 %v265, %v283
      %v289 = vadd.f32 %v266, %v283
      %v290 = vadd.f32 %v267, %v283
      %v291 = vadd.f32 %v268, %v283
      %v292 = vadd.f32 %v269, %v283
      %v293 = vadd.f32 %v270, %v283
      %v294 = vadd.f32 %v271, %v283
      %v295 = vadd.f32 %v272, %v283
      %v296 = vadd.f32 %v273, %v283
      %v297 = vadd.f32 %v274, %v283
      %v298 = vadd.f32 %v275, %v283
      %v299 = vadd.f32 %v276, %v283
      %v300 = vadd.f32 %v277, %v283
      %v301 = vmax.f32 %v285, 0.0
      %v302 = vmax.f32 %v286, 0.0
      %v303 = vmax.f32 %v287, 0.0
      %v304 = vmax.f32 %v288, 0.0
      %v305 = vmax.f32 %v289, 0.0
      %v306 = vmax.f32 %v290, 0.0
      %v307 = vmax.f32 %v291, 0.0
      %v308 = vmax.f32 %v292, 0.0
      %v309 = vmax.f32 %v293, 0.0
      %v310 = vmax.f32 %v294, 0.0
      %v311 = vmax.f32 %v295, 0.0
      %v312 = vmax.f32 %v296, 0.0
      %v313 = vmax.f32 %v297, 0.0
      %v314 = vmax.f32 %v298, 0.0
      %v315 = vmax.f32 %v299, 0.0
      %v316 = vmax.f32 %v300, 0.0
      %v317 = vlaneseq
      %v318 = vshrl.u32 %v317, 7
      %v319 = vadd.s32 %v318, 8
      %v320 = vadd.s32 %v318, 16
      %v321 = vadd.s32 %v318, 24
      %v322 = vadd.s32 %v318, 32
      %v323 = vadd.s32 %v318, 40
      %v324 = vadd.s32 %v318, 48
      %v325 = vadd.s32 %v318, 56
      %v326 = vadd.s32 %v318, 64
      %v327 = vadd.s32 %v318, 72
      %v328 = vadd.s32 %v318, 80
      %v329 = vadd.s32 %v318, 88
      %v330 = vadd.s32 %v318, 96
      %v331 = vadd.s32 %v318, 104
      %v332 = vadd.s32 %v318, 112
      %v333 = vadd.s32 %v318, 120
      %vm334 = vcmp.lt.s32.totalorder %v318, 0
      %v335 = vsub.s32 0, %v318
      %v336 = vsel %vm334, %v335, %v318
      %v337 = vshrl.u32 %v336, 4
      %v338 = vand.u32 %v336, 15
      %v339 = vsub.s32 0, %v338
      %v340 = vsel %vm334, %v339, %v338
      %vm341 = vcmp.lt.s32.totalorder %v319, 0
      %v342 = vsub.s32 0, %v319
      %v343 = vsel %vm341, %v342, %v319
      %v344 = vshrl.u32 %v343, 4
      %v345 = vand.u32 %v343, 15
      %v346 = vsub.s32 0, %v345
      %v347 = vsel %vm341, %v346, %v345
      %vm348 = vcmp.lt.s32.totalorder %v320, 0
      %v349 = vsub.s32 0, %v320
      %v350 = vsel %vm348, %v349, %v320
      %v351 = vshrl.u32 %v350, 4
      %v352 = vand.u32 %v350, 15
      %v353 = vsub.s32 0, %v352
      %v354 = vsel %vm348, %v353, %v352
      %vm355 = vcmp.lt.s32.totalorder %v321, 0
      %v356 = vsub.s32 0, %v321
      %v357 = vsel %vm355, %v356, %v321
      %v358 = vshrl.u32 %v357, 4
      %v359 = vand.u32 %v357, 15
      %v360 = vsub.s32 0, %v359
      %v361 = vsel %vm355, %v360, %v359
      %vm362 = vcmp.lt.s32.totalorder %v322, 0
      %v363 = vsub.s32 0, %v322
      %v364 = vsel %vm362, %v363, %v322
      %v365 = vshrl.u32 %v364, 4
      %v366 = vand.u32 %v364, 15
      %v367 = vsub.s32 0, %v366
      %v368 = vsel %vm362, %v367, %v366
      %vm369 = vcmp.lt.s32.totalorder %v323, 0
      %v370 = vsub.s32 0, %v323
      %v371 = vsel %vm369, %v370, %v323
      %v372 = vshrl.u32 %v371, 4
      %v373 = vand.u32 %v371, 15
      %v374 = vsub.s32 0, %v373
      %v375 = vsel %vm369, %v374, %v373
      %vm376 = vcmp.lt.s32.totalorder %v324, 0
      %v377 = vsub.s32 0, %v324
      %v378 = vsel %vm376, %v377, %v324
      %v379 = vshrl.u32 %v378, 4
      %v380 = vand.u32 %v378, 15
      %v381 = vsub.s32 0, %v380
      %v382 = vsel %vm376, %v381, %v380
      %vm383 = vcmp.lt.s32.totalorder %v325, 0
      %v384 = vsub.s32 0, %v325
      %v385 = vsel %vm383, %v384, %v325
      %v386 = vshrl.u32 %v385, 4
      %v387 = vand.u32 %v385, 15
      %v388 = vsub.s32 0, %v387
      %v389 = vsel %vm383, %v388, %v387
      %vm390 = vcmp.lt.s32.totalorder %v326, 0
      %v391 = vsub.s32 0, %v326
      %v392 = vsel %vm390, %v391, %v326
      %v393 = vshrl.u32 %v392, 4
      %v394 = vand.u32 %v392, 15
      %v395 = vsub.s32 0, %v394
      %v396 = vsel %vm390, %v395, %v394
      %vm397 = vcmp.lt.s32.totalorder %v327, 0
      %v398 = vsub.s32 0, %v327
      %v399 = vsel %vm397, %v398, %v327
      %v400 = vshrl.u32 %v399, 4
      %v401 = vand.u32 %v399, 15
      %v402 = vsub.s32 0, %v401
      %v403 = vsel %vm397, %v402, %v401
      %vm404 = vcmp.lt.s32.totalorder %v328, 0
      %v405 = vsub.s32 0, %v328
      %v406 = vsel %vm404, %v405, %v328
      %v407 = vshrl.u32 %v406, 4
      %v408 = vand.u32 %v406, 15
      %v409 = vsub.s32 0, %v408
      %v410 = vsel %vm404, %v409, %v408
      %vm411 = vcmp.lt.s32.totalorder %v329, 0
      %v412 = vsub.s32 0, %v329
      %v413 = vsel %vm411, %v412, %v329
      %v414 = vshrl.u32 %v413, 4
      %v415 = vand.u32 %v413, 15
      %v416 = vsub.s32 0, %v415
      %v417 = vsel %vm411, %v416, %v415
      %vm418 = vcmp.lt.s32.totalorder %v330, 0
      %v419 = vsub.s32 0, %v330
      %v420 = vsel %vm418, %v419, %v330
      %v421 = vshrl.u32 %v420, 4
      %v422 = vand.u32 %v420, 15
      %v423 = vsub.s32 0, %v422
      %v424 = vsel %vm418, %v423, %v422
      %vm425 = vcmp.lt.s32.totalorder %v331, 0
      %v426 = vsub.s32 0, %v331
      %v427 = vsel %vm425, %v426, %v331
      %v428 = vshrl.u32 %v427, 4
      %v429 = vand.u32 %v427, 15
      %v430 = vsub.s32 0, %v429
      %v431 = vsel %vm425, %v430, %v429
      %vm432 = vcmp.lt.s32.totalorder %v332, 0
      %v433 = vsub.s32 0, %v332
      %v434 = vsel %vm432, %v433, %v332
      %v435 = vshrl.u32 %v434, 4
      %v436 = vand.u32 %v434, 15
      %v437 = vsub.s32 0, %v436
      %v438 = vsel %vm432, %v437, %v436
      %vm439 = vcmp.lt.s32.totalorder %v333, 0
      %v440 = vsub.s32 0, %v333
      %v441 = vsel %vm439, %v440, %v333
      %v442 = vshrl.u32 %v441, 4
      %v443 = vand.u32 %v441, 15
      %v444 = vsub.s32 0, %v443
      %v445 = vsel %vm439, %v444, %v443
      %vm446 = vcmp.ne.s32.totalorder %v340, 0
      %vm447 = vcmp.ne.s32.totalorder %v347, 0
      %vm448 = vcmp.ne.s32.totalorder %v354, 0
      %vm449 = vcmp.ne.s32.totalorder %v361, 0
      %vm450 = vcmp.ne.s32.totalorder %v368, 0
      %vm451 = vcmp.ne.s32.totalorder %v375, 0
      %vm452 = vcmp.ne.s32.totalorder %v382, 0
      %vm453 = vcmp.ne.s32.totalorder %v389, 0
      %vm454 = vcmp.ne.s32.totalorder %v396, 0
      %vm455 = vcmp.ne.s32.totalorder %v403, 0
      %vm456 = vcmp.ne.s32.totalorder %v410, 0
      %vm457 = vcmp.ne.s32.totalorder %v417, 0
      %vm458 = vcmp.ne.s32.totalorder %v424, 0
      %vm459 = vcmp.ne.s32.totalorder %v431, 0
      %vm460 = vcmp.ne.s32.totalorder %v438, 0
      %vm461 = vcmp.ne.s32.totalorder %v445, 0
      %vm462 = vcmp.lt.s32.totalorder %v340, 0
      %vm463 = vcmp.lt.s32.totalorder %v347, 0
      %vm464 = vcmp.lt.s32.totalorder %v354, 0
      %vm465 = vcmp.lt.s32.totalorder %v361, 0
      %vm466 = vcmp.lt.s32.totalorder %v368, 0
      %vm467 = vcmp.lt.s32.totalorder %v375, 0
      %vm468 = vcmp.lt.s32.totalorder %v382, 0
      %vm469 = vcmp.lt.s32.totalorder %v389, 0
      %vm470 = vcmp.lt.s32.totalorder %v396, 0
      %vm471 = vcmp.lt.s32.totalorder %v403, 0
      %vm472 = vcmp.lt.s32.totalorder %v410, 0
      %vm473 = vcmp.lt.s32.totalorder %v417, 0
      %vm474 = vcmp.lt.s32.totalorder %v424, 0
      %vm475 = vcmp.lt.s32.totalorder %v431, 0
      %vm476 = vcmp.lt.s32.totalorder %v438, 0
      %vm477 = vcmp.lt.s32.totalorder %v445, 0
      %vm478 = vmand %vm462, %vm446
      %vm479 = vmand %vm463, %vm447
      %vm480 = vmand %vm464, %vm448
      %vm481 = vmand %vm465, %vm449
      %vm482 = vmand %vm466, %vm450
      %vm483 = vmand %vm467, %vm451
      %vm484 = vmand %vm468, %vm452
      %vm485 = vmand %vm469, %vm453
      %vm486 = vmand %vm470, %vm454
      %vm487 = vmand %vm471, %vm455
      %vm488 = vmand %vm472, %vm456
      %vm489 = vmand %vm473, %vm457
      %vm490 = vmand %vm474, %vm458
      %vm491 = vmand %vm475, %vm459
      %vm492 = vmand %vm476, %vm460
      %vm493 = vmand %vm477, %vm461
      %v494 = vadd.s32 %v340, 16
      %v495 = vadd.s32 %v347, 16
      %v496 = vadd.s32 %v354, 16
      %v497 = vadd.s32 %v361, 16
      %v498 = vadd.s32 %v368, 16
      %v499 = vadd.s32 %v375, 16
      %v500 = vadd.s32 %v382, 16
      %v501 = vadd.s32 %v389, 16
      %v502 = vadd.s32 %v396, 16
      %v503 = vadd.s32 %v403, 16
      %v504 = vadd.s32 %v410, 16
      %v505 = vadd.s32 %v417, 16
      %v506 = vadd.s32 %v424, 16
      %v507 = vadd.s32 %v431, 16
      %v508 = vadd.s32 %v438, 16
      %v509 = vadd.s32 %v445, 16
      %v510 = vsel %vm478, %v494, %v340
      %v511 = vsel %vm479, %v495, %v347
      %v512 = vsel %vm480, %v496, %v354
      %v513 = vsel %vm481, %v497, %v361
      %v514 = vsel %vm482, %v498, %v368
      %v515 = vsel %vm483, %v499, %v375
      %v516 = vsel %vm484, %v500, %v382
      %v517 = vsel %vm485, %v501, %v389
      %v518 = vsel %vm486, %v502, %v396
      %v519 = vsel %vm487, %v503, %v403
      %v520 = vsel %vm488, %v504, %v410
      %v521 = vsel %vm489, %v505, %v417
      %v522 = vsel %vm490, %v506, %v424
      %v523 = vsel %vm491, %v507, %v431
      %v524 = vsel %vm492, %v508, %v438
      %v525 = vsel %vm493, %v509, %v445
      %vm526 = vcmp.eq.s32.totalorder %v510, 0
      %vm527 = vcmp.eq.s32.totalorder %v511, 0
      %vm528 = vcmp.eq.s32.totalorder %v512, 0
      %vm529 = vcmp.eq.s32.totalorder %v513, 0
      %vm530 = vcmp.eq.s32.totalorder %v514, 0
      %vm531 = vcmp.eq.s32.totalorder %v515, 0
      %vm532 = vcmp.eq.s32.totalorder %v516, 0
      %vm533 = vcmp.eq.s32.totalorder %v517, 0
      %vm534 = vcmp.eq.s32.totalorder %v518, 0
      %vm535 = vcmp.eq.s32.totalorder %v519, 0
      %vm536 = vcmp.eq.s32.totalorder %v520, 0
      %vm537 = vcmp.eq.s32.totalorder %v521, 0
      %vm538 = vcmp.eq.s32.totalorder %v522, 0
      %vm539 = vcmp.eq.s32.totalorder %v523, 0
      %vm540 = vcmp.eq.s32.totalorder %v524, 0
      %vm541 = vcmp.eq.s32.totalorder %v525, 0
      %vm558 = vcmask 1040384
      %v559 = vrot.slane %v301, 7
      %v560 = vrot.slane %v302, 7
      %v561 = vsel %vm558, %v559, %v560
      %v562 = vrot.slane %v303, 7
      %v563 = vsel %vm558, %v560, %v562
      %v564 = vrot.slane %v304, 7
      %v565 = vsel %vm558, %v562, %v564
      %v566 = vrot.slane %v305, 7
      %v567 = vsel %vm558, %v564, %v566
      %v568 = vrot.slane %v306, 7
      %v569 = vsel %vm558, %v566, %v568
      %v570 = vrot.slane %v307, 7
      %v571 = vsel %vm558, %v568, %v570
      %v572 = vrot.slane %v308, 7
      %v573 = vsel %vm558, %v570, %v572
      %v574 = vrot.slane %v309, 7
      %v575 = vsel %vm558, %v572, %v574
      %v576 = vrot.slane %v310, 7
      %v577 = vsel %vm558, %v574, %v576
      %v578 = vrot.slane %v311, 7
      %v579 = vsel %vm558, %v576, %v578
      %v580 = vrot.slane %v312, 7
      %v581 = vsel %vm558, %v578, %v580
      %v582 = vrot.slane %v313, 7
      %v583 = vsel %vm558, %v580, %v582
      %v584 = vrot.slane %v314, 7
      %v585 = vsel %vm558, %v582, %v584
      %v586 = vrot.slane %v315, 7
      %v587 = vsel %vm558, %v584, %v586
      %v588 = vrot.slane %v316, 7
      %v589 = vsel %vm558, %v586, %v588
      %v606 = vsel %vm558, 0.0, %v559
      %v607 = vsel %vm526, 0.0, %v606
      %v608 = vsel %vm527, 0.0, %v561
      %v609 = vsel %vm528, 0.0, %v563
      %v610 = vsel %vm529, 0.0, %v565
      %v611 = vsel %vm530, 0.0, %v567
      %v612 = vsel %vm531, 0.0, %v569
      %v613 = vsel %vm532, 0.0, %v571
      %v614 = vsel %vm533, 0.0, %v573
      %v615 = vsel %vm534, 0.0, %v575
      %v616 = vsel %vm535, 0.0, %v577
      %v617 = vsel %vm536, 0.0, %v579
      %v618 = vsel %vm537, 0.0, %v581
      %v619 = vsel %vm538, 0.0, %v583
      %v620 = vsel %vm539, 0.0, %v585
      %v621 = vsel %vm540, 0.0, %v587
      %v622 = vsel %vm541, 0.0, %v589
      %vm623 = vcmp.eq.s32.totalorder %v510, 15
      %vm624 = vcmp.eq.s32.totalorder %v511, 15
      %vm625 = vcmp.eq.s32.totalorder %v512, 15
      %vm626 = vcmp.eq.s32.totalorder %v513, 15
      %vm627 = vcmp.eq.s32.totalorder %v514, 15
      %vm628 = vcmp.eq.s32.totalorder %v515, 15
      %vm629 = vcmp.eq.s32.totalorder %v516, 15
      %vm630 = vcmp.eq.s32.totalorder %v517, 15
      %vm631 = vcmp.eq.s32.totalorder %v518, 15
      %vm632 = vcmp.eq.s32.totalorder %v519, 15
      %vm633 = vcmp.eq.s32.totalorder %v520, 15
      %vm634 = vcmp.eq.s32.totalorder %v521, 15
      %vm635 = vcmp.eq.s32.totalorder %v522, 15
      %vm636 = vcmp.eq.s32.totalorder %v523, 15
      %vm637 = vcmp.eq.s32.totalorder %v524, 15
      %vm638 = vcmp.eq.s32.totalorder %v525, 15
      %vm639 = vcmask 1046528
      %v640 = vrot.slane %v301, 1
      %v641 = vrot.slane %v302, 1
      %v642 = vsel %vm639, %v640, %v641
      %v643 = vrot.slane %v303, 1
      %v644 = vsel %vm639, %v641, %v643
      %v645 = vrot.slane %v304, 1
      %v646 = vsel %vm639, %v643, %v645
      %v647 = vrot.slane %v305, 1
      %v648 = vsel %vm639, %v645, %v647
      %v649 = vrot.slane %v306, 1
      %v650 = vsel %vm639, %v647, %v649
      %v651 = vrot.slane %v307, 1
      %v652 = vsel %vm639, %v649, %v651
      %v653 = vrot.slane %v308, 1
      %v654 = vsel %vm639, %v651, %v653
      %v655 = vrot.slane %v309, 1
      %v656 = vsel %vm639, %v653, %v655
      %v657 = vrot.slane %v310, 1
      %v658 = vsel %vm639, %v655, %v657
      %v659 = vrot.slane %v311, 1
      %v660 = vsel %vm639, %v657, %v659
      %v661 = vrot.slane %v312, 1
      %v662 = vsel %vm639, %v659, %v661
      %v663 = vrot.slane %v313, 1
      %v664 = vsel %vm639, %v661, %v663
      %v665 = vrot.slane %v314, 1
      %v666 = vsel %vm639, %v663, %v665
      %v667 = vrot.slane %v315, 1
      %v668 = vsel %vm639, %v665, %v667
      %v669 = vrot.slane %v316, 1
      %v670 = vsel %vm639, %v667, %v669
      %v687 = vsel %vm639, %v669, 0.0
      %v688 = vsel %vm623, 0.0, %v642
      %v689 = vsel %vm624, 0.0, %v644
      %v690 = vsel %vm625, 0.0, %v646
      %v691 = vsel %vm626, 0.0, %v648
      %v692 = vsel %vm627, 0.0, %v650
      %v693 = vsel %vm628, 0.0, %v652
      %v694 = vsel %vm629, 0.0, %v654
      %v695 = vsel %vm630, 0.0, %v656
      %v696 = vsel %vm631, 0.0, %v658
      %v697 = vsel %vm632, 0.0, %v660
      %v698 = vsel %vm633, 0.0, %v662
      %v699 = vsel %vm634, 0.0, %v664
      %v700 = vsel %vm635, 0.0, %v666
      %v701 = vsel %vm636, 0.0, %v668
      %v702 = vsel %vm637, 0.0, %v670
      %v703 = vsel %vm638, 0.0, %v687
      %v704 = vld [vmem:[%s3] sm:$0xff]
      %v705 = vld [vmem:[%s3 + $0x8] sm:$0xff]
      %v706 = vld [vmem:[%s3 + $0x10] sm:$0xff]
      %v707 = vld [vmem:[%s3 + $0x18] sm:$0xff]
      %v708 = vld [vmem:[%s3 + $0x20] sm:$0xff]
      %v709 = vld [vmem:[%s3 + $0x28] sm:$0xff]
      %v710 = vld [vmem:[%s3 + $0x30] sm:$0xff]
      %v711 = vld [vmem:[%s3 + $0x38] sm:$0xff]
      %v712 = vld [vmem:[%s3 + $0x40] sm:$0xff]
      %v713 = vld [vmem:[%s3 + $0x48] sm:$0xff]
      %v714 = vld [vmem:[%s3 + $0x50] sm:$0xff]
      %v715 = vld [vmem:[%s3 + $0x58] sm:$0xff]
      %v716 = vld [vmem:[%s3 + $0x60] sm:$0xff]
      %v717 = vld [vmem:[%s3 + $0x68] sm:$0xff]
      %v718 = vld [vmem:[%s3 + $0x70] sm:$0xff]
      %v719 = vld [vmem:[%s3 + $0x78] sm:$0xff]
      %v720 = vld [vmem:[%s3 + $0x80] sm:$0xff]
      %v721 = vld [vmem:[%s3 + $0x88] sm:$0xff]
      %v722 = vld [vmem:[%s3 + $0x90] sm:$0xff]
      %v723 = vld [vmem:[%s3 + $0x98] sm:$0xff]
      %v724 = vld [vmem:[%s3 + $0xa0] sm:$0xff]
      %v725 = vld [vmem:[%s3 + $0xa8] sm:$0xff]
      %v726 = vld [vmem:[%s3 + $0xb0] sm:$0xff]
      %v727 = vld [vmem:[%s3 + $0xb8] sm:$0xff]
      %v728 = vld [vmem:[%s3 + $0xc0] sm:$0xff]
      %v729 = vld [vmem:[%s3 + $0xc8] sm:$0xff]
      %v730 = vld [vmem:[%s3 + $0xd0] sm:$0xff]
      %v731 = vld [vmem:[%s3 + $0xd8] sm:$0xff]
      %v732 = vld [vmem:[%s3 + $0xe0] sm:$0xff]
      %v733 = vld [vmem:[%s3 + $0xe8] sm:$0xff]
      %v734 = vld [vmem:[%s3 + $0xf0] sm:$0xff]
      %v735 = vld [vmem:[%s3 + $0xf8] sm:$0xff]
      %v736 = vld [vmem:[%s3 + $0x100] sm:$0xff]
      %v737 = vld [vmem:[%s3 + $0x108] sm:$0xff]
      %v738 = vld [vmem:[%s3 + $0x110] sm:$0xff]
      %v739 = vld [vmem:[%s3 + $0x118] sm:$0xff]
      %v740 = vld [vmem:[%s3 + $0x120] sm:$0xff]
      %v741 = vld [vmem:[%s3 + $0x128] sm:$0xff]
      %v742 = vld [vmem:[%s3 + $0x130] sm:$0xff]
      %v743 = vld [vmem:[%s3 + $0x138] sm:$0xff]
      %v744 = vld [vmem:[%s3 + $0x140] sm:$0xff]
      %v745 = vld [vmem:[%s3 + $0x148] sm:$0xff]
      %v746 = vld [vmem:[%s3 + $0x150] sm:$0xff]
      %v747 = vld [vmem:[%s3 + $0x158] sm:$0xff]
      %v748 = vld [vmem:[%s3 + $0x160] sm:$0xff]
      %v749 = vld [vmem:[%s3 + $0x168] sm:$0xff]
      %v750 = vld [vmem:[%s3 + $0x170] sm:$0xff]
      %v751 = vld [vmem:[%s3 + $0x178] sm:$0xff]
      %752 = vmatprep.subr.mxu0 0.0
      %753 = vmatpush1.msra.mxu0 %v704
      %754 = vmatprep.subr.mxu0 0.0
      %755 = vmatpush1.msra.mxu0 %v705
      %756 = vmatprep.subr.mxu0 0.0
      %757 = vmatpush1.msra.mxu0 %v706
      %758 = vmatprep.subr.mxu0 0.0
      %759 = vmatpush1.msra.mxu0 %v707
      %760 = vmatprep.subr.mxu0 0.0
      %761 = vmatpush1.msra.mxu0 %v708
      %762 = vmatprep.subr.mxu0 0.0
      %763 = vmatpush1.msra.mxu0 %v709
      %764 = vmatprep.subr.mxu0 0.0
      %765 = vmatpush1.msra.mxu0 %v710
      %766 = vmatprep.subr.mxu0 0.0
      %767 = vmatpush1.msra.mxu0 %v711
      %768 = vmatprep.subr.mxu0 0.0
      %769 = vmatpush1.msra.mxu0 %v712
      %770 = vmatprep.subr.mxu0 0.0
      %771 = vmatpush1.msra.mxu0 %v713
      %772 = vmatprep.subr.mxu0 0.0
      %773 = vmatpush1.msra.mxu0 %v714
      %774 = vmatprep.subr.mxu0 0.0
      %775 = vmatpush1.msra.mxu0 %v715
      %776 = vmatprep.subr.mxu0 0.0
      %777 = vmatpush1.msra.mxu0 %v716
      %778 = vmatprep.subr.mxu0 0.0
      %779 = vmatpush1.msra.mxu0 %v717
      %780 = vmatprep.subr.mxu0 0.0
      %781 = vmatpush1.msra.mxu0 %v718
      %782 = vmatprep.subr.mxu0 0.0
      %783 = vmatpush1.msra.mxu0 %v719
      %784 = vmatprep.subr.mxu0 0.0
      %785 = vmatpush1.msra.mxu0 %v720
      %786 = vmatprep.subr.mxu0 0.0
      %787 = vmatpush1.msra.mxu0 %v721
      %788 = vmatprep.subr.mxu0 0.0
      %789 = vmatpush1.msra.mxu0 %v722
      %790 = vmatprep.subr.mxu0 0.0
      %791 = vmatpush1.msra.mxu0 %v723
      %792 = vmatprep.subr.mxu0 0.0
      %793 = vmatpush1.msra.mxu0 %v724
      %794 = vmatprep.subr.mxu0 0.0
      %795 = vmatpush1.msra.mxu0 %v725
      %796 = vmatprep.subr.mxu0 0.0
      %797 = vmatpush1.msra.mxu0 %v726
      %798 = vmatprep.subr.mxu0 0.0
      %799 = vmatpush1.msra.mxu0 %v727
      %800 = vmatprep.subr.mxu0 0.0
      %801 = vmatpush1.msra.mxu0 %v728
      %802 = vmatprep.subr.mxu0 0.0
      %803 = vmatpush1.msra.mxu0 %v729
      %804 = vmatprep.subr.mxu0 0.0
      %805 = vmatpush1.msra.mxu0 %v730
      %806 = vmatprep.subr.mxu0 0.0
      %807 = vmatpush1.msra.mxu0 %v731
      %808 = vmatprep.subr.mxu0 0.0
      %809 = vmatpush1.msra.mxu0 %v732
      %810 = vmatprep.subr.mxu0 0.0
      %811 = vmatpush1.msra.mxu0 %v733
      %812 = vmatprep.subr.mxu0 0.0
      %813 = vmatpush1.msra.mxu0 %v734
      %814 = vmatprep.subr.mxu0 0.0
      %815 = vmatpush1.msra.mxu0 %v735
      %816 = vmatprep.mubr.f32.mxu0 %v301
      %817 = vmatmul.mubr.f32.gmra.mrb[0].mxu0 %v607
      %v818 = vpop.f32.mrb[0].mxu0
      %v819 = vadd.f32 0.0, %v818
      %v820 = vpop.f32.mrb[0].mxu0
      %821 = vmatprep.mubr.f32.mxu0 %v302
      %822 = vmatmul.mubr.f32.gmra.mrb[0].mxu0 %v608
      %v823 = vpop.f32.mrb[0].mxu0
      %v824 = vadd.f32 0.0, %v823
      %v825 = vpop.f32.mrb[0].mxu0
      %826 = vmatprep.mubr.f32.mxu0 %v303
      %827 = vmatmul.mubr.f32.gmra.mrb[0].mxu0 %v609
      %v828 = vpop.f32.mrb[0].mxu0
      %v829 = vadd.f32 0.0, %v828
      %v830 = vpop.f32.mrb[0].mxu0
      %831 = vmatprep.mubr.f32.mxu0 %v304
      %832 = vmatmul.mubr.f32.gmra.mrb[0].mxu0 %v610
      %v833 = vpop.f32.mrb[0].mxu0
      %v834 = vadd.f32 0.0, %v833
      %v835 = vpop.f32.mrb[0].mxu0
      %836 = vmatprep.mubr.f32.mxu0 %v305
      %837 = vmatmul.mubr.f32.gmra.mrb[0].mxu0 %v611
      %v838 = vpop.f32.mrb[0].mxu0
      %v839 = vadd.f32 0.0, %v838
      %v840 = vpop.f32.mrb[0].mxu0
      %841 = vmatprep.mubr.f32.mxu0 %v306
      %842 = vmatmul.mubr.f32.gmra.mrb[0].mxu0 %v612
      %v843 = vpop.f32.mrb[0].mxu0
      %v844 = vadd.f32 0.0, %v843
      %v845 = vpop.f32.mrb[0].mxu0
      %846 = vmatprep.mubr.f32.mxu0 %v307
      %847 = vmatmul.mubr.f32.gmra.mrb[0].mxu0 %v613
      %v848 = vpop.f32.mrb[0].mxu0
      %v849 = vadd.f32 0.0, %v848
      %v850 = vpop.f32.mrb[0].mxu0
      %851 = vmatprep.mubr.f32.mxu0 %v308
      %852 = vmatmul.mubr.f32.gmra.mrb[0].mxu0 %v614
      %v853 = vpop.f32.mrb[0].mxu0
      %v854 = vadd.f32 0.0, %v853
      %v855 = vpop.f32.mrb[0].mxu0
      %856 = vmatprep.mubr.f32.mxu0 %v309
      %857 = vmatmul.mubr.f32.gmra.mrb[0].mxu0 %v615
      %v858 = vpop.f32.mrb[0].mxu0
      %v859 = vadd.f32 0.0, %v858
      %v860 = vpop.f32.mrb[0].mxu0
      %861 = vmatprep.mubr.f32.mxu0 %v310
      %862 = vmatmul.mubr.f32.gmra.mrb[0].mxu0 %v616
      %v863 = vpop.f32.mrb[0].mxu0
      %v864 = vadd.f32 0.0, %v863
      %v865 = vpop.f32.mrb[0].mxu0
      %866 = vmatprep.mubr.f32.mxu0 %v311
      %867 = vmatmul.mubr.f32.gmra.mrb[0].mxu0 %v617
      %v868 = vpop.f32.mrb[0].mxu0
      %v869 = vadd.f32 0.0, %v868
      %v870 = vpop.f32.mrb[0].mxu0
      %871 = vmatprep.mubr.f32.mxu0 %v312
      %872 = vmatmul.mubr.f32.gmra.mrb[0].mxu0 %v618
      %v873 = vpop.f32.mrb[0].mxu0
      %v874 = vadd.f32 0.0, %v873
      %v875 = vpop.f32.mrb[0].mxu0
      %876 = vmatprep.mubr.f32.mxu0 %v313
      %877 = vmatmul.mubr.f32.gmra.mrb[0].mxu0 %v619
      %v878 = vpop.f32.mrb[0].mxu0
      %v879 = vadd.f32 0.0, %v878
      %v880 = vpop.f32.mrb[0].mxu0
      %881 = vmatprep.mubr.f32.mxu0 %v314
      %882 = vmatmul.mubr.f32.gmra.mrb[0].mxu0 %v620
      %v883 = vpop.f32.mrb[0].mxu0
      %v884 = vadd.f32 0.0, %v883
      %v885 = vpop.f32.mrb[0].mxu0
      %886 = vmatprep.mubr.f32.mxu0 %v315
      %887 = vmatmul.mubr.f32.gmra.mrb[0].mxu0 %v621
      %v888 = vpop.f32.mrb[0].mxu0
      %v889 = vadd.f32 0.0, %v888
      %v890 = vpop.f32.mrb[0].mxu0
      %891 = vmatprep.mubr.f32.mxu0 %v316
      %892 = vmatmul.mubr.f32.gmra.mrb[0].mxu0 %v622
      %v893 = vpop.f32.mrb[0].mxu0
      %v894 = vadd.f32 0.0, %v893
      %v895 = vpop.f32.mrb[0].mxu0
      %896 = vdwg.mxu0
      %897 = vmatprep.subr.mxu0 0.0
      %898 = vmatpush1.msra.mxu0 %v736
      %899 = vmatprep.subr.mxu0 0.0
      %900 = vmatpush1.msra.mxu0 %v737
      %901 = vmatprep.subr.mxu0 0.0
      %902 = vmatpush1.msra.mxu0 %v738
      %903 = vmatprep.subr.mxu0 0.0
      %904 = vmatpush1.msra.mxu0 %v739
      %905 = vmatprep.subr.mxu0 0.0
      %906 = vmatpush1.msra.mxu0 %v740
      %907 = vmatprep.subr.mxu0 0.0
      %908 = vmatpush1.msra.mxu0 %v741
      %909 = vmatprep.subr.mxu0 0.0
      %910 = vmatpush1.msra.mxu0 %v742
      %911 = vmatprep.subr.mxu0 0.0
      %912 = vmatpush1.msra.mxu0 %v743
      %913 = vmatprep.subr.mxu0 0.0
      %914 = vmatpush1.msra.mxu0 %v744
      %915 = vmatprep.subr.mxu0 0.0
      %916 = vmatpush1.msra.mxu0 %v745
      %917 = vmatprep.subr.mxu0 0.0
      %918 = vmatpush1.msra.mxu0 %v746
      %919 = vmatprep.subr.mxu0 0.0
      %920 = vmatpush1.msra.mxu0 %v747
      %921 = vmatprep.subr.mxu0 0.0
      %922 = vmatpush1.msra.mxu0 %v748
      %923 = vmatprep.subr.mxu0 0.0
      %924 = vmatpush1.msra.mxu0 %v749
      %925 = vmatprep.subr.mxu0 0.0
      %926 = vmatpush1.msra.mxu0 %v750
      %927 = vmatprep.subr.mxu0 0.0
      %928 = vmatpush1.msra.mxu0 %v751
      %929 = vmatprep.subr.mxu0 0.0
      %930 = vmatpush1.msra.mxu0 0.0
      %931 = vmatprep.subr.mxu0 0.0
      %932 = vmatpush1.msra.mxu0 0.0
      %933 = vmatprep.subr.mxu0 0.0
      %934 = vmatpush1.msra.mxu0 0.0
      %935 = vmatprep.subr.mxu0 0.0
      %936 = vmatpush1.msra.mxu0 0.0
      %937 = vmatprep.subr.mxu0 0.0
      %938 = vmatpush1.msra.mxu0 0.0
      %939 = vmatprep.subr.mxu0 0.0
      %940 = vmatpush1.msra.mxu0 0.0
      %941 = vmatprep.subr.mxu0 0.0
      %942 = vmatpush1.msra.mxu0 0.0
      %943 = vmatprep.subr.mxu0 0.0
      %944 = vmatpush1.msra.mxu0 0.0
      %945 = vmatprep.subr.mxu0 0.0
      %946 = vmatpush1.msra.mxu0 0.0
      %947 = vmatprep.subr.mxu0 0.0
      %948 = vmatpush1.msra.mxu0 0.0
      %949 = vmatprep.subr.mxu0 0.0
      %950 = vmatpush1.msra.mxu0 0.0
      %951 = vmatprep.subr.mxu0 0.0
      %952 = vmatpush1.msra.mxu0 0.0
      %953 = vmatprep.subr.mxu0 0.0
      %954 = vmatpush1.msra.mxu0 0.0
      %955 = vmatprep.subr.mxu0 0.0
      %956 = vmatpush1.msra.mxu0 0.0
      %957 = vmatprep.subr.mxu0 0.0
      %958 = vmatpush1.msra.mxu0 0.0
      %959 = vmatprep.subr.mxu0 0.0
      %960 = vmatpush1.msra.mxu0 0.0
      %961 = vmatprep.mubr.f32.mxu0 0.0
      %962 = vmatmul.mubr.f32.gmra.mrb[0].mxu0 %v688
      %v963 = vpop.f32.mrb[0].mxu0
      %v964 = vadd.f32 %v819, %v963
      %v965 = vpop.f32.mrb[0].mxu0
      %966 = vmatprep.mubr.f32.mxu0 0.0
      %967 = vmatmul.mubr.f32.gmra.mrb[0].mxu0 %v689
      %v968 = vpop.f32.mrb[0].mxu0
      %v969 = vadd.f32 %v824, %v968
      %v970 = vpop.f32.mrb[0].mxu0
      %971 = vmatprep.mubr.f32.mxu0 0.0
      %972 = vmatmul.mubr.f32.gmra.mrb[0].mxu0 %v690
      %v973 = vpop.f32.mrb[0].mxu0
      %v974 = vadd.f32 %v829, %v973
      %v975 = vpop.f32.mrb[0].mxu0
      %976 = vmatprep.mubr.f32.mxu0 0.0
      %977 = vmatmul.mubr.f32.gmra.mrb[0].mxu0 %v691
      %v978 = vpop.f32.mrb[0].mxu0
      %v979 = vadd.f32 %v834, %v978
      %v980 = vpop.f32.mrb[0].mxu0
      %981 = vmatprep.mubr.f32.mxu0 0.0
      %982 = vmatmul.mubr.f32.gmra.mrb[0].mxu0 %v692
      %v983 = vpop.f32.mrb[0].mxu0
      %v984 = vadd.f32 %v839, %v983
      %v985 = vpop.f32.mrb[0].mxu0
      %986 = vmatprep.mubr.f32.mxu0 0.0
      %987 = vmatmul.mubr.f32.gmra.mrb[0].mxu0 %v693
      %v988 = vpop.f32.mrb[0].mxu0
      %v989 = vadd.f32 %v844, %v988
      %v990 = vpop.f32.mrb[0].mxu0
      %991 = vmatprep.mubr.f32.mxu0 0.0
      %992 = vmatmul.mubr.f32.gmra.mrb[0].mxu0 %v694
      %v993 = vpop.f32.mrb[0].mxu0
      %v994 = vadd.f32 %v849, %v993
      %v995 = vpop.f32.mrb[0].mxu0
      %996 = vmatprep.mubr.f32.mxu0 0.0
      %997 = vmatmul.mubr.f32.gmra.mrb[0].mxu0 %v695
      %v998 = vpop.f32.mrb[0].mxu0
      %v999 = vadd.f32 %v854, %v998
      %v1000 = vpop.f32.mrb[0].mxu0
      %1001 = vmatprep.mubr.f32.mxu0 0.0
      %1002 = vmatmul.mubr.f32.gmra.mrb[0].mxu0 %v696
      %v1003 = vpop.f32.mrb[0].mxu0
      %v1004 = vadd.f32 %v859, %v1003
      %v1005 = vpop.f32.mrb[0].mxu0
      %1006 = vmatprep.mubr.f32.mxu0 0.0
      %1007 = vmatmul.mubr.f32.gmra.mrb[0].mxu0 %v697
      %v1008 = vpop.f32.mrb[0].mxu0
      %v1009 = vadd.f32 %v864, %v1008
      %v1010 = vpop.f32.mrb[0].mxu0
      %1011 = vmatprep.mubr.f32.mxu0 0.0
      %1012 = vmatmul.mubr.f32.gmra.mrb[0].mxu0 %v698
      %v1013 = vpop.f32.mrb[0].mxu0
      %v1014 = vadd.f32 %v869, %v1013
      %v1015 = vpop.f32.mrb[0].mxu0
      %1016 = vmatprep.mubr.f32.mxu0 0.0
      %1017 = vmatmul.mubr.f32.gmra.mrb[0].mxu0 %v699
      %v1018 = vpop.f32.mrb[0].mxu0
      %v1019 = vadd.f32 %v874, %v1018
      %v1020 = vpop.f32.mrb[0].mxu0
      %1021 = vmatprep.mubr.f32.mxu0 0.0
      %1022 = vmatmul.mubr.f32.gmra.mrb[0].mxu0 %v700
      %v1023 = vpop.f32.mrb[0].mxu0
      %v1024 = vadd.f32 %v879, %v1023
      %v1025 = vpop.f32.mrb[0].mxu0
      %1026 = vmatprep.mubr.f32.mxu0 0.0
      %1027 = vmatmul.mubr.f32.gmra.mrb[0].mxu0 %v701
      %v1028 = vpop.f32.mrb[0].mxu0
      %v1029 = vadd.f32 %v884, %v1028
      %v1030 = vpop.f32.mrb[0].mxu0
      %1031 = vmatprep.mubr.f32.mxu0 0.0
      %1032 = vmatmul.mubr.f32.gmra.mrb[0].mxu0 %v702
      %v1033 = vpop.f32.mrb[0].mxu0
      %v1034 = vadd.f32 %v889, %v1033
      %v1035 = vpop.f32.mrb[0].mxu0
      %1036 = vmatprep.mubr.f32.mxu0 0.0
      %1037 = vmatmul.mubr.f32.gmra.mrb[0].mxu0 %v703
      %v1038 = vpop.f32.mrb[0].mxu0
      %v1039 = vadd.f32 %v894, %v1038
      %v1040 = vpop.f32.mrb[0].mxu0
      %1041 = vdwg.mxu0
      %1042 = vst [vmem:[%s233] sm:$0xff] %v964
      %1043 = vst [vmem:[%s233 + $0x8] sm:$0xff] %v969
      %1044 = vst [vmem:[%s233 + $0x10] sm:$0xff] %v974
      %1045 = vst [vmem:[%s233 + $0x18] sm:$0xff] %v979
      %1046 = vst [vmem:[%s233 + $0x20] sm:$0xff] %v984
      %1047 = vst [vmem:[%s233 + $0x28] sm:$0xff] %v989
      %1048 = vst [vmem:[%s233 + $0x30] sm:$0xff] %v994
      %1049 = vst [vmem:[%s233 + $0x38] sm:$0xff] %v999
      %1050 = vst [vmem:[%s233 + $0x40] sm:$0xff] %v1004
      %1051 = vst [vmem:[%s233 + $0x48] sm:$0xff] %v1009
      %1052 = vst [vmem:[%s233 + $0x50] sm:$0xff] %v1014
      %1053 = vst [vmem:[%s233 + $0x58] sm:$0xff] %v1019
      %1054 = vst [vmem:[%s233 + $0x60] sm:$0xff] %v1024
      %1055 = vst [vmem:[%s233 + $0x68] sm:$0xff] %v1029
      %1056 = vst [vmem:[%s233 + $0x70] sm:$0xff] %v1034
      %1057 = vst [vmem:[%s233 + $0x78] sm:$0xff] %v1039
      %v1058 = vadd.f32 %v964, %v969
      %v1059 = vadd.f32 %v1058, %v974
      %v1060 = vadd.f32 %v1059, %v979
      %v1061 = vadd.f32 %v1060, %v984
      %v1062 = vadd.f32 %v1061, %v989
      %v1063 = vadd.f32 %v1062, %v994
      %v1064 = vadd.f32 %v1063, %v999
      %v1065 = vadd.f32 %v1064, %v1004
      %v1066 = vadd.f32 %v1065, %v1009
      %v1067 = vadd.f32 %v1066, %v1014
      %v1068 = vadd.f32 %v1067, %v1019
      %v1069 = vadd.f32 %v1068, %v1024
      %v1070 = vadd.f32 %v1069, %v1029
      %v1071 = vadd.f32 %v1070, %v1034
      %v1072 = vadd.f32 %v1071, %v1039
      %v1073 = vrot.slane %v1072, 4
      %v1074 = vadd.f32 %v1072, %v1073
      %v1075 = vrot.slane %v1074, 2
      %v1076 = vadd.f32 %v1074, %v1075
      %v1077 = vrot.slane %v1076, 1
      %v1078 = vadd.f32 %v1076, %v1077
      %v1079 = vmul.f32 %v964, %v964
      %v1080 = vmul.f32 %v969, %v969
      %v1081 = vmul.f32 %v974, %v974
      %v1082 = vmul.f32 %v979, %v979
      %v1083 = vmul.f32 %v984, %v984
      %v1084 = vmul.f32 %v989, %v989
      %v1085 = vmul.f32 %v994, %v994
      %v1086 = vmul.f32 %v999, %v999
      %v1087 = vmul.f32 %v1004, %v1004
      %v1088 = vmul.f32 %v1009, %v1009
      %v1089 = vmul.f32 %v1014, %v1014
      %v1090 = vmul.f32 %v1019, %v1019
      %v1091 = vmul.f32 %v1024, %v1024
      %v1092 = vmul.f32 %v1029, %v1029
      %v1093 = vmul.f32 %v1034, %v1034
      %v1094 = vmul.f32 %v1039, %v1039
      %v1095 = vadd.f32 %v1079, %v1080
      %v1096 = vadd.f32 %v1095, %v1081
      %v1097 = vadd.f32 %v1096, %v1082
      %v1098 = vadd.f32 %v1097, %v1083
      %v1099 = vadd.f32 %v1098, %v1084
      %v1100 = vadd.f32 %v1099, %v1085
      %v1101 = vadd.f32 %v1100, %v1086
      %v1102 = vadd.f32 %v1101, %v1087
      %v1103 = vadd.f32 %v1102, %v1088
      %v1104 = vadd.f32 %v1103, %v1089
      %v1105 = vadd.f32 %v1104, %v1090
      %v1106 = vadd.f32 %v1105, %v1091
      %v1107 = vadd.f32 %v1106, %v1092
      %v1108 = vadd.f32 %v1107, %v1093
      %v1109 = vadd.f32 %v1108, %v1094
      %v1110 = vrot.slane %v1109, 4
      %v1111 = vadd.f32 %v1109, %v1110
      %v1112 = vrot.slane %v1111, 2
      %v1113 = vadd.f32 %v1111, %v1112
      %v1114 = vrot.slane %v1113, 1
      %v1115 = vadd.f32 %v1113, %v1114
      %vm1116 = vcmp.eq.s32.totalorder %v318, 0
      %vm1117 = vcmp.eq.s32.totalorder %v318, 1
      %v1118 = vsel %vm1117, %v1115, 0.0
      %v1119 = vsel %vm1116, %v1078, %v1118
      %1120 = vst [vmem:[%s238] sm:$0xff] %v1119
      %s1121 = smul.u32 16, %s17
      %p1122 = scmp.lt.s32.totalorder %s1121, 31
      %s1123 = scalar_select %p1122, %s1121, 31
      %s1124 = smul.addr %s1123, 8
      %s1125 = scalar_lea.vmem %s4, %s1124
      %p1126 = scmp.lt.s32.totalorder %s17, 1
      %s1127 = scalar_select %p1126, %s17, 1
      %s1128 = smul.addr %s1127, 8
      %s1129 = scalar_lea.vmem %s5, %s1128
      // Predicated region
      $region37: #{basic_block_forward_rows.4} parent=35 // pred_check
        %p1130 = pneg %p124
      $region38: #{basic_block_forward_rows.4} parent=35 // pred_check_branch
        %1132 = sbr.rel (%p1130) target = $region40
      $region39: #{basic_block_forward_rows.4} parent=35 // pred_region
        %s1133 = smul.u32 16, %s17
      $region40: #{basic_block_forward_rows.4} parent=35 // pred_fallthru
        _
      // Predicated region
      $region41: #{basic_block_forward_rows.4} parent=35 // pred_check
        %p1134 = pneg %p150
      $region42: #{basic_block_forward_rows.4} parent=35 // pred_check_branch
        %1136 = sbr.rel (%p1134) target = $region44
      $region43: #{basic_block_forward_rows.4} parent=35 // pred_region
        _
      $region44: #{basic_block_forward_rows.4} parent=35 // pred_fallthru
        _
    $region36: #{basic_block_forward_rows.4} parent=5 // pred_fallthru
      _
    %p1137 = scmp.le.s32.totalorder 2, %s12
    // Predicated region
    $region45: #{basic_block_forward_rows.4} parent=5 // pred_check
      %p1138 = pneg %p1137
    $region46: #{basic_block_forward_rows.4} parent=5 // pred_check_branch
      %1140 = sbr.rel (%p1138) target = $region48
    $region47: #{basic_block_forward_rows.4} parent=5 // pred_region
      %s1141 = ssub.s32 %s12, 2
      // Predicated region
      $region49: #{basic_block_forward_rows.4} parent=47 // pred_check
        %p1142 = pneg %p130
      $region50: #{basic_block_forward_rows.4} parent=47 // pred_check_branch
        %1144 = sbr.rel (%p1142) target = $region52
      $region51: #{basic_block_forward_rows.4} parent=47 // pred_region
        %s1145 = smul.u32 16, %s18
        %p1146 = scmp.lt.s32.totalorder %s1145, 31
        %s1147 = scalar_select %p1146, %s1145, 31
        %s1148 = smul.addr %s1147, 8
        %s1149 = scalar_lea.vmem %s4, %s1148
      $region52: #{basic_block_forward_rows.4} parent=47 // pred_fallthru
        _
      // Predicated region
      $region53: #{basic_block_forward_rows.4} parent=47 // pred_check
        %p1150 = pneg %p156
      $region54: #{basic_block_forward_rows.4} parent=47 // pred_check_branch
        %1152 = sbr.rel (%p1150) target = $region56
      $region55: #{basic_block_forward_rows.4} parent=47 // pred_region
        %p1153 = scmp.lt.s32.totalorder %s18, 1
        %s1154 = scalar_select %p1153, %s18, 1
        %s1155 = smul.addr %s1154, 8
        %s1156 = scalar_lea.vmem %s5, %s1155
      $region56: #{basic_block_forward_rows.4} parent=47 // pred_fallthru
        _
    $region48: #{basic_block_forward_rows.4} parent=5 // pred_fallthru
      _
  $region6: #{basic_block_forward_rows.4} parent=0 // loop_footer
    %s16 = sadd.s32 1, %s12
  $region7: #{basic_block_forward_rows.4} parent=0 // loop_footer_branch
    %11 = sbr.rel target = $region3
  $region8: #{basic_block_forward_rows.4} parent=0 // loop_exit
    _

</llo_original>
